<compile_context>
chip_gen: v7x
topology: tpu7x:2x2x1
jax: 0.10.0
libtpu: 0.0.40
codegen_flags: <defaults>
</compile_context>

<pallas_src>
import math

import jax
import jax.numpy as jnp
import numpy as np
from jax.experimental import pallas as pl
from jax.experimental.pallas import tpu as pltpu

H = W = 28                  # fc1 in_features = 12544 = 16*28*28  =>  28x28 input
HP = WP = 30                # zero-padded spatial extent
HS = 32                     # sublane-aligned rows per sample (30 padded + 2 zero)
EPS = 1e-5                  # torch BatchNorm2d default eps
NEG_SLOPE = 0.01            # torch LeakyReLU default negative_slope
C1, C2, C3 = 4, 8, 16       # conv channel widths
NOUT = 10                   # fc1 out_features
F32 = jnp.float32


def _leaky(v):
    return jnp.where(v > 0, v, NEG_SLOPE * v)


# --------------------------------------------------------------------------
# Fused kernel: conv1 + LReLU + conv2 + BatchNorm2d(batch stats) + LReLU +
#               conv3 + LReLU + fc1 + Sigmoid, single Pallas invocation.
# --------------------------------------------------------------------------
def make_fused_kernel(n):
    inv_cnt = 1.0 / float(n * H * W)     # BN normalizes over N*H*W valid pixels

    def kernel(x_ref, sdn_ref, sup_ref,
               b1w_ref, b1b_ref,
               b2w_ref, b2b_ref, g2_ref, be2_ref, rbn_ref, rbne_ref,
               b3w_ref, b3b_ref,
               rmask_ref, lm1_ref, lm2_ref,
               wfc_ref, dsel_ref, samp_ref, rout_ref, bfc_ref,
               out_ref):
        sdn = sdn_ref[...]          # (R, R): row r <- row r-1  (top tap)
        sup = sup_ref[...]          # (R, R): row r <- row r+1  (bottom tap)
        rmask = rmask_ref[...]      # (R, 1): 1 on valid image rows

        def conv3x3(a, bw_ref, bias):
            # vertical taps via two tiny shift matmuls (MXU is idle anyway);
            # horizontal taps + channel mixing folded into banded bw[kh].
            a_dn = jnp.dot(sdn, a, preferred_element_type=F32)
            a_up = jnp.dot(sup, a, preferred_element_type=F32)
            z = jnp.dot(a_dn, bw_ref[0], preferred_element_type=F32)
            z = z + jnp.dot(a, bw_ref[1], preferred_element_type=F32)
            z = z + jnp.dot(a_up, bw_ref[2], preferred_element_type=F32)
            return z + bias

        # ---- conv1 + LeakyReLU (mask restores the zero pad ring) ----------
        y1 = _leaky(conv3x3(x_ref[...], b1w_ref, b1b_ref[...]))
        y1 = y1 * rmask * lm1_ref[...]                                # (R, 120)

        # ---- conv2 + BatchNorm2d (training-mode batch stats) + LeakyReLU --
        y2 = conv3x3(y1, b2w_ref, b2b_ref[...]) * rmask * lm2_ref[...]   # (R, 240)
        rbn = rbn_ref[...]                       # (240, 8) channel-group reducer
        t = jnp.dot(y2, rbn, preferred_element_type=F32)              # (R, 8)
        tsq = jnp.dot(y2 * y2, rbn, preferred_element_type=F32)       # (R, 8)
        mean = jnp.sum(t, axis=0, keepdims=True) * inv_cnt            # (1, 8)
        ex2 = jnp.sum(tsq, axis=0, keepdims=True) * inv_cnt
        var = ex2 - mean * mean
        scale = g2_ref[...] * jax.lax.rsqrt(var + EPS)                # (1, 8)
        shift = be2_ref[...] - mean * scale
        scale_l = jnp.dot(scale, rbne_ref[...], preferred_element_type=F32)  # (1, 240)
        shift_l = jnp.dot(shift, rbne_ref[...], preferred_element_type=F32)
        y2 = _leaky(y2 * scale_l + shift_l) * rmask * lm2_ref[...]

        # ---- conv3 + LeakyReLU (no mask: fc weights are zero on pads) -----
        y3 = _leaky(conv3x3(y2, b3w_ref, b3b_ref[...]))               # (R, 480)

        # ---- fc1 + Sigmoid, fused ------------------------------------------
        # wfc_ref (480, 320) is shared across samples; column h*10+o holds the
        # fc weight column for padded row h.  dsel keeps, for data row r, only
        # the columns whose weight-row index equals r%32; rout folds the 32
        # row groups down to the 10 outputs; samp sums each sample's 32 rows.
        z = jnp.dot(y3, wfc_ref[...], preferred_element_type=F32)     # (R, 320)
        v = jnp.dot(z * dsel_ref[...], rout_ref[...],
                    preferred_element_type=F32)                       # (R, 10)
        q = jnp.dot(samp_ref[...], v, preferred_element_type=F32) + bfc_ref[...]
        out_ref[...] = 1.0 / (1.0 + jnp.exp(-q))                      # (n, 10)

    return kernel


# --------------------------------------------------------------------------
# Trace-time (numpy) constants that depend only on the batch size.
# --------------------------------------------------------------------------
def _batch_constants(n):
    R = n * HS
    sdn = np.zeros((R, R), np.float32)     # row r <- row r-1
    sup = np.zeros((R, R), np.float32)     # row r <- row r+1
    for r in range(R):
        if r >= 1:
            sdn[r, r - 1] = 1.0
        if r + 1 < R:
            sup[r, r + 1] = 1.0
    hh = np.arange(R) % HS
    rmask = ((hh >= 1) & (hh <= H)).astype(np.float32).reshape(R, 1)
    wv = ((np.arange(WP) >= 1) & (np.arange(WP) <= W)).astype(np.float32)
    lm1 = np.repeat(wv, C1).reshape(1, WP * C1)
    lm2 = np.repeat(wv, C2).reshape(1, WP * C2)
    dsel = (hh.reshape(R, 1) ==
            (np.arange(HS * NOUT) // NOUT).reshape(1, HS * NOUT)).astype(np.float32)
    samp = (np.arange(R).reshape(1, R) // HS ==
            np.arange(n).reshape(n, 1)).astype(np.float32)
    arrs = dict(sdn=sdn, sup=sup, rmask=rmask, lm1=lm1, lm2=lm2,
                dsel=dsel, samp=samp)
    return {k: jnp.asarray(v) for k, v in arrs.items()}


# --------------------------------------------------------------------------
# Forward wrapper (layout plumbing only; all math is inside the one kernel).
# --------------------------------------------------------------------------
def conv2d_classifier_forward(x_nchw, kp):
    n = x_nchw.shape[0]
    assert x_nchw.shape[1:] == (1, H, W)
    kernel = make_fused_kernel(n)

    # NCHW (n,1,28,28) -> lane-dense packed (n*32, 30): row=sample*32+h, lane=w
    xh = x_nchw.reshape(n, H, W).astype(F32)
    xp = jnp.pad(xh, ((0, 0), (1, HS - HP + 1), (1, 1)))      # (n, 32, 30)
    x_pack = xp.reshape(n * HS, WP)

    bc = _batch_constants(n)

    out = pl.pallas_call(
        kernel,
        out_shape=jax.ShapeDtypeStruct((n, NOUT), F32),
        in_specs=[pl.BlockSpec(memory_space=pltpu.MemorySpace.VMEM)] * 21,
        out_specs=pl.BlockSpec(memory_space=pltpu.MemorySpace.VMEM),
        compiler_params=pltpu.CompilerParams(vmem_limit_bytes=32 * 1024 * 1024),
    )(x_pack, bc['sdn'], bc['sup'],
      kp['b1w'], kp['b1b'],
      kp['b2w'], kp['b2b'], kp['g2'], kp['be2'], kp['rbn'], kp['rbne'],
      kp['b3w'], kp['b3b'],
      bc['rmask'], bc['lm1'], bc['lm2'],
      kp['wfc2'], bc['dsel'], bc['samp'], kp['rout'], kp['bfc'])
    return out


# --------------------------------------------------------------------------
# Deterministic parameter init (torch-default-like fan_in uniform) + layouts.
# --------------------------------------------------------------------------
def init_params(key):
    def conv_init(k, cout, cin):
        k1, k2 = jax.random.split(k)
        bound = 1.0 / math.sqrt(cin * 9)
        w = jax.random.uniform(k1, (cout, cin, 3, 3), jnp.float32, -bound, bound)
        b = jax.random.uniform(k2, (cout,), jnp.float32, -bound, bound)
        return w, b

    k1, k2, k3, k4 = jax.random.split(key, 4)
    w1, b1 = conv_init(k1, C1, 1)
    w2, b2 = conv_init(k2, C2, C1)
    w3, b3 = conv_init(k3, C3, C2)
    kfa, kfb = jax.random.split(k4)
    fbound = 1.0 / math.sqrt(C3 * H * W)
    wfc = jax.random.uniform(kfa, (NOUT, C3 * H * W), jnp.float32, -fbound, fbound)
    bfc = jax.random.uniform(kfb, (NOUT,), jnp.float32, -fbound, fbound)
    return dict(w1=w1, b1=b1, w2=w2, b2=b2, w3=w3, b3=b3,
                g2=jnp.ones((C2,), jnp.float32), be2=jnp.zeros((C2,), jnp.float32),
                wfc=wfc, bfc=bfc)


def to_kernel_params(p):
    # torch (cout, cin, 3, 3) -> 3 banded matrices (one per vertical tap kh):
    # B[kh][(w_in)*cin + ci, (w_out)*cout + co] = W[co, ci, kh, w_in - w_out + 1]
    def banded(w):
        w = np.asarray(w, np.float32)
        co, ci = w.shape[0], w.shape[1]
        b = np.zeros((3, WP * ci, WP * co), np.float32)
        for kh in range(3):
            for kw in range(3):
                blk = w[:, :, kh, kw].T                      # (ci, co)
                for wo in range(WP):
                    wi = wo + kw - 1
                    if 0 <= wi < WP:
                        b[kh, wi * ci:(wi + 1) * ci, wo * co:(wo + 1) * co] = blk
        return jnp.asarray(b)

    def lane_bias(b):
        b = np.asarray(b, np.float32)
        return jnp.asarray(np.tile(b, WP).reshape(1, -1))    # lane = w*cout + c

    # fc1 weights -> single shared (lane, row-group*out) matrix,
    # zero on pad rows/cols:  wfc2[w*16 + c, h*10 + o] = Wfc[o, c, h-1, w-1]
    wfc = np.asarray(p['wfc'], np.float32).reshape(NOUT, C3, H, W)
    wfc2 = np.zeros((WP * C3, HS * NOUT), np.float32)
    for h in range(1, H + 1):
        for w in range(1, W + 1):
            wfc2[w * C3:(w + 1) * C3, h * NOUT:(h + 1) * NOUT] = wfc[:, :, h - 1, w - 1].T

    # BatchNorm channel-group reducer / expander (lane index = w*C2 + c)
    rbn = np.zeros((WP * C2, C2), np.float32)
    for w in range(WP):
        rbn[w * C2:(w + 1) * C2, :] = np.eye(C2, dtype=np.float32)

    # output lane-group reducer: column h*10 + o -> output o
    rout = np.tile(np.eye(NOUT, dtype=np.float32), (HS, 1))  # (320, 10)

    return dict(
        b1w=banded(p['w1']), b1b=lane_bias(p['b1']),
        b2w=banded(p['w2']), b2b=lane_bias(p['b2']),
        b3w=banded(p['w3']), b3b=lane_bias(p['b3']),
        g2=jnp.asarray(np.asarray(p['g2'], np.float32).reshape(1, -1)),
        be2=jnp.asarray(np.asarray(p['be2'], np.float32).reshape(1, -1)),
        rbn=jnp.asarray(rbn), rbne=jnp.asarray(rbn.T),
        wfc2=jnp.asarray(wfc2),
        rout=jnp.asarray(rout),
        bfc=jnp.asarray(np.asarray(p['bfc'], np.float32).reshape(1, -1)))


# Pure-JAX reference implementing the exact torch forward semantics.
def reference_forward(x, p):
    dn = ('NCHW', 'OIHW', 'NCHW')

    def conv(x, w, b):
        y = jax.lax.conv_general_dilated(x, w, (1, 1), ((1, 1), (1, 1)),
                                         dimension_numbers=dn)
        return y + b.reshape(1, -1, 1, 1)

    x = _leaky(conv(x, p['w1'], p['b1']))
    x = conv(x, p['w2'], p['b2'])
    m = jnp.mean(x, axis=(0, 2, 3), keepdims=True)
    v = jnp.mean((x - m) ** 2, axis=(0, 2, 3), keepdims=True)   # biased, train mode
    x = (x - m) / jnp.sqrt(v + EPS) * p['g2'].reshape(1, -1, 1, 1) \
        + p['be2'].reshape(1, -1, 1, 1)
    x = _leaky(x)
    x = _leaky(conv(x, p['w3'], p['b3']))
    x = x.reshape(x.shape[0], -1)
    z = x @ p['wfc'].T + p['bfc']
    return jax.nn.sigmoid(z)


if __name__ == "__main__":
    key = jax.random.PRNGKey(0)
    kx, kp = jax.random.split(key)
    # Input implied by the module: fc1 in_features = 12544 = 16*28*28
    # => 1-channel 28x28 images; use batch = 2.
    x = jax.random.normal(kx, (2, 1, H, W), jnp.float32)
    torch_params = init_params(kp)
    kernel_params = to_kernel_params(torch_params)

    out = jax.jit(conv2d_classifier_forward)(x, kernel_params)
    out = jax.block_until_ready(out)

    ref = reference_forward(x, torch_params)
    assert out.shape == (2, NOUT) and out.dtype == jnp.float32
    assert bool(jnp.all(jnp.isfinite(out)))
    np.testing.assert_allclose(np.asarray(out), np.asarray(ref),
                               rtol=1e-3, atol=1e-3)
    print("KERNEL_OK")
</pallas_src>

<mosaic_0001>
module attributes {stable_mosaic.version = 11 : i64} {
  func.func @kernel(%arg0: memref<64x30xf32, #tpu.memory_space<vmem>>, %arg1: memref<64x64xf32, #tpu.memory_space<vmem>>, %arg2: memref<64x64xf32, #tpu.memory_space<vmem>>, %arg3: memref<3x30x120xf32, #tpu.memory_space<vmem>>, %arg4: memref<1x120xf32, #tpu.memory_space<vmem>>, %arg5: memref<3x120x240xf32, #tpu.memory_space<vmem>>, %arg6: memref<1x240xf32, #tpu.memory_space<vmem>>, %arg7: memref<1x8xf32, #tpu.memory_space<vmem>>, %arg8: memref<1x8xf32, #tpu.memory_space<vmem>>, %arg9: memref<240x8xf32, #tpu.memory_space<vmem>>, %arg10: memref<8x240xf32, #tpu.memory_space<vmem>>, %arg11: memref<3x240x480xf32, #tpu.memory_space<vmem>>, %arg12: memref<1x480xf32, #tpu.memory_space<vmem>>, %arg13: memref<64x1xf32, #tpu.memory_space<vmem>>, %arg14: memref<1x120xf32, #tpu.memory_space<vmem>>, %arg15: memref<1x240xf32, #tpu.memory_space<vmem>>, %arg16: memref<480x320xf32, #tpu.memory_space<vmem>>, %arg17: memref<64x320xf32, #tpu.memory_space<vmem>>, %arg18: memref<2x64xf32, #tpu.memory_space<vmem>>, %arg19: memref<320x10xf32, #tpu.memory_space<vmem>>, %arg20: memref<1x10xf32, #tpu.memory_space<vmem>>, %arg21: memref<2x10xf32, #tpu.memory_space<vmem>>) attributes {dimension_semantics = [], scalar_prefetch = 0 : i64, scratch_operands = 0 : i64, tpu.core_type = #tpu.core_type<tc>} {
    %c0 = arith.constant 0 : index
    %c0_0 = arith.constant 0 : index
    %0 = vector.load %arg1[%c0, %c0_0] : memref<64x64xf32, #tpu.memory_space<vmem>>, vector<64x64xf32>
    %c0_1 = arith.constant 0 : index
    %c0_2 = arith.constant 0 : index
    %1 = vector.load %arg2[%c0_1, %c0_2] : memref<64x64xf32, #tpu.memory_space<vmem>>, vector<64x64xf32>
    %c0_3 = arith.constant 0 : index
    %c0_4 = arith.constant 0 : index
    %2 = vector.load %arg13[%c0_3, %c0_4] : memref<64x1xf32, #tpu.memory_space<vmem>>, vector<64x1xf32>
    %c0_5 = arith.constant 0 : index
    %c0_6 = arith.constant 0 : index
    %3 = vector.load %arg0[%c0_5, %c0_6] : memref<64x30xf32, #tpu.memory_space<vmem>>, vector<64x30xf32>
    %c0_7 = arith.constant 0 : index
    %c0_8 = arith.constant 0 : index
    %4 = vector.load %arg4[%c0_7, %c0_8] : memref<1x120xf32, #tpu.memory_space<vmem>>, vector<1x120xf32>
    %cst = arith.constant dense<0.000000e+00> : vector<64x30xf32>
    %5 = tpu.matmul %0, %3, %cst {dimension_numbers = #tpu.dot_dimension_numbers<[1], [0], [0], [1], [0, 0, 1, 1], [], []>} : vector<64x64xf32>, vector<64x30xf32>, vector<64x30xf32> -> vector<64x30xf32>
    %cst_9 = arith.constant dense<0.000000e+00> : vector<64x30xf32>
    %6 = tpu.matmul %1, %3, %cst_9 {dimension_numbers = #tpu.dot_dimension_numbers<[1], [0], [0], [1], [0, 0, 1, 1], [], []>} : vector<64x64xf32>, vector<64x30xf32>, vector<64x30xf32> -> vector<64x30xf32>
    %c0_10 = arith.constant 0 : index
    %c0_11 = arith.constant 0 : index
    %c0_12 = arith.constant 0 : index
    %7 = vector.load %arg3[%c0_10, %c0_11, %c0_12] : memref<3x30x120xf32, #tpu.memory_space<vmem>>, vector<1x30x120xf32>
    %8 = vector.shape_cast %7 : vector<1x30x120xf32> to vector<30x120xf32>
    %cst_13 = arith.constant dense<0.000000e+00> : vector<64x120xf32>
    %9 = tpu.matmul %5, %8, %cst_13 {dimension_numbers = #tpu.dot_dimension_numbers<[1], [0], [0], [1], [0, 0, 1, 1], [], []>} : vector<64x30xf32>, vector<30x120xf32>, vector<64x120xf32> -> vector<64x120xf32>
    %c1 = arith.constant 1 : index
    %c0_14 = arith.constant 0 : index
    %c0_15 = arith.constant 0 : index
    %10 = vector.load %arg3[%c1, %c0_14, %c0_15] : memref<3x30x120xf32, #tpu.memory_space<vmem>>, vector<1x30x120xf32>
    %11 = vector.shape_cast %10 : vector<1x30x120xf32> to vector<30x120xf32>
    %cst_16 = arith.constant dense<0.000000e+00> : vector<64x120xf32>
    %12 = tpu.matmul %3, %11, %cst_16 {dimension_numbers = #tpu.dot_dimension_numbers<[1], [0], [0], [1], [0, 0, 1, 1], [], []>} : vector<64x30xf32>, vector<30x120xf32>, vector<64x120xf32> -> vector<64x120xf32>
    %13 = arith.addf %9, %12 : vector<64x120xf32>
    %c2 = arith.constant 2 : index
    %c0_17 = arith.constant 0 : index
    %c0_18 = arith.constant 0 : index
    %14 = vector.load %arg3[%c2, %c0_17, %c0_18] : memref<3x30x120xf32, #tpu.memory_space<vmem>>, vector<1x30x120xf32>
    %15 = vector.shape_cast %14 : vector<1x30x120xf32> to vector<30x120xf32>
    %cst_19 = arith.constant dense<0.000000e+00> : vector<64x120xf32>
    %16 = tpu.matmul %6, %15, %cst_19 {dimension_numbers = #tpu.dot_dimension_numbers<[1], [0], [0], [1], [0, 0, 1, 1], [], []>} : vector<64x30xf32>, vector<30x120xf32>, vector<64x120xf32> -> vector<64x120xf32>
    %17 = arith.addf %13, %16 : vector<64x120xf32>
    %18 = vector.broadcast %4 : vector<1x120xf32> to vector<64x120xf32>
    %19 = arith.addf %17, %18 : vector<64x120xf32>
    %cst_20 = arith.constant 0.000000e+00 : f32
    %20 = vector.broadcast %cst_20 : f32 to vector<64x120xf32>
    %21 = arith.cmpf ogt, %19, %20 : vector<64x120xf32>
    %cst_21 = arith.constant 0.00999999977 : f32
    %22 = vector.broadcast %cst_21 : f32 to vector<64x120xf32>
    %23 = arith.mulf %22, %19 : vector<64x120xf32>
    %24 = arith.select %21, %19, %23 : vector<64x120xi1>, vector<64x120xf32>
    %25 = vector.broadcast %2 : vector<64x1xf32> to vector<64x120xf32>
    %26 = arith.mulf %24, %25 : vector<64x120xf32>
    %c0_22 = arith.constant 0 : index
    %c0_23 = arith.constant 0 : index
    %27 = vector.load %arg14[%c0_22, %c0_23] : memref<1x120xf32, #tpu.memory_space<vmem>>, vector<1x120xf32>
    %28 = vector.broadcast %27 : vector<1x120xf32> to vector<64x120xf32>
    %29 = arith.mulf %26, %28 : vector<64x120xf32>
    %c0_24 = arith.constant 0 : index
    %c0_25 = arith.constant 0 : index
    %30 = vector.load %arg6[%c0_24, %c0_25] : memref<1x240xf32, #tpu.memory_space<vmem>>, vector<1x240xf32>
    %cst_26 = arith.constant dense<0.000000e+00> : vector<64x120xf32>
    %31 = tpu.matmul %0, %29, %cst_26 {dimension_numbers = #tpu.dot_dimension_numbers<[1], [0], [0], [1], [0, 0, 1, 1], [], []>} : vector<64x64xf32>, vector<64x120xf32>, vector<64x120xf32> -> vector<64x120xf32>
    %cst_27 = arith.constant dense<0.000000e+00> : vector<64x120xf32>
    %32 = tpu.matmul %1, %29, %cst_27 {dimension_numbers = #tpu.dot_dimension_numbers<[1], [0], [0], [1], [0, 0, 1, 1], [], []>} : vector<64x64xf32>, vector<64x120xf32>, vector<64x120xf32> -> vector<64x120xf32>
    %c0_28 = arith.constant 0 : index
    %c0_29 = arith.constant 0 : index
    %c0_30 = arith.constant 0 : index
    %33 = vector.load %arg5[%c0_28, %c0_29, %c0_30] : memref<3x120x240xf32, #tpu.memory_space<vmem>>, vector<1x120x240xf32>
    %34 = vector.shape_cast %33 : vector<1x120x240xf32> to vector<120x240xf32>
    %cst_31 = arith.constant dense<0.000000e+00> : vector<64x240xf32>
    %35 = tpu.matmul %31, %34, %cst_31 {dimension_numbers = #tpu.dot_dimension_numbers<[1], [0], [0], [1], [0, 0, 1, 1], [], []>} : vector<64x120xf32>, vector<120x240xf32>, vector<64x240xf32> -> vector<64x240xf32>
    %c1_32 = arith.constant 1 : index
    %c0_33 = arith.constant 0 : index
    %c0_34 = arith.constant 0 : index
    %36 = vector.load %arg5[%c1_32, %c0_33, %c0_34] : memref<3x120x240xf32, #tpu.memory_space<vmem>>, vector<1x120x240xf32>
    %37 = vector.shape_cast %36 : vector<1x120x240xf32> to vector<120x240xf32>
    %cst_35 = arith.constant dense<0.000000e+00> : vector<64x240xf32>
    %38 = tpu.matmul %29, %37, %cst_35 {dimension_numbers = #tpu.dot_dimension_numbers<[1], [0], [0], [1], [0, 0, 1, 1], [], []>} : vector<64x120xf32>, vector<120x240xf32>, vector<64x240xf32> -> vector<64x240xf32>
    %39 = arith.addf %35, %38 : vector<64x240xf32>
    %c2_36 = arith.constant 2 : index
    %c0_37 = arith.constant 0 : index
    %c0_38 = arith.constant 0 : index
    %40 = vector.load %arg5[%c2_36, %c0_37, %c0_38] : memref<3x120x240xf32, #tpu.memory_space<vmem>>, vector<1x120x240xf32>
    %41 = vector.shape_cast %40 : vector<1x120x240xf32> to vector<120x240xf32>
    %cst_39 = arith.constant dense<0.000000e+00> : vector<64x240xf32>
    %42 = tpu.matmul %32, %41, %cst_39 {dimension_numbers = #tpu.dot_dimension_numbers<[1], [0], [0], [1], [0, 0, 1, 1], [], []>} : vector<64x120xf32>, vector<120x240xf32>, vector<64x240xf32> -> vector<64x240xf32>
    %43 = arith.addf %39, %42 : vector<64x240xf32>
    %44 = vector.broadcast %30 : vector<1x240xf32> to vector<64x240xf32>
    %45 = arith.addf %43, %44 : vector<64x240xf32>
    %46 = vector.broadcast %2 : vector<64x1xf32> to vector<64x240xf32>
    %47 = arith.mulf %45, %46 : vector<64x240xf32>
    %c0_40 = arith.constant 0 : index
    %c0_41 = arith.constant 0 : index
    %48 = vector.load %arg15[%c0_40, %c0_41] : memref<1x240xf32, #tpu.memory_space<vmem>>, vector<1x240xf32>
    %49 = vector.broadcast %48 : vector<1x240xf32> to vector<64x240xf32>
    %50 = arith.mulf %47, %49 : vector<64x240xf32>
    %c0_42 = arith.constant 0 : index
    %c0_43 = arith.constant 0 : index
    %51 = vector.load %arg9[%c0_42, %c0_43] : memref<240x8xf32, #tpu.memory_space<vmem>>, vector<240x8xf32>
    %cst_44 = arith.constant dense<0.000000e+00> : vector<64x8xf32>
    %52 = tpu.matmul %50, %51, %cst_44 {dimension_numbers = #tpu.dot_dimension_numbers<[1], [0], [0], [1], [0, 0, 1, 1], [], []>} : vector<64x240xf32>, vector<240x8xf32>, vector<64x8xf32> -> vector<64x8xf32>
    %53 = arith.mulf %50, %50 : vector<64x240xf32>
    %cst_45 = arith.constant dense<0.000000e+00> : vector<64x8xf32>
    %54 = tpu.matmul %53, %51, %cst_45 {dimension_numbers = #tpu.dot_dimension_numbers<[1], [0], [0], [1], [0, 0, 1, 1], [], []>} : vector<64x240xf32>, vector<240x8xf32>, vector<64x8xf32> -> vector<64x8xf32>
    %cst_46 = arith.constant dense<0.000000e+00> : vector<8xf32>
    %55 = vector.multi_reduction <add>, %52, %cst_46 [0] : vector<64x8xf32> to vector<8xf32>
    %56 = vector.shape_cast %55 : vector<8xf32> to vector<1x8xf32>
    %cst_47 = arith.constant 6.37755089E-4 : f32
    %57 = vector.broadcast %cst_47 : f32 to vector<1x8xf32>
    %58 = arith.mulf %56, %57 : vector<1x8xf32>
    %cst_48 = arith.constant dense<0.000000e+00> : vector<8xf32>
    %59 = vector.multi_reduction <add>, %54, %cst_48 [0] : vector<64x8xf32> to vector<8xf32>
    %60 = vector.shape_cast %59 : vector<8xf32> to vector<1x8xf32>
    %cst_49 = arith.constant 6.37755089E-4 : f32
    %61 = vector.broadcast %cst_49 : f32 to vector<1x8xf32>
    %62 = arith.mulf %60, %61 : vector<1x8xf32>
    %63 = arith.mulf %58, %58 : vector<1x8xf32>
    %64 = arith.subf %62, %63 : vector<1x8xf32>
    %c0_50 = arith.constant 0 : index
    %c0_51 = arith.constant 0 : index
    %65 = vector.load %arg7[%c0_50, %c0_51] : memref<1x8xf32, #tpu.memory_space<vmem>>, vector<1x8xf32>
    %cst_52 = arith.constant 9.99999974E-6 : f32
    %66 = vector.broadcast %cst_52 : f32 to vector<1x8xf32>
    %67 = arith.addf %64, %66 : vector<1x8xf32>
    %68 = math.rsqrt %67 : vector<1x8xf32>
    %69 = arith.mulf %65, %68 : vector<1x8xf32>
    %c0_53 = arith.constant 0 : index
    %c0_54 = arith.constant 0 : index
    %70 = vector.load %arg8[%c0_53, %c0_54] : memref<1x8xf32, #tpu.memory_space<vmem>>, vector<1x8xf32>
    %71 = arith.mulf %58, %69 : vector<1x8xf32>
    %72 = arith.subf %70, %71 : vector<1x8xf32>
    %c0_55 = arith.constant 0 : index
    %c0_56 = arith.constant 0 : index
    %73 = vector.load %arg10[%c0_55, %c0_56] : memref<8x240xf32, #tpu.memory_space<vmem>>, vector<8x240xf32>
    %cst_57 = arith.constant dense<0.000000e+00> : vector<1x240xf32>
    %74 = tpu.matmul %69, %73, %cst_57 {dimension_numbers = #tpu.dot_dimension_numbers<[1], [0], [0], [1], [0, 0, 1, 1], [], []>} : vector<1x8xf32>, vector<8x240xf32>, vector<1x240xf32> -> vector<1x240xf32>
    %c0_58 = arith.constant 0 : index
    %c0_59 = arith.constant 0 : index
    %75 = vector.load %arg10[%c0_58, %c0_59] : memref<8x240xf32, #tpu.memory_space<vmem>>, vector<8x240xf32>
    %cst_60 = arith.constant dense<0.000000e+00> : vector<1x240xf32>
    %76 = tpu.matmul %72, %75, %cst_60 {dimension_numbers = #tpu.dot_dimension_numbers<[1], [0], [0], [1], [0, 0, 1, 1], [], []>} : vector<1x8xf32>, vector<8x240xf32>, vector<1x240xf32> -> vector<1x240xf32>
    %77 = vector.broadcast %74 : vector<1x240xf32> to vector<64x240xf32>
    %78 = arith.mulf %50, %77 : vector<64x240xf32>
    %79 = vector.broadcast %76 : vector<1x240xf32> to vector<64x240xf32>
    %80 = arith.addf %78, %79 : vector<64x240xf32>
    %cst_61 = arith.constant 0.000000e+00 : f32
    %81 = vector.broadcast %cst_61 : f32 to vector<64x240xf32>
    %82 = arith.cmpf ogt, %80, %81 : vector<64x240xf32>
    %cst_62 = arith.constant 0.00999999977 : f32
    %83 = vector.broadcast %cst_62 : f32 to vector<64x240xf32>
    %84 = arith.mulf %83, %80 : vector<64x240xf32>
    %85 = arith.select %82, %80, %84 : vector<64x240xi1>, vector<64x240xf32>
    %86 = vector.broadcast %2 : vector<64x1xf32> to vector<64x240xf32>
    %87 = arith.mulf %85, %86 : vector<64x240xf32>
    %c0_63 = arith.constant 0 : index
    %c0_64 = arith.constant 0 : index
    %88 = vector.load %arg15[%c0_63, %c0_64] : memref<1x240xf32, #tpu.memory_space<vmem>>, vector<1x240xf32>
    %89 = vector.broadcast %88 : vector<1x240xf32> to vector<64x240xf32>
    %90 = arith.mulf %87, %89 : vector<64x240xf32>
    %c0_65 = arith.constant 0 : index
    %c0_66 = arith.constant 0 : index
    %91 = vector.load %arg12[%c0_65, %c0_66] : memref<1x480xf32, #tpu.memory_space<vmem>>, vector<1x480xf32>
    %cst_67 = arith.constant dense<0.000000e+00> : vector<64x240xf32>
    %92 = tpu.matmul %0, %90, %cst_67 {dimension_numbers = #tpu.dot_dimension_numbers<[1], [0], [0], [1], [0, 0, 1, 1], [], []>} : vector<64x64xf32>, vector<64x240xf32>, vector<64x240xf32> -> vector<64x240xf32>
    %cst_68 = arith.constant dense<0.000000e+00> : vector<64x240xf32>
    %93 = tpu.matmul %1, %90, %cst_68 {dimension_numbers = #tpu.dot_dimension_numbers<[1], [0], [0], [1], [0, 0, 1, 1], [], []>} : vector<64x64xf32>, vector<64x240xf32>, vector<64x240xf32> -> vector<64x240xf32>
    %c0_69 = arith.constant 0 : index
    %c0_70 = arith.constant 0 : index
    %c0_71 = arith.constant 0 : index
    %94 = vector.load %arg11[%c0_69, %c0_70, %c0_71] : memref<3x240x480xf32, #tpu.memory_space<vmem>>, vector<1x240x480xf32>
    %95 = vector.shape_cast %94 : vector<1x240x480xf32> to vector<240x480xf32>
    %cst_72 = arith.constant dense<0.000000e+00> : vector<64x480xf32>
    %96 = tpu.matmul %92, %95, %cst_72 {dimension_numbers = #tpu.dot_dimension_numbers<[1], [0], [0], [1], [0, 0, 1, 1], [], []>} : vector<64x240xf32>, vector<240x480xf32>, vector<64x480xf32> -> vector<64x480xf32>
    %c1_73 = arith.constant 1 : index
    %c0_74 = arith.constant 0 : index
    %c0_75 = arith.constant 0 : index
    %97 = vector.load %arg11[%c1_73, %c0_74, %c0_75] : memref<3x240x480xf32, #tpu.memory_space<vmem>>, vector<1x240x480xf32>
    %98 = vector.shape_cast %97 : vector<1x240x480xf32> to vector<240x480xf32>
    %cst_76 = arith.constant dense<0.000000e+00> : vector<64x480xf32>
    %99 = tpu.matmul %90, %98, %cst_76 {dimension_numbers = #tpu.dot_dimension_numbers<[1], [0], [0], [1], [0, 0, 1, 1], [], []>} : vector<64x240xf32>, vector<240x480xf32>, vector<64x480xf32> -> vector<64x480xf32>
    %100 = arith.addf %96, %99 : vector<64x480xf32>
    %c2_77 = arith.constant 2 : index
    %c0_78 = arith.constant 0 : index
    %c0_79 = arith.constant 0 : index
    %101 = vector.load %arg11[%c2_77, %c0_78, %c0_79] : memref<3x240x480xf32, #tpu.memory_space<vmem>>, vector<1x240x480xf32>
    %102 = vector.shape_cast %101 : vector<1x240x480xf32> to vector<240x480xf32>
    %cst_80 = arith.constant dense<0.000000e+00> : vector<64x480xf32>
    %103 = tpu.matmul %93, %102, %cst_80 {dimension_numbers = #tpu.dot_dimension_numbers<[1], [0], [0], [1], [0, 0, 1, 1], [], []>} : vector<64x240xf32>, vector<240x480xf32>, vector<64x480xf32> -> vector<64x480xf32>
    %104 = arith.addf %100, %103 : vector<64x480xf32>
    %105 = vector.broadcast %91 : vector<1x480xf32> to vector<64x480xf32>
    %106 = arith.addf %104, %105 : vector<64x480xf32>
    %cst_81 = arith.constant 0.000000e+00 : f32
    %107 = vector.broadcast %cst_81 : f32 to vector<64x480xf32>
    %108 = arith.cmpf ogt, %106, %107 : vector<64x480xf32>
    %cst_82 = arith.constant 0.00999999977 : f32
    %109 = vector.broadcast %cst_82 : f32 to vector<64x480xf32>
    %110 = arith.mulf %109, %106 : vector<64x480xf32>
    %111 = arith.select %108, %106, %110 : vector<64x480xi1>, vector<64x480xf32>
    %c0_83 = arith.constant 0 : index
    %c0_84 = arith.constant 0 : index
    %112 = vector.load %arg16[%c0_83, %c0_84] : memref<480x320xf32, #tpu.memory_space<vmem>>, vector<480x320xf32>
    %cst_85 = arith.constant dense<0.000000e+00> : vector<64x320xf32>
    %113 = tpu.matmul %111, %112, %cst_85 {dimension_numbers = #tpu.dot_dimension_numbers<[1], [0], [0], [1], [0, 0, 1, 1], [], []>} : vector<64x480xf32>, vector<480x320xf32>, vector<64x320xf32> -> vector<64x320xf32>
    %c0_86 = arith.constant 0 : index
    %c0_87 = arith.constant 0 : index
    %114 = vector.load %arg17[%c0_86, %c0_87] : memref<64x320xf32, #tpu.memory_space<vmem>>, vector<64x320xf32>
    %115 = arith.mulf %113, %114 : vector<64x320xf32>
    %c0_88 = arith.constant 0 : index
    %c0_89 = arith.constant 0 : index
    %116 = vector.load %arg19[%c0_88, %c0_89] : memref<320x10xf32, #tpu.memory_space<vmem>>, vector<320x10xf32>
    %cst_90 = arith.constant dense<0.000000e+00> : vector<64x10xf32>
    %117 = tpu.matmul %115, %116, %cst_90 {dimension_numbers = #tpu.dot_dimension_numbers<[1], [0], [0], [1], [0, 0, 1, 1], [], []>} : vector<64x320xf32>, vector<320x10xf32>, vector<64x10xf32> -> vector<64x10xf32>
    %c0_91 = arith.constant 0 : index
    %c0_92 = arith.constant 0 : index
    %118 = vector.load %arg18[%c0_91, %c0_92] : memref<2x64xf32, #tpu.memory_space<vmem>>, vector<2x64xf32>
    %cst_93 = arith.constant dense<0.000000e+00> : vector<2x10xf32>
    %119 = tpu.matmul %118, %117, %cst_93 {dimension_numbers = #tpu.dot_dimension_numbers<[1], [0], [0], [1], [0, 0, 1, 1], [], []>} : vector<2x64xf32>, vector<64x10xf32>, vector<2x10xf32> -> vector<2x10xf32>
    %c0_94 = arith.constant 0 : index
    %c0_95 = arith.constant 0 : index
    %120 = vector.load %arg20[%c0_94, %c0_95] : memref<1x10xf32, #tpu.memory_space<vmem>>, vector<1x10xf32>
    %121 = vector.broadcast %120 : vector<1x10xf32> to vector<2x10xf32>
    %122 = arith.addf %119, %121 : vector<2x10xf32>
    %cst_96 = arith.constant 0.000000e+00 : f32
    %123 = vector.broadcast %cst_96 : f32 to vector<2x10xf32>
    %124 = arith.subf %123, %122 : vector<2x10xf32>
    %125 = math.exp %124 : vector<2x10xf32>
    %cst_97 = arith.constant 1.000000e+00 : f32
    %126 = vector.broadcast %cst_97 : f32 to vector<2x10xf32>
    %127 = arith.addf %126, %125 : vector<2x10xf32>
    %cst_98 = arith.constant 1.000000e+00 : f32
    %128 = vector.broadcast %cst_98 : f32 to vector<2x10xf32>
    %129 = arith.divf %128, %127 : vector<2x10xf32>
    %c0_99 = arith.constant 0 : index
    %c0_100 = arith.constant 0 : index
    %130 = vector.load %arg21[%c0_99, %c0_100] : memref<2x10xf32, #tpu.memory_space<vmem>>, vector<2x10xf32>
    tpu.vector_store %arg21[%c0_99, %c0_100], %129 {strides = array<i32>} : memref<2x10xf32, #tpu.memory_space<vmem>>, vector<2x10xf32>,
    return
  }
}

</mosaic_0001>

<llo_original>
// kernel: conv2d_classifier_forward.1
$region0: #{conv2d_classifier_forward.1}
  #allocation0 [shape = 'u32[]', space=smem, size = 0x4, offset = 0x4, fixed_abs, tag = 'smem constant byte address 0x4 - core index']
  #allocation1 [shape = 'u32[144,128]{1,0:T(1,128)}', space=vmem, size = 0x12000, scoped, tag = 'internal scratch']
  %s0 = inlined_call_operand.vmem [shape: f32[64,30], index: 0, kind: input, shape index: {}]
  %s1 = inlined_call_operand.hbm [shape: f32[64,64], index: 1, kind: input, shape index: {}]
  %s2 = inlined_call_operand.hbm [shape: f32[64,64], index: 2, kind: input, shape index: {}]
  %s3 = inlined_call_operand.vmem [shape: f32[3,30,120], index: 3, kind: input, shape index: {}]
  %s4 = inlined_call_operand.vmem [shape: f32[1,120], index: 4, kind: input, shape index: {}]
  %s5 = inlined_call_operand.vmem [shape: f32[3,120,240], index: 5, kind: input, shape index: {}]
  %s6 = inlined_call_operand.vmem [shape: f32[1,240], index: 6, kind: input, shape index: {}]
  %s7 = inlined_call_operand.vmem [shape: f32[1,8], index: 7, kind: input, shape index: {}]
  %s8 = inlined_call_operand.vmem [shape: f32[1,8], index: 8, kind: input, shape index: {}]
  %s9 = inlined_call_operand.vmem [shape: f32[240,8], index: 9, kind: input, shape index: {}]
  %s10 = inlined_call_operand.hbm [shape: f32[8,240], index: 10, kind: input, shape index: {}]
  %s11 = inlined_call_operand.vmem [shape: f32[3,240,480], index: 11, kind: input, shape index: {}]
  %s12 = inlined_call_operand.vmem [shape: f32[1,480], index: 12, kind: input, shape index: {}]
  %s13 = inlined_call_operand.vmem [shape: f32[64,1], index: 13, kind: input, shape index: {}]
  %s14 = inlined_call_operand.vmem [shape: f32[1,120], index: 14, kind: input, shape index: {}]
  %s15 = inlined_call_operand.vmem [shape: f32[1,240], index: 15, kind: input, shape index: {}]
  %s16 = inlined_call_operand.vmem [shape: f32[480,320], index: 16, kind: input, shape index: {}]
  %s17 = inlined_call_operand.hbm [shape: f32[64,320], index: 17, kind: input, shape index: {}]
  %s18 = inlined_call_operand.vmem [shape: f32[2,64], index: 18, kind: input, shape index: {}]
  %s19 = inlined_call_operand.vmem [shape: f32[320,10], index: 19, kind: input, shape index: {}]
  %s20 = inlined_call_operand.hbm [shape: f32[1,10], index: 20, kind: input, shape index: {}]
  %s21 = inlined_call_operand.hbm [shape: f32[2,10], index: 21, kind: output, shape index: {}]
  %s22 = sld [smem:[#allocation0]]
  $region114: #{conv2d_classifier_forward.1} parent=0
    _
  %s24 = ssub.s32 1, %s22
  %s25 = scalar_select 0, %s24, %s22
  $region1: #{conv2d_classifier_forward.1} parent=0
    #allocation2 [shape = 'u8[32768]{0}', space=vmem, size = 0x8000, scoped, tag = 'input window, operand 1, single buffered']
    #allocation3 [shape = 's32[1]{0}', space=sflag, size = 0x4, scoped, tag = 'scoped memory for conv2d_classifier_forward.1']
    #allocation4 [shape = 's32[1]{0}', space=sflag, size = 0x4, scoped, tag = 'scoped memory for conv2d_classifier_forward.1']
    #allocation5 [shape = 'u8[32768]{0}', space=vmem, size = 0x8000, scoped, tag = 'input window, operand 2, single buffered']
    #allocation6 [shape = 's32[1]{0}', space=sflag, size = 0x4, scoped, tag = 'scoped memory for conv2d_classifier_forward.1']
    #allocation7 [shape = 'u8[8192]{0}', space=vmem, size = 0x2000, scoped, tag = 'input window, operand 10, single buffered']
    #allocation8 [shape = 'u8[98304]{0}', space=vmem, size = 0x18000, scoped, tag = 'input window, operand 17, single buffered']
    #allocation9 [shape = 's32[1]{0}', space=sflag, size = 0x4, scoped, tag = 'scoped memory for conv2d_classifier_forward.1']
    #allocation10 [shape = 'u8[512]{0}', space=vmem, size = 0x400, scoped, tag = 'input window, operand 20, single buffered']
    #allocation11 [shape = 'u8[1024]{0}', space=vmem, size = 0x400, scoped, tag = 'output window, operand 0, single buffered']
    %26 = vsyncpa [#allocation3], 0
    %27 = vsyncpa [#allocation6], 0
    %28 = vsyncpa [#allocation9], 0
    %29 = vsyncpa [#allocation4], 0
    // Predicated region
    $region2: #{conv2d_classifier_forward.1} parent=1 // pred_check
      _
    $region3: #{conv2d_classifier_forward.1} parent=1 // pred_check_branch
      %31 = sbr.rel (0) target = $region5
    $region4: #{conv2d_classifier_forward.1} parent=1 // pred_region
      _
    $region5: #{conv2d_classifier_forward.1} parent=1 // pred_fallthru
      _
    // Predicated region
    $region6: #{conv2d_classifier_forward.1} parent=1 // pred_check
      _
    $region7: #{conv2d_classifier_forward.1} parent=1 // pred_check_branch
      %33 = sbr.rel (0) target = $region9
    $region8: #{conv2d_classifier_forward.1} parent=1 // pred_region
      %s35 = ssub.s32 1024, 1024
      %36 = vsyncadd [#allocation3], %s35
      %s37 = sshll.u32 [#allocation2], 4
      %s38 = int_to_ptr.vmem [resolvable:$true] %s37
      %43 = dma.hbm_to_vmem [thread:$0]  %s1, 1024, %s38, [#allocation3], 128, 128, 8
    $region9: #{conv2d_classifier_forward.1} parent=1 // pred_fallthru
      _
    // Predicated region
    $region10: #{conv2d_classifier_forward.1} parent=1 // pred_check
      _
    $region11: #{conv2d_classifier_forward.1} parent=1 // pred_check_branch
      %45 = sbr.rel (0) target = $region13
    $region12: #{conv2d_classifier_forward.1} parent=1 // pred_region
      %s47 = ssub.s32 1024, 1024
      %48 = vsyncadd [#allocation6], %s47
      %s49 = sshll.u32 [#allocation5], 4
      %s50 = int_to_ptr.vmem [resolvable:$true] %s49
      %55 = dma.hbm_to_vmem [thread:$0]  %s2, 1024, %s50, [#allocation6], 128, 128, 8
    $region13: #{conv2d_classifier_forward.1} parent=1 // pred_fallthru
      _
    // Predicated region
    $region14: #{conv2d_classifier_forward.1} parent=1 // pred_check
      _
    $region15: #{conv2d_classifier_forward.1} parent=1 // pred_check_branch
      %57 = sbr.rel (0) target = $region17
    $region16: #{conv2d_classifier_forward.1} parent=1 // pred_region
      _
    $region17: #{conv2d_classifier_forward.1} parent=1 // pred_fallthru
      _
    // Predicated region
    $region18: #{conv2d_classifier_forward.1} parent=1 // pred_check
      _
    $region19: #{conv2d_classifier_forward.1} parent=1 // pred_check_branch
      %59 = sbr.rel (0) target = $region21
    $region20: #{conv2d_classifier_forward.1} parent=1 // pred_region
      _
    $region21: #{conv2d_classifier_forward.1} parent=1 // pred_fallthru
      _
    // Predicated region
    $region22: #{conv2d_classifier_forward.1} parent=1 // pred_check
      _
    $region23: #{conv2d_classifier_forward.1} parent=1 // pred_check_branch
      %61 = sbr.rel (0) target = $region25
    $region24: #{conv2d_classifier_forward.1} parent=1 // pred_region
      _
    $region25: #{conv2d_classifier_forward.1} parent=1 // pred_fallthru
      _
    // Predicated region
    $region26: #{conv2d_classifier_forward.1} parent=1 // pred_check
      _
    $region27: #{conv2d_classifier_forward.1} parent=1 // pred_check_branch
      %63 = sbr.rel (0) target = $region29
    $region28: #{conv2d_classifier_forward.1} parent=1 // pred_region
      _
    $region29: #{conv2d_classifier_forward.1} parent=1 // pred_fallthru
      _
    // Predicated region
    $region30: #{conv2d_classifier_forward.1} parent=1 // pred_check
      _
    $region31: #{conv2d_classifier_forward.1} parent=1 // pred_check_branch
      %65 = sbr.rel (0) target = $region33
    $region32: #{conv2d_classifier_forward.1} parent=1 // pred_region
      _
    $region33: #{conv2d_classifier_forward.1} parent=1 // pred_fallthru
      _
    // Predicated region
    $region34: #{conv2d_classifier_forward.1} parent=1 // pred_check
      _
    $region35: #{conv2d_classifier_forward.1} parent=1 // pred_check_branch
      %67 = sbr.rel (0) target = $region37
    $region36: #{conv2d_classifier_forward.1} parent=1 // pred_region
      _
    $region37: #{conv2d_classifier_forward.1} parent=1 // pred_fallthru
      _
    // Predicated region
    $region38: #{conv2d_classifier_forward.1} parent=1 // pred_check
      _
    $region39: #{conv2d_classifier_forward.1} parent=1 // pred_check_branch
      %69 = sbr.rel (0) target = $region41
    $region40: #{conv2d_classifier_forward.1} parent=1 // pred_region
      _
    $region41: #{conv2d_classifier_forward.1} parent=1 // pred_fallthru
      _
    // Predicated region
    $region42: #{conv2d_classifier_forward.1} parent=1 // pred_check
      _
    $region43: #{conv2d_classifier_forward.1} parent=1 // pred_check_branch
      %71 = sbr.rel (0) target = $region45
    $region44: #{conv2d_classifier_forward.1} parent=1 // pred_region
      %s73 = ssub.s32 256, 256
      %74 = vsyncadd [#allocation6], %s73
      %s76 = sshll.u32 [#allocation7], 4
      %s77 = int_to_ptr.vmem [resolvable:$true] %s76
      %79 = dma.hbm_to_vmem [thread:$0]  %s10, 256, %s77, [#allocation6]
    $region45: #{conv2d_classifier_forward.1} parent=1 // pred_fallthru
      _
    // Predicated region
    $region46: #{conv2d_classifier_forward.1} parent=1 // pred_check
      _
    $region47: #{conv2d_classifier_forward.1} parent=1 // pred_check_branch
      %81 = sbr.rel (0) target = $region49
    $region48: #{conv2d_classifier_forward.1} parent=1 // pred_region
      _
    $region49: #{conv2d_classifier_forward.1} parent=1 // pred_fallthru
      _
    // Predicated region
    $region50: #{conv2d_classifier_forward.1} parent=1 // pred_check
      _
    $region51: #{conv2d_classifier_forward.1} parent=1 // pred_check_branch
      %83 = sbr.rel (0) target = $region53
    $region52: #{conv2d_classifier_forward.1} parent=1 // pred_region
      _
    $region53: #{conv2d_classifier_forward.1} parent=1 // pred_fallthru
      _
    // Predicated region
    $region54: #{conv2d_classifier_forward.1} parent=1 // pred_check
      _
    $region55: #{conv2d_classifier_forward.1} parent=1 // pred_check_branch
      %85 = sbr.rel (0) target = $region57
    $region56: #{conv2d_classifier_forward.1} parent=1 // pred_region
      _
    $region57: #{conv2d_classifier_forward.1} parent=1 // pred_fallthru
      _
    // Predicated region
    $region58: #{conv2d_classifier_forward.1} parent=1 // pred_check
      _
    $region59: #{conv2d_classifier_forward.1} parent=1 // pred_check_branch
      %87 = sbr.rel (0) target = $region61
    $region60: #{conv2d_classifier_forward.1} parent=1 // pred_region
      _
    $region61: #{conv2d_classifier_forward.1} parent=1 // pred_fallthru
      _
    // Predicated region
    $region62: #{conv2d_classifier_forward.1} parent=1 // pred_check
      _
    $region63: #{conv2d_classifier_forward.1} parent=1 // pred_check_branch
      %89 = sbr.rel (0) target = $region65
    $region64: #{conv2d_classifier_forward.1} parent=1 // pred_region
      _
    $region65: #{conv2d_classifier_forward.1} parent=1 // pred_fallthru
      _
    // Predicated region
    $region66: #{conv2d_classifier_forward.1} parent=1 // pred_check
      _
    $region67: #{conv2d_classifier_forward.1} parent=1 // pred_check_branch
      %91 = sbr.rel (0) target = $region69
    $region68: #{conv2d_classifier_forward.1} parent=1 // pred_region
      _
    $region69: #{conv2d_classifier_forward.1} parent=1 // pred_fallthru
      _
    // Predicated region
    $region70: #{conv2d_classifier_forward.1} parent=1 // pred_check
      _
    $region71: #{conv2d_classifier_forward.1} parent=1 // pred_check_branch
      %93 = sbr.rel (0) target = $region73
    $region72: #{conv2d_classifier_forward.1} parent=1 // pred_region
      %s95 = ssub.s32 3072, 3072
      %96 = vsyncadd [#allocation9], %s95
      %s97 = sshll.u32 [#allocation8], 4
      %s98 = int_to_ptr.vmem [resolvable:$true] %s97
      %103 = dma.hbm_to_vmem [thread:$0]  %s17, 3072, %s98, [#allocation9], 384, 384, 24
    $region73: #{conv2d_classifier_forward.1} parent=1 // pred_fallthru
      _
    // Predicated region
    $region74: #{conv2d_classifier_forward.1} parent=1 // pred_check
      _
    $region75: #{conv2d_classifier_forward.1} parent=1 // pred_check_branch
      %105 = sbr.rel (0) target = $region77
    $region76: #{conv2d_classifier_forward.1} parent=1 // pred_region
      _
    $region77: #{conv2d_classifier_forward.1} parent=1 // pred_fallthru
      _
    // Predicated region
    $region78: #{conv2d_classifier_forward.1} parent=1 // pred_check
      _
    $region79: #{conv2d_classifier_forward.1} parent=1 // pred_check_branch
      %107 = sbr.rel (0) target = $region81
    $region80: #{conv2d_classifier_forward.1} parent=1 // pred_region
      _
    $region81: #{conv2d_classifier_forward.1} parent=1 // pred_fallthru
      _
    // Predicated region
    $region82: #{conv2d_classifier_forward.1} parent=1 // pred_check
      _
    $region83: #{conv2d_classifier_forward.1} parent=1 // pred_check_branch
      %109 = sbr.rel (0) target = $region85
    $region84: #{conv2d_classifier_forward.1} parent=1 // pred_region
      %s111 = ssub.s32 16, 16
      %112 = vsyncadd [#allocation9], %s111
      %s114 = sshll.u32 [#allocation10], 4
      %s115 = int_to_ptr.vmem [resolvable:$true] %s114
      %117 = dma.hbm_to_vmem [thread:$0]  %s20, 16, %s115, [#allocation9]
    $region85: #{conv2d_classifier_forward.1} parent=1 // pred_fallthru
      _
    // Predicated region
    $region86: #{conv2d_classifier_forward.1} parent=1 // pred_check
      _
    $region87: #{conv2d_classifier_forward.1} parent=1 // pred_check_branch
      %119 = sbr.rel (0) target = $region89
    $region88: #{conv2d_classifier_forward.1} parent=1 // pred_region
      %120 = dma.done [#allocation3], 1024
    $region89: #{conv2d_classifier_forward.1} parent=1 // pred_fallthru
      _
    // Predicated region
    $region90: #{conv2d_classifier_forward.1} parent=1 // pred_check
      _
    $region91: #{conv2d_classifier_forward.1} parent=1 // pred_check_branch
      %122 = sbr.rel (0) target = $region93
    $region92: #{conv2d_classifier_forward.1} parent=1 // pred_region
      %123 = dma.done [#allocation6], 1024
    $region93: #{conv2d_classifier_forward.1} parent=1 // pred_fallthru
      _
    // Predicated region
    $region94: #{conv2d_classifier_forward.1} parent=1 // pred_check
      _
    $region95: #{conv2d_classifier_forward.1} parent=1 // pred_check_branch
      %125 = sbr.rel (0) target = $region97
    $region96: #{conv2d_classifier_forward.1} parent=1 // pred_region
      %126 = dma.done [#allocation6], 256
    $region97: #{conv2d_classifier_forward.1} parent=1 // pred_fallthru
      _
    // Predicated region
    $region98: #{conv2d_classifier_forward.1} parent=1 // pred_check
      _
    $region99: #{conv2d_classifier_forward.1} parent=1 // pred_check_branch
      %128 = sbr.rel (0) target = $region101
    $region100: #{conv2d_classifier_forward.1} parent=1 // pred_region
      %129 = dma.done [#allocation9], 3072
    $region101: #{conv2d_classifier_forward.1} parent=1 // pred_fallthru
      _
    // Predicated region
    $region102: #{conv2d_classifier_forward.1} parent=1 // pred_check
      _
    $region103: #{conv2d_classifier_forward.1} parent=1 // pred_check_branch
      %131 = sbr.rel (0) target = $region105
    $region104: #{conv2d_classifier_forward.1} parent=1 // pred_region
      %132 = dma.done [#allocation9], 16
    $region105: #{conv2d_classifier_forward.1} parent=1 // pred_fallthru
      _
    %v133 = vld [vmem:[#allocation2] sm:$0xff]
    %v134 = vld [vmem:[#allocation2 + $0x8] sm:$0xff]
    %v135 = vld [vmem:[#allocation2 + $0x10] sm:$0xff]
    %v136 = vld [vmem:[#allocation2 + $0x18] sm:$0xff]
    %v137 = vld [vmem:[#allocation2 + $0x20] sm:$0xff]
    %v138 = vld [vmem:[#allocation2 + $0x28] sm:$0xff]
    %v139 = vld [vmem:[#allocation2 + $0x30] sm:$0xff]
    %v140 = vld [vmem:[#allocation2 + $0x38] sm:$0xff]
    %v141 = vld [vmem:[#allocation5] sm:$0xff]
    %v142 = vld [vmem:[#allocation5 + $0x8] sm:$0xff]
    %v143 = vld [vmem:[#allocation5 + $0x10] sm:$0xff]
    %v144 = vld [vmem:[#allocation5 + $0x18] sm:$0xff]
    %v145 = vld [vmem:[#allocation5 + $0x20] sm:$0xff]
    %v146 = vld [vmem:[#allocation5 + $0x28] sm:$0xff]
    %v147 = vld [vmem:[#allocation5 + $0x30] sm:$0xff]
    %v148 = vld [vmem:[#allocation5 + $0x38] sm:$0xff]
    %v149 = vld [vmem:[%s13] sm:$0xff]
    %v150 = vld [vmem:[%s13 + $0x8] sm:$0xff]
    %v151 = vld [vmem:[%s13 + $0x10] sm:$0xff]
    %v152 = vld [vmem:[%s13 + $0x18] sm:$0xff]
    %v153 = vld [vmem:[%s13 + $0x20] sm:$0xff]
    %v154 = vld [vmem:[%s13 + $0x28] sm:$0xff]
    %v155 = vld [vmem:[%s13 + $0x30] sm:$0xff]
    %v156 = vld [vmem:[%s13 + $0x38] sm:$0xff]
    %v157 = vld [vmem:[%s0] sm:$0xff]
    %v158 = vld [vmem:[%s0 + $0x8] sm:$0xff]
    %v159 = vld [vmem:[%s0 + $0x10] sm:$0xff]
    %v160 = vld [vmem:[%s0 + $0x18] sm:$0xff]
    %v161 = vld [vmem:[%s0 + $0x20] sm:$0xff]
    %v162 = vld [vmem:[%s0 + $0x28] sm:$0xff]
    %v163 = vld [vmem:[%s0 + $0x30] sm:$0xff]
    %v164 = vld [vmem:[%s0 + $0x38] sm:$0xff]
    %v165 = vld [vmem:[%s4] sm:$0x1]
    %vm166 = vcmask 523264
    %v168 = vsel %vm166, %v133, 0
    %v171 = vsel %vm166, %v134, 0
    %v174 = vsel %vm166, %v135, 0
    %v177 = vsel %vm166, %v136, 0
    %v180 = vsel %vm166, %v137, 0
    %v183 = vsel %vm166, %v138, 0
    %v186 = vsel %vm166, %v139, 0
    %v189 = vsel %vm166, %v140, 0
    %191 = vmatprep.subr.mxu0 0.0
    %192 = vmatpush1.msra.mxu0 %v157
    %193 = vmatprep.subr.mxu0 0.0
    %194 = vmatpush1.msra.mxu0 %v158
    %195 = vmatprep.subr.mxu0 0.0
    %196 = vmatpush1.msra.mxu0 %v159
    %197 = vmatprep.subr.mxu0 0.0
    %198 = vmatpush1.msra.mxu0 %v160
    %199 = vmatprep.subr.mxu0 0.0
    %200 = vmatpush1.msra.mxu0 %v161
    %201 = vmatprep.subr.mxu0 0.0
    %202 = vmatpush1.msra.mxu0 %v162
    %203 = vmatprep.subr.mxu0 0.0
    %204 = vmatpush1.msra.mxu0 %v163
    %205 = vmatprep.subr.mxu0 0.0
    %206 = vmatpush1.msra.mxu0 %v164
    %207 = vmatprep.subr.mxu0 0.0
    %208 = vmatpush1.msra.mxu0 0.0
    %209 = vmatprep.subr.mxu0 0.0
    %210 = vmatpush1.msra.mxu0 0.0
    %211 = vmatprep.subr.mxu0 0.0
    %212 = vmatpush1.msra.mxu0 0.0
    %213 = vmatprep.subr.mxu0 0.0
    %214 = vmatpush1.msra.mxu0 0.0
    %215 = vmatprep.subr.mxu0 0.0
    %216 = vmatpush1.msra.mxu0 0.0
    %217 = vmatprep.subr.mxu0 0.0
    %218 = vmatpush1.msra.mxu0 0.0
    %219 = vmatprep.subr.mxu0 0.0
    %220 = vmatpush1.msra.mxu0 0.0
    %221 = vmatprep.subr.mxu0 0.0
    %222 = vmatpush1.msra.mxu0 0.0
    %223 = vmatprep.subr.mxu0 0.0
    %224 = vmatpush1.msra.mxu0 0.0
    %225 = vmatprep.subr.mxu0 0.0
    %226 = vmatpush1.msra.mxu0 0.0
    %227 = vmatprep.subr.mxu0 0.0
    %228 = vmatpush1.msra.mxu0 0.0
    %229 = vmatprep.subr.mxu0 0.0
    %230 = vmatpush1.msra.mxu0 0.0
    %231 = vmatprep.subr.mxu0 0.0
    %232 = vmatpush1.msra.mxu0 0.0
    %233 = vmatprep.subr.mxu0 0.0
    %234 = vmatpush1.msra.mxu0 0.0
    %235 = vmatprep.subr.mxu0 0.0
    %236 = vmatpush1.msra.mxu0 0.0
    %237 = vmatprep.subr.mxu0 0.0
    %238 = vmatpush1.msra.mxu0 0.0
    %239 = vmatprep.subr.mxu0 0.0
    %240 = vmatpush1.msra.mxu0 0.0
    %241 = vmatprep.subr.mxu0 0.0
    %242 = vmatpush1.msra.mxu0 0.0
    %243 = vmatprep.subr.mxu0 0.0
    %244 = vmatpush1.msra.mxu0 0.0
    %245 = vmatprep.subr.mxu0 0.0
    %246 = vmatpush1.msra.mxu0 0.0
    %247 = vmatprep.subr.mxu0 0.0
    %248 = vmatpush1.msra.mxu0 0.0
    %249 = vmatprep.subr.mxu0 0.0
    %250 = vmatpush1.msra.mxu0 0.0
    %251 = vmatprep.subr.mxu0 0.0
    %252 = vmatpush1.msra.mxu0 0.0
    %253 = vmatprep.subr.mxu0 0.0
    %254 = vmatpush1.msra.mxu0 0.0
    %255 = vmatprep.mubr.f32.mxu0 0.0
    %256 = vmatmul.mubr.f32.gmra.mrb[0].mxu0 %v168
    %v257 = vpop.f32.mrb[0].mxu0
    %v258 = vadd.f32 0.0, %v257
    %v259 = vpop.f32.mrb[0].mxu0
    %260 = vmatprep.mubr.f32.mxu0 0.0
    %261 = vmatmul.mubr.f32.gmra.mrb[0].mxu0 %v171
    %v262 = vpop.f32.mrb[0].mxu0
    %v263 = vadd.f32 0.0, %v262
    %v264 = vpop.f32.mrb[0].mxu0
    %265 = vmatprep.mubr.f32.mxu0 0.0
    %266 = vmatmul.mubr.f32.gmra.mrb[0].mxu0 %v174
    %v267 = vpop.f32.mrb[0].mxu0
    %v268 = vadd.f32 0.0, %v267
    %v269 = vpop.f32.mrb[0].mxu0
    %270 = vmatprep.mubr.f32.mxu0 0.0
    %271 = vmatmul.mubr.f32.gmra.mrb[0].mxu0 %v177
    %v272 = vpop.f32.mrb[0].mxu0
    %v273 = vadd.f32 0.0, %v272
    %v274 = vpop.f32.mrb[0].mxu0
    %275 = vmatprep.mubr.f32.mxu0 0.0
    %276 = vmatmul.mubr.f32.gmra.mrb[0].mxu0 %v180
    %v277 = vpop.f32.mrb[0].mxu0
    %v278 = vadd.f32 0.0, %v277
    %v279 = vpop.f32.mrb[0].mxu0
    %280 = vmatprep.mubr.f32.mxu0 0.0
    %281 = vmatmul.mubr.f32.gmra.mrb[0].mxu0 %v183
    %v282 = vpop.f32.mrb[0].mxu0
    %v283 = vadd.f32 0.0, %v282
    %v284 = vpop.f32.mrb[0].mxu0
    %285 = vmatprep.mubr.f32.mxu0 0.0
    %286 = vmatmul.mubr.f32.gmra.mrb[0].mxu0 %v186
    %v287 = vpop.f32.mrb[0].mxu0
    %v288 = vadd.f32 0.0, %v287
    %v289 = vpop.f32.mrb[0].mxu0
    %290 = vmatprep.mubr.f32.mxu0 0.0
    %291 = vmatmul.mubr.f32.gmra.mrb[0].mxu0 %v189
    %v292 = vpop.f32.mrb[0].mxu0
    %v293 = vadd.f32 0.0, %v292
    %v294 = vpop.f32.mrb[0].mxu0
    %295 = vdwg.mxu0
    %v297 = vsel %vm166, %v141, 0
    %v300 = vsel %vm166, %v142, 0
    %v303 = vsel %vm166, %v143, 0
    %v306 = vsel %vm166, %v144, 0
    %v309 = vsel %vm166, %v145, 0
    %v312 = vsel %vm166, %v146, 0
    %v315 = vsel %vm166, %v147, 0
    %v318 = vsel %vm166, %v148, 0
    %320 = vmatprep.subr.mxu0 0.0
    %321 = vmatpush1.msra.mxu0 %v157
    %322 = vmatprep.subr.mxu0 0.0
    %323 = vmatpush1.msra.mxu0 %v158
    %324 = vmatprep.subr.mxu0 0.0
    %325 = vmatpush1.msra.mxu0 %v159
    %326 = vmatprep.subr.mxu0 0.0
    %327 = vmatpush1.msra.mxu0 %v160
    %328 = vmatprep.subr.mxu0 0.0
    %329 = vmatpush1.msra.mxu0 %v161
    %330 = vmatprep.subr.mxu0 0.0
    %331 = vmatpush1.msra.mxu0 %v162
    %332 = vmatprep.subr.mxu0 0.0
    %333 = vmatpush1.msra.mxu0 %v163
    %334 = vmatprep.subr.mxu0 0.0
    %335 = vmatpush1.msra.mxu0 %v164
    %336 = vmatprep.subr.mxu0 0.0
    %337 = vmatpush1.msra.mxu0 0.0
    %338 = vmatprep.subr.mxu0 0.0
    %339 = vmatpush1.msra.mxu0 0.0
    %340 = vmatprep.subr.mxu0 0.0
    %341 = vmatpush1.msra.mxu0 0.0
    %342 = vmatprep.subr.mxu0 0.0
    %343 = vmatpush1.msra.mxu0 0.0
    %344 = vmatprep.subr.mxu0 0.0
    %345 = vmatpush1.msra.mxu0 0.0
    %346 = vmatprep.subr.mxu0 0.0
    %347 = vmatpush1.msra.mxu0 0.0
    %348 = vmatprep.subr.mxu0 0.0
    %349 = vmatpush1.msra.mxu0 0.0
    %350 = vmatprep.subr.mxu0 0.0
    %351 = vmatpush1.msra.mxu0 0.0
    %352 = vmatprep.subr.mxu0 0.0
    %353 = vmatpush1.msra.mxu0 0.0
    %354 = vmatprep.subr.mxu0 0.0
    %355 = vmatpush1.msra.mxu0 0.0
    %356 = vmatprep.subr.mxu0 0.0
    %357 = vmatpush1.msra.mxu0 0.0
    %358 = vmatprep.subr.mxu0 0.0
    %359 = vmatpush1.msra.mxu0 0.0
    %360 = vmatprep.subr.mxu0 0.0
    %361 = vmatpush1.msra.mxu0 0.0
    %362 = vmatprep.subr.mxu0 0.0
    %363 = vmatpush1.msra.mxu0 0.0
    %364 = vmatprep.subr.mxu0 0.0
    %365 = vmatpush1.msra.mxu0 0.0
    %366 = vmatprep.subr.mxu0 0.0
    %367 = vmatpush1.msra.mxu0 0.0
    %368 = vmatprep.subr.mxu0 0.0
    %369 = vmatpush1.msra.mxu0 0.0
    %370 = vmatprep.subr.mxu0 0.0
    %371 = vmatpush1.msra.mxu0 0.0
    %372 = vmatprep.subr.mxu0 0.0
    %373 = vmatpush1.msra.mxu0 0.0
    %374 = vmatprep.subr.mxu0 0.0
    %375 = vmatpush1.msra.mxu0 0.0
    %376 = vmatprep.subr.mxu0 0.0
    %377 = vmatpush1.msra.mxu0 0.0
    %378 = vmatprep.subr.mxu0 0.0
    %379 = vmatpush1.msra.mxu0 0.0
    %380 = vmatprep.subr.mxu0 0.0
    %381 = vmatpush1.msra.mxu0 0.0
    %382 = vmatprep.subr.mxu0 0.0
    %383 = vmatpush1.msra.mxu0 0.0
    %384 = vmatprep.mubr.f32.mxu0 0.0
    %385 = vmatmul.mubr.f32.gmra.mrb[0].mxu0 %v297
    %v386 = vpop.f32.mrb[0].mxu0
    %v387 = vadd.f32 0.0, %v386
    %v388 = vpop.f32.mrb[0].mxu0
    %389 = vmatprep.mubr.f32.mxu0 0.0
    %390 = vmatmul.mubr.f32.gmra.mrb[0].mxu0 %v300
    %v391 = vpop.f32.mrb[0].mxu0
    %v392 = vadd.f32 0.0, %v391
    %v393 = vpop.f32.mrb[0].mxu0
    %394 = vmatprep.mubr.f32.mxu0 0.0
    %395 = vmatmul.mubr.f32.gmra.mrb[0].mxu0 %v303
    %v396 = vpop.f32.mrb[0].mxu0
    %v397 = vadd.f32 0.0, %v396
    %v398 = vpop.f32.mrb[0].mxu0
    %399 = vmatprep.mubr.f32.mxu0 0.0
    %400 = vmatmul.mubr.f32.gmra.mrb[0].mxu0 %v306
    %v401 = vpop.f32.mrb[0].mxu0
    %v402 = vadd.f32 0.0, %v401
    %v403 = vpop.f32.mrb[0].mxu0
    %404 = vmatprep.mubr.f32.mxu0 0.0
    %405 = vmatmul.mubr.f32.gmra.mrb[0].mxu0 %v309
    %v406 = vpop.f32.mrb[0].mxu0
    %v407 = vadd.f32 0.0, %v406
    %v408 = vpop.f32.mrb[0].mxu0
    %409 = vmatprep.mubr.f32.mxu0 0.0
    %410 = vmatmul.mubr.f32.gmra.mrb[0].mxu0 %v312
    %v411 = vpop.f32.mrb[0].mxu0
    %v412 = vadd.f32 0.0, %v411
    %v413 = vpop.f32.mrb[0].mxu0
    %414 = vmatprep.mubr.f32.mxu0 0.0
    %415 = vmatmul.mubr.f32.gmra.mrb[0].mxu0 %v315
    %v416 = vpop.f32.mrb[0].mxu0
    %v417 = vadd.f32 0.0, %v416
    %v418 = vpop.f32.mrb[0].mxu0
    %419 = vmatprep.mubr.f32.mxu0 0.0
    %420 = vmatmul.mubr.f32.gmra.mrb[0].mxu0 %v318
    %v421 = vpop.f32.mrb[0].mxu0
    %v422 = vadd.f32 0.0, %v421
    %v423 = vpop.f32.mrb[0].mxu0
    %424 = vdwg.mxu0
    %v425 = vld [vmem:[%s3] sm:$0xff]
    %v426 = vld [vmem:[%s3 + $0x8] sm:$0xff]
    %v427 = vld [vmem:[%s3 + $0x10] sm:$0xff]
    %v428 = vld [vmem:[%s3 + $0x18] sm:$0x3f]
    %s429 = scalar_lea.vmem %s3, 32
    %v430 = vld [vmem:[%s429] sm:$0xff]
    %v431 = vld [vmem:[%s429 + $0x8] sm:$0xff]
    %v432 = vld [vmem:[%s429 + $0x10] sm:$0xff]
    %v433 = vld [vmem:[%s429 + $0x18] sm:$0x3f]
    %vm434 = vcmask 244736
    %v436 = vsel %vm434, %v157, 0
    %v439 = vsel %vm434, %v158, 0
    %v442 = vsel %vm434, %v159, 0
    %v445 = vsel %vm434, %v160, 0
    %v448 = vsel %vm434, %v161, 0
    %v451 = vsel %vm434, %v162, 0
    %v454 = vsel %vm434, %v163, 0
    %v457 = vsel %vm434, %v164, 0
    %vm459 = vcmask 1045504
    %v461 = vsel %vm459, %v433, 0
    %463 = vmatprep.subr.mxu0 0.0
    %464 = vmatpush1.msra.mxu0 %v430
    %465 = vmatprep.subr.mxu0 0.0
    %466 = vmatpush1.msra.mxu0 %v431
    %467 = vmatprep.subr.mxu0 0.0
    %468 = vmatpush1.msra.mxu0 %v432
    %469 = vmatprep.subr.mxu0 0.0
    %470 = vmatpush1.msra.mxu0 %v461
    %471 = vmatprep.subr.mxu0 0.0
    %472 = vmatpush1.msra.mxu0 0.0
    %473 = vmatprep.subr.mxu0 0.0
    %474 = vmatpush1.msra.mxu0 0.0
    %475 = vmatprep.subr.mxu0 0.0
    %476 = vmatpush1.msra.mxu0 0.0
    %477 = vmatprep.subr.mxu0 0.0
    %478 = vmatpush1.msra.mxu0 0.0
    %479 = vmatprep.subr.mxu0 0.0
    %480 = vmatpush1.msra.mxu0 0.0
    %481 = vmatprep.subr.mxu0 0.0
    %482 = vmatpush1.msra.mxu0 0.0
    %483 = vmatprep.subr.mxu0 0.0
    %484 = vmatpush1.msra.mxu0 0.0
    %485 = vmatprep.subr.mxu0 0.0
    %486 = vmatpush1.msra.mxu0 0.0
    %487 = vmatprep.subr.mxu0 0.0
    %488 = vmatpush1.msra.mxu0 0.0
    %489 = vmatprep.subr.mxu0 0.0
    %490 = vmatpush1.msra.mxu0 0.0
    %491 = vmatprep.subr.mxu0 0.0
    %492 = vmatpush1.msra.mxu0 0.0
    %493 = vmatprep.subr.mxu0 0.0
    %494 = vmatpush1.msra.mxu0 0.0
    %495 = vmatprep.subr.mxu0 0.0
    %496 = vmatpush1.msra.mxu0 0.0
    %497 = vmatprep.subr.mxu0 0.0
    %498 = vmatpush1.msra.mxu0 0.0
    %499 = vmatprep.subr.mxu0 0.0
    %500 = vmatpush1.msra.mxu0 0.0
    %501 = vmatprep.subr.mxu0 0.0
    %502 = vmatpush1.msra.mxu0 0.0
    %503 = vmatprep.subr.mxu0 0.0
    %504 = vmatpush1.msra.mxu0 0.0
    %505 = vmatprep.subr.mxu0 0.0
    %506 = vmatpush1.msra.mxu0 0.0
    %507 = vmatprep.subr.mxu0 0.0
    %508 = vmatpush1.msra.mxu0 0.0
    %509 = vmatprep.subr.mxu0 0.0
    %510 = vmatpush1.msra.mxu0 0.0
    %511 = vmatprep.subr.mxu0 0.0
    %512 = vmatpush1.msra.mxu0 0.0
    %513 = vmatprep.subr.mxu0 0.0
    %514 = vmatpush1.msra.mxu0 0.0
    %515 = vmatprep.subr.mxu0 0.0
    %516 = vmatpush1.msra.mxu0 0.0
    %517 = vmatprep.subr.mxu0 0.0
    %518 = vmatpush1.msra.mxu0 0.0
    %519 = vmatprep.subr.mxu0 0.0
    %520 = vmatpush1.msra.mxu0 0.0
    %521 = vmatprep.subr.mxu0 0.0
    %522 = vmatpush1.msra.mxu0 0.0
    %523 = vmatprep.subr.mxu0 0.0
    %524 = vmatpush1.msra.mxu0 0.0
    %525 = vmatprep.subr.mxu0 0.0
    %526 = vmatpush1.msra.mxu0 0.0
    %527 = vmatprep.mubr.f32.mxu0 0.0
    %528 = vmatmul.mubr.f32.gmra.mrb[0].mxu0 %v436
    %v529 = vpop.f32.mrb[0].mxu0
    %v530 = vadd.f32 0.0, %v529
    %v531 = vpop.f32.mrb[0].mxu0
    %532 = vmatprep.mubr.f32.mxu0 0.0
    %533 = vmatmul.mubr.f32.gmra.mrb[0].mxu0 %v439
    %v534 = vpop.f32.mrb[0].mxu0
    %v535 = vadd.f32 0.0, %v534
    %v536 = vpop.f32.mrb[0].mxu0
    %537 = vmatprep.mubr.f32.mxu0 0.0
    %538 = vmatmul.mubr.f32.gmra.mrb[0].mxu0 %v442
    %v539 = vpop.f32.mrb[0].mxu0
    %v540 = vadd.f32 0.0, %v539
    %v541 = vpop.f32.mrb[0].mxu0
    %542 = vmatprep.mubr.f32.mxu0 0.0
    %543 = vmatmul.mubr.f32.gmra.mrb[0].mxu0 %v445
    %v544 = vpop.f32.mrb[0].mxu0
    %v545 = vadd.f32 0.0, %v544
    %v546 = vpop.f32.mrb[0].mxu0
    %547 = vmatprep.mubr.f32.mxu0 0.0
    %548 = vmatmul.mubr.f32.gmra.mrb[0].mxu0 %v448
    %v549 = vpop.f32.mrb[0].mxu0
    %v550 = vadd.f32 0.0, %v549
    %v551 = vpop.f32.mrb[0].mxu0
    %552 = vmatprep.mubr.f32.mxu0 0.0
    %553 = vmatmul.mubr.f32.gmra.mrb[0].mxu0 %v451
    %v554 = vpop.f32.mrb[0].mxu0
    %v555 = vadd.f32 0.0, %v554
    %v556 = vpop.f32.mrb[0].mxu0
    %557 = vmatprep.mubr.f32.mxu0 0.0
    %558 = vmatmul.mubr.f32.gmra.mrb[0].mxu0 %v454
    %v559 = vpop.f32.mrb[0].mxu0
    %v560 = vadd.f32 0.0, %v559
    %v561 = vpop.f32.mrb[0].mxu0
    %562 = vmatprep.mubr.f32.mxu0 0.0
    %563 = vmatmul.mubr.f32.gmra.mrb[0].mxu0 %v457
    %v564 = vpop.f32.mrb[0].mxu0
    %v565 = vadd.f32 0.0, %v564
    %v566 = vpop.f32.mrb[0].mxu0
    %567 = vdwg.mxu0
    %v569 = vsel %vm434, %v258, 0
    %v572 = vsel %vm434, %v263, 0
    %v575 = vsel %vm434, %v268, 0
    %v578 = vsel %vm434, %v273, 0
    %v581 = vsel %vm434, %v278, 0
    %v584 = vsel %vm434, %v283, 0
    %v587 = vsel %vm434, %v288, 0
    %v590 = vsel %vm434, %v293, 0
    %v593 = vsel %vm459, %v428, 0
    %595 = vmatprep.subr.mxu0 0.0
    %596 = vmatpush1.msra.mxu0 %v425
    %597 = vmatprep.subr.mxu0 0.0
    %598 = vmatpush1.msra.mxu0 %v426
    %599 = vmatprep.subr.mxu0 0.0
    %600 = vmatpush1.msra.mxu0 %v427
    %601 = vmatprep.subr.mxu0 0.0
    %602 = vmatpush1.msra.mxu0 %v593
    %603 = vmatprep.subr.mxu0 0.0
    %604 = vmatpush1.msra.mxu0 0.0
    %605 = vmatprep.subr.mxu0 0.0
    %606 = vmatpush1.msra.mxu0 0.0
    %607 = vmatprep.subr.mxu0 0.0
    %608 = vmatpush1.msra.mxu0 0.0
    %609 = vmatprep.subr.mxu0 0.0
    %610 = vmatpush1.msra.mxu0 0.0
    %611 = vmatprep.subr.mxu0 0.0
    %612 = vmatpush1.msra.mxu0 0.0
    %613 = vmatprep.subr.mxu0 0.0
    %614 = vmatpush1.msra.mxu0 0.0
    %615 = vmatprep.subr.mxu0 0.0
    %616 = vmatpush1.msra.mxu0 0.0
    %617 = vmatprep.subr.mxu0 0.0
    %618 = vmatpush1.msra.mxu0 0.0
    %619 = vmatprep.subr.mxu0 0.0
    %620 = vmatpush1.msra.mxu0 0.0
    %621 = vmatprep.subr.mxu0 0.0
    %622 = vmatpush1.msra.mxu0 0.0
    %623 = vmatprep.subr.mxu0 0.0
    %624 = vmatpush1.msra.mxu0 0.0
    %625 = vmatprep.subr.mxu0 0.0
    %626 = vmatpush1.msra.mxu0 0.0
    %627 = vmatprep.subr.mxu0 0.0
    %628 = vmatpush1.msra.mxu0 0.0
    %629 = vmatprep.subr.mxu0 0.0
    %630 = vmatpush1.msra.mxu0 0.0
    %631 = vmatprep.subr.mxu0 0.0
    %632 = vmatpush1.msra.mxu0 0.0
    %633 = vmatprep.subr.mxu0 0.0
    %634 = vmatpush1.msra.mxu0 0.0
    %635 = vmatprep.subr.mxu0 0.0
    %636 = vmatpush1.msra.mxu0 0.0
    %637 = vmatprep.subr.mxu0 0.0
    %638 = vmatpush1.msra.mxu0 0.0
    %639 = vmatprep.subr.mxu0 0.0
    %640 = vmatpush1.msra.mxu0 0.0
    %641 = vmatprep.subr.mxu0 0.0
    %642 = vmatpush1.msra.mxu0 0.0
    %643 = vmatprep.subr.mxu0 0.0
    %644 = vmatpush1.msra.mxu0 0.0
    %645 = vmatprep.subr.mxu0 0.0
    %646 = vmatpush1.msra.mxu0 0.0
    %647 = vmatprep.subr.mxu0 0.0
    %648 = vmatpush1.msra.mxu0 0.0
    %649 = vmatprep.subr.mxu0 0.0
    %650 = vmatpush1.msra.mxu0 0.0
    %651 = vmatprep.subr.mxu0 0.0
    %652 = vmatpush1.msra.mxu0 0.0
    %653 = vmatprep.subr.mxu0 0.0
    %654 = vmatpush1.msra.mxu0 0.0
    %655 = vmatprep.subr.mxu0 0.0
    %656 = vmatpush1.msra.mxu0 0.0
    %657 = vmatprep.subr.mxu0 0.0
    %658 = vmatpush1.msra.mxu0 0.0
    %659 = vmatprep.mubr.f32.mxu0 0.0
    %660 = vmatmul.mubr.f32.gmra.mrb[0].mxu0 %v569
    %v661 = vpop.f32.mrb[0].mxu0
    %v662 = vadd.f32 %v530, %v661
    %v663 = vpop.f32.mrb[0].mxu0
    %664 = vmatprep.mubr.f32.mxu0 0.0
    %665 = vmatmul.mubr.f32.gmra.mrb[0].mxu0 %v572
    %v666 = vpop.f32.mrb[0].mxu0
    %v667 = vadd.f32 %v535, %v666
    %v668 = vpop.f32.mrb[0].mxu0
    %669 = vmatprep.mubr.f32.mxu0 0.0
    %670 = vmatmul.mubr.f32.gmra.mrb[0].mxu0 %v575
    %v671 = vpop.f32.mrb[0].mxu0
    %v672 = vadd.f32 %v540, %v671
    %v673 = vpop.f32.mrb[0].mxu0
    %674 = vmatprep.mubr.f32.mxu0 0.0
    %675 = vmatmul.mubr.f32.gmra.mrb[0].mxu0 %v578
    %v676 = vpop.f32.mrb[0].mxu0
    %v677 = vadd.f32 %v545, %v676
    %v678 = vpop.f32.mrb[0].mxu0
    %679 = vmatprep.mubr.f32.mxu0 0.0
    %680 = vmatmul.mubr.f32.gmra.mrb[0].mxu0 %v581
    %v681 = vpop.f32.mrb[0].mxu0
    %v682 = vadd.f32 %v550, %v681
    %v683 = vpop.f32.mrb[0].mxu0
    %684 = vmatprep.mubr.f32.mxu0 0.0
    %685 = vmatmul.mubr.f32.gmra.mrb[0].mxu0 %v584
    %v686 = vpop.f32.mrb[0].mxu0
    %v687 = vadd.f32 %v555, %v686
    %v688 = vpop.f32.mrb[0].mxu0
    %689 = vmatprep.mubr.f32.mxu0 0.0
    %690 = vmatmul.mubr.f32.gmra.mrb[0].mxu0 %v587
    %v691 = vpop.f32.mrb[0].mxu0
    %v692 = vadd.f32 %v560, %v691
    %v693 = vpop.f32.mrb[0].mxu0
    %694 = vmatprep.mubr.f32.mxu0 0.0
    %695 = vmatmul.mubr.f32.gmra.mrb[0].mxu0 %v590
    %v696 = vpop.f32.mrb[0].mxu0
    %v697 = vadd.f32 %v565, %v696
    %v698 = vpop.f32.mrb[0].mxu0
    %699 = vdwg.mxu0
    %s700 = scalar_lea.vmem %s3, 64
    %v701 = vld [vmem:[%s700] sm:$0xff]
    %v702 = vld [vmem:[%s700 + $0x8] sm:$0xff]
    %v703 = vld [vmem:[%s700 + $0x10] sm:$0xff]
    %v704 = vld [vmem:[%s700 + $0x18] sm:$0x3f]
    %v706 = vsel %vm434, %v387, 0
    %v709 = vsel %vm434, %v392, 0
    %v712 = vsel %vm434, %v397, 0
    %v715 = vsel %vm434, %v402, 0
    %v718 = vsel %vm434, %v407, 0
    %v721 = vsel %vm434, %v412, 0
    %v724 = vsel %vm434, %v417, 0
    %v727 = vsel %vm434, %v422, 0
    %v730 = vsel %vm459, %v704, 0
    %732 = vmatprep.subr.mxu0 0.0
    %733 = vmatpush1.msra.mxu0 %v701
    %734 = vmatprep.subr.mxu0 0.0
    %735 = vmatpush1.msra.mxu0 %v702
    %736 = vmatprep.subr.mxu0 0.0
    %737 = vmatpush1.msra.mxu0 %v703
    %738 = vmatprep.subr.mxu0 0.0
    %739 = vmatpush1.msra.mxu0 %v730
    %740 = vmatprep.subr.mxu0 0.0
    %741 = vmatpush1.msra.mxu0 0.0
    %742 = vmatprep.subr.mxu0 0.0
    %743 = vmatpush1.msra.mxu0 0.0
    %744 = vmatprep.subr.mxu0 0.0
    %745 = vmatpush1.msra.mxu0 0.0
    %746 = vmatprep.subr.mxu0 0.0
    %747 = vmatpush1.msra.mxu0 0.0
    %748 = vmatprep.subr.mxu0 0.0
    %749 = vmatpush1.msra.mxu0 0.0
    %750 = vmatprep.subr.mxu0 0.0
    %751 = vmatpush1.msra.mxu0 0.0
    %752 = vmatprep.subr.mxu0 0.0
    %753 = vmatpush1.msra.mxu0 0.0
    %754 = vmatprep.subr.mxu0 0.0
    %755 = vmatpush1.msra.mxu0 0.0
    %756 = vmatprep.subr.mxu0 0.0
    %757 = vmatpush1.msra.mxu0 0.0
    %758 = vmatprep.subr.mxu0 0.0
    %759 = vmatpush1.msra.mxu0 0.0
    %760 = vmatprep.subr.mxu0 0.0
    %761 = vmatpush1.msra.mxu0 0.0
    %762 = vmatprep.subr.mxu0 0.0
    %763 = vmatpush1.msra.mxu0 0.0
    %764 = vmatprep.subr.mxu0 0.0
    %765 = vmatpush1.msra.mxu0 0.0
    %766 = vmatprep.subr.mxu0 0.0
    %767 = vmatpush1.msra.mxu0 0.0
    %768 = vmatprep.subr.mxu0 0.0
    %769 = vmatpush1.msra.mxu0 0.0
    %770 = vmatprep.subr.mxu0 0.0
    %771 = vmatpush1.msra.mxu0 0.0
    %772 = vmatprep.subr.mxu0 0.0
    %773 = vmatpush1.msra.mxu0 0.0
    %774 = vmatprep.subr.mxu0 0.0
    %775 = vmatpush1.msra.mxu0 0.0
    %776 = vmatprep.subr.mxu0 0.0
    %777 = vmatpush1.msra.mxu0 0.0
    %778 = vmatprep.subr.mxu0 0.0
    %779 = vmatpush1.msra.mxu0 0.0
    %780 = vmatprep.subr.mxu0 0.0
    %781 = vmatpush1.msra.mxu0 0.0
    %782 = vmatprep.subr.mxu0 0.0
    %783 = vmatpush1.msra.mxu0 0.0
    %784 = vmatprep.subr.mxu0 0.0
    %785 = vmatpush1.msra.mxu0 0.0
    %786 = vmatprep.subr.mxu0 0.0
    %787 = vmatpush1.msra.mxu0 0.0
    %788 = vmatprep.subr.mxu0 0.0
    %789 = vmatpush1.msra.mxu0 0.0
    %790 = vmatprep.subr.mxu0 0.0
    %791 = vmatpush1.msra.mxu0 0.0
    %792 = vmatprep.subr.mxu0 0.0
    %793 = vmatpush1.msra.mxu0 0.0
    %794 = vmatprep.subr.mxu0 0.0
    %795 = vmatpush1.msra.mxu0 0.0
    %796 = vmatprep.mubr.f32.mxu0 0.0
    %797 = vmatmul.mubr.f32.gmra.mrb[0].mxu0 %v706
    %v798 = vpop.f32.mrb[0].mxu0
    %v799 = vadd.f32 0.0, %v798
    %v800 = vpop.f32.mrb[0].mxu0
    %801 = vmatprep.mubr.f32.mxu0 0.0
    %802 = vmatmul.mubr.f32.gmra.mrb[0].mxu0 %v709
    %v803 = vpop.f32.mrb[0].mxu0
    %v804 = vadd.f32 0.0, %v803
    %v805 = vpop.f32.mrb[0].mxu0
    %806 = vmatprep.mubr.f32.mxu0 0.0
    %807 = vmatmul.mubr.f32.gmra.mrb[0].mxu0 %v712
    %v808 = vpop.f32.mrb[0].mxu0
    %v809 = vadd.f32 0.0, %v808
    %v810 = vpop.f32.mrb[0].mxu0
    %811 = vmatprep.mubr.f32.mxu0 0.0
    %812 = vmatmul.mubr.f32.gmra.mrb[0].mxu0 %v715
    %v813 = vpop.f32.mrb[0].mxu0
    %v814 = vadd.f32 0.0, %v813
    %v815 = vpop.f32.mrb[0].mxu0
    %816 = vmatprep.mubr.f32.mxu0 0.0
    %817 = vmatmul.mubr.f32.gmra.mrb[0].mxu0 %v718
    %v818 = vpop.f32.mrb[0].mxu0
    %v819 = vadd.f32 0.0, %v818
    %v820 = vpop.f32.mrb[0].mxu0
    %821 = vmatprep.mubr.f32.mxu0 0.0
    %822 = vmatmul.mubr.f32.gmra.mrb[0].mxu0 %v721
    %v823 = vpop.f32.mrb[0].mxu0
    %v824 = vadd.f32 0.0, %v823
    %v825 = vpop.f32.mrb[0].mxu0
    %826 = vmatprep.mubr.f32.mxu0 0.0
    %827 = vmatmul.mubr.f32.gmra.mrb[0].mxu0 %v724
    %v828 = vpop.f32.mrb[0].mxu0
    %v829 = vadd.f32 0.0, %v828
    %v830 = vpop.f32.mrb[0].mxu0
    %831 = vmatprep.mubr.f32.mxu0 0.0
    %832 = vmatmul.mubr.f32.gmra.mrb[0].mxu0 %v727
    %v833 = vpop.f32.mrb[0].mxu0
    %v834 = vadd.f32 0.0, %v833
    %v835 = vpop.f32.mrb[0].mxu0
    %836 = vdwg.mxu0
    %v837 = vadd.f32 %v662, %v799
    %v838 = vadd.f32 %v667, %v804
    %v839 = vadd.f32 %v672, %v809
    %v840 = vadd.f32 %v677, %v814
    %v841 = vadd.f32 %v682, %v819
    %v842 = vadd.f32 %v687, %v824
    %v843 = vadd.f32 %v692, %v829
    %v844 = vadd.f32 %v697, %v834
    %v846 = vlaneseq
    %v847 = vshrl.u32 %v846, 7
    %v848 = vsub.s32 0, %v847
    %v849 = vrot.slane %v165, %v848
    %v851 = vadd.f32 %v837, %v849
    %v852 = vadd.f32 %v838, %v849
    %v853 = vadd.f32 %v839, %v849
    %v854 = vadd.f32 %v840, %v849
    %v855 = vadd.f32 %v841, %v849
    %v856 = vadd.f32 %v842, %v849
    %v857 = vadd.f32 %v843, %v849
    %v858 = vadd.f32 %v844, %v849
    %vm859 = vcmp.gt.f32.partialorder %v851, 0.0
    %vm860 = vcmp.gt.f32.partialorder %v852, 0.0
    %vm861 = vcmp.gt.f32.partialorder %v853, 0.0
    %vm862 = vcmp.gt.f32.partialorder %v854, 0.0
    %vm863 = vcmp.gt.f32.partialorder %v855, 0.0
    %vm864 = vcmp.gt.f32.partialorder %v856, 0.0
    %vm865 = vcmp.gt.f32.partialorder %v857, 0.0
    %vm866 = vcmp.gt.f32.partialorder %v858, 0.0
    %v867 = vmul.f32 %v851, 0.01
    %v868 = vmul.f32 %v852, 0.01
    %v869 = vmul.f32 %v853, 0.01
    %v870 = vmul.f32 %v854, 0.01
    %v871 = vmul.f32 %v855, 0.01
    %v872 = vmul.f32 %v856, 0.01
    %v873 = vmul.f32 %v857, 0.01
    %v874 = vmul.f32 %v858, 0.01
    %v875 = vsel %vm859, %v851, %v867
    %v876 = vsel %vm860, %v852, %v868
    %v877 = vsel %vm861, %v853, %v869
    %v878 = vsel %vm862, %v854, %v870
    %v879 = vsel %vm863, %v855, %v871
    %v880 = vsel %vm864, %v856, %v872
    %v881 = vsel %vm865, %v857, %v873
    %v882 = vsel %vm866, %v858, %v874
    %884 = vset.pattern.permute.xlu0 0
    %885 = vperm.xlu0 %884, %v149
    %v886 = vpop.permute.xlu0 %885
    %889 = vset.pattern.permute.xlu0 0
    %890 = vperm.xlu0 %889, %v150
    %v891 = vpop.permute.xlu0 %890
    %894 = vset.pattern.permute.xlu0 0
    %895 = vperm.xlu0 %894, %v151
    %v896 = vpop.permute.xlu0 %895
    %899 = vset.pattern.permute.xlu0 0
    %900 = vperm.xlu0 %899, %v152
    %v901 = vpop.permute.xlu0 %900
    %904 = vset.pattern.permute.xlu0 0
    %905 = vperm.xlu0 %904, %v153
    %v906 = vpop.permute.xlu0 %905
    %909 = vset.pattern.permute.xlu0 0
    %910 = vperm.xlu0 %909, %v154
    %v911 = vpop.permute.xlu0 %910
    %914 = vset.pattern.permute.xlu0 0
    %915 = vperm.xlu0 %914, %v155
    %v916 = vpop.permute.xlu0 %915
    %919 = vset.pattern.permute.xlu0 0
    %920 = vperm.xlu0 %919, %v156
    %v921 = vpop.permute.xlu0 %920
    %v923 = vmul.f32 %v875, %v886
    %v924 = vmul.f32 %v876, %v891
    %v925 = vmul.f32 %v877, %v896
    %v926 = vmul.f32 %v878, %v901
    %v927 = vmul.f32 %v879, %v906
    %v928 = vmul.f32 %v880, %v911
    %v929 = vmul.f32 %v881, %v916
    %v930 = vmul.f32 %v882, %v921
    %v931 = vld [vmem:[%s14] sm:$0x1]
    %v933 = vlaneseq
    %v934 = vshrl.u32 %v933, 7
    %v935 = vsub.s32 0, %v934
    %v936 = vrot.slane %v931, %v935
    %v938 = vmul.f32 %v923, %v936
    %v939 = vmul.f32 %v924, %v936
    %v940 = vmul.f32 %v925, %v936
    %v941 = vmul.f32 %v926, %v936
    %v942 = vmul.f32 %v927, %v936
    %v943 = vmul.f32 %v928, %v936
    %v944 = vmul.f32 %v929, %v936
    %v945 = vmul.f32 %v930, %v936
    %v946 = vld [vmem:[%s6] sm:$0x3]
    %947 = vmatprep.subr.mxu0 0.0
    %948 = vmatpush1.msra.mxu0 %v938
    %949 = vmatprep.subr.mxu0 0.0
    %950 = vmatpush1.msra.mxu0 %v939
    %951 = vmatprep.subr.mxu0 0.0
    %952 = vmatpush1.msra.mxu0 %v940
    %953 = vmatprep.subr.mxu0 0.0
    %954 = vmatpush1.msra.mxu0 %v941
    %955 = vmatprep.subr.mxu0 0.0
    %956 = vmatpush1.msra.mxu0 %v942
    %957 = vmatprep.subr.mxu0 0.0
    %958 = vmatpush1.msra.mxu0 %v943
    %959 = vmatprep.subr.mxu0 0.0
    %960 = vmatpush1.msra.mxu0 %v944
    %961 = vmatprep.subr.mxu0 0.0
    %962 = vmatpush1.msra.mxu0 %v945
    %963 = vmatprep.subr.mxu0 0.0
    %964 = vmatpush1.msra.mxu0 0.0
    %965 = vmatprep.subr.mxu0 0.0
    %966 = vmatpush1.msra.mxu0 0.0
    %967 = vmatprep.subr.mxu0 0.0
    %968 = vmatpush1.msra.mxu0 0.0
    %969 = vmatprep.subr.mxu0 0.0
    %970 = vmatpush1.msra.mxu0 0.0
    %971 = vmatprep.subr.mxu0 0.0
    %972 = vmatpush1.msra.mxu0 0.0
    %973 = vmatprep.subr.mxu0 0.0
    %974 = vmatpush1.msra.mxu0 0.0
    %975 = vmatprep.subr.mxu0 0.0
    %976 = vmatpush1.msra.mxu0 0.0
    %977 = vmatprep.subr.mxu0 0.0
    %978 = vmatpush1.msra.mxu0 0.0
    %979 = vmatprep.subr.mxu0 0.0
    %980 = vmatpush1.msra.mxu0 0.0
    %981 = vmatprep.subr.mxu0 0.0
    %982 = vmatpush1.msra.mxu0 0.0
    %983 = vmatprep.subr.mxu0 0.0
    %984 = vmatpush1.msra.mxu0 0.0
    %985 = vmatprep.subr.mxu0 0.0
    %986 = vmatpush1.msra.mxu0 0.0
    %987 = vmatprep.subr.mxu0 0.0
    %988 = vmatpush1.msra.mxu0 0.0
    %989 = vmatprep.subr.mxu0 0.0
    %990 = vmatpush1.msra.mxu0 0.0
    %991 = vmatprep.subr.mxu0 0.0
    %992 = vmatpush1.msra.mxu0 0.0
    %993 = vmatprep.subr.mxu0 0.0
    %994 = vmatpush1.msra.mxu0 0.0
    %995 = vmatprep.subr.mxu0 0.0
    %996 = vmatpush1.msra.mxu0 0.0
    %997 = vmatprep.subr.mxu0 0.0
    %998 = vmatpush1.msra.mxu0 0.0
    %999 = vmatprep.subr.mxu0 0.0
    %1000 = vmatpush1.msra.mxu0 0.0
    %1001 = vmatprep.subr.mxu0 0.0
    %1002 = vmatpush1.msra.mxu0 0.0
    %1003 = vmatprep.subr.mxu0 0.0
    %1004 = vmatpush1.msra.mxu0 0.0
    %1005 = vmatprep.subr.mxu0 0.0
    %1006 = vmatpush1.msra.mxu0 0.0
    %1007 = vmatprep.subr.mxu0 0.0
    %1008 = vmatpush1.msra.mxu0 0.0
    %1009 = vmatprep.subr.mxu0 0.0
    %1010 = vmatpush1.msra.mxu0 0.0
    %1011 = vmatprep.mubr.f32.mxu0 0.0
    %1012 = vmatmul.mubr.f32.gmra.mrb[0].mxu0 %v168
    %v1013 = vpop.f32.mrb[0].mxu0
    %v1014 = vadd.f32 0.0, %v1013
    %v1015 = vpop.f32.mrb[0].mxu0
    %1016 = vmatprep.mubr.f32.mxu0 0.0
    %1017 = vmatmul.mubr.f32.gmra.mrb[0].mxu0 %v171
    %v1018 = vpop.f32.mrb[0].mxu0
    %v1019 = vadd.f32 0.0, %v1018
    %v1020 = vpop.f32.mrb[0].mxu0
    %1021 = vmatprep.mubr.f32.mxu0 0.0
    %1022 = vmatmul.mubr.f32.gmra.mrb[0].mxu0 %v174
    %v1023 = vpop.f32.mrb[0].mxu0
    %v1024 = vadd.f32 0.0, %v1023
    %v1025 = vpop.f32.mrb[0].mxu0
    %1026 = vmatprep.mubr.f32.mxu0 0.0
    %1027 = vmatmul.mubr.f32.gmra.mrb[0].mxu0 %v177
    %v1028 = vpop.f32.mrb[0].mxu0
    %v1029 = vadd.f32 0.0, %v1028
    %v1030 = vpop.f32.mrb[0].mxu0
    %1031 = vmatprep.mubr.f32.mxu0 0.0
    %1032 = vmatmul.mubr.f32.gmra.mrb[0].mxu0 %v180
    %v1033 = vpop.f32.mrb[0].mxu0
    %v1034 = vadd.f32 0.0, %v1033
    %v1035 = vpop.f32.mrb[0].mxu0
    %1036 = vmatprep.mubr.f32.mxu0 0.0
    %1037 = vmatmul.mubr.f32.gmra.mrb[0].mxu0 %v183
    %v1038 = vpop.f32.mrb[0].mxu0
    %v1039 = vadd.f32 0.0, %v1038
    %v1040 = vpop.f32.mrb[0].mxu0
    %1041 = vmatprep.mubr.f32.mxu0 0.0
    %1042 = vmatmul.mubr.f32.gmra.mrb[0].mxu0 %v186
    %v1043 = vpop.f32.mrb[0].mxu0
    %v1044 = vadd.f32 0.0, %v1043
    %v1045 = vpop.f32.mrb[0].mxu0
    %1046 = vmatprep.mubr.f32.mxu0 0.0
    %1047 = vmatmul.mubr.f32.gmra.mrb[0].mxu0 %v189
    %v1048 = vpop.f32.mrb[0].mxu0
    %v1049 = vadd.f32 0.0, %v1048
    %v1050 = vpop.f32.mrb[0].mxu0
    %1051 = vdwg.mxu0
    %1052 = vmatprep.subr.mxu0 0.0
    %1053 = vmatpush1.msra.mxu0 %v938
    %1054 = vmatprep.subr.mxu0 0.0
    %1055 = vmatpush1.msra.mxu0 %v939
    %1056 = vmatprep.subr.mxu0 0.0
    %1057 = vmatpush1.msra.mxu0 %v940
    %1058 = vmatprep.subr.mxu0 0.0
    %1059 = vmatpush1.msra.mxu0 %v941
    %1060 = vmatprep.subr.mxu0 0.0
    %1061 = vmatpush1.msra.mxu0 %v942
    %1062 = vmatprep.subr.mxu0 0.0
    %1063 = vmatpush1.msra.mxu0 %v943
    %1064 = vmatprep.subr.mxu0 0.0
    %1065 = vmatpush1.msra.mxu0 %v944
    %1066 = vmatprep.subr.mxu0 0.0
    %1067 = vmatpush1.msra.mxu0 %v945
    %1068 = vmatprep.subr.mxu0 0.0
    %1069 = vmatpush1.msra.mxu0 0.0
    %1070 = vmatprep.subr.mxu0 0.0
    %1071 = vmatpush1.msra.mxu0 0.0
    %1072 = vmatprep.subr.mxu0 0.0
    %1073 = vmatpush1.msra.mxu0 0.0
    %1074 = vmatprep.subr.mxu0 0.0
    %1075 = vmatpush1.msra.mxu0 0.0
    %1076 = vmatprep.subr.mxu0 0.0
    %1077 = vmatpush1.msra.mxu0 0.0
    %1078 = vmatprep.subr.mxu0 0.0
    %1079 = vmatpush1.msra.mxu0 0.0
    %1080 = vmatprep.subr.mxu0 0.0
    %1081 = vmatpush1.msra.mxu0 0.0
    %1082 = vmatprep.subr.mxu0 0.0
    %1083 = vmatpush1.msra.mxu0 0.0
    %1084 = vmatprep.subr.mxu0 0.0
    %1085 = vmatpush1.msra.mxu0 0.0
    %1086 = vmatprep.subr.mxu0 0.0
    %1087 = vmatpush1.msra.mxu0 0.0
    %1088 = vmatprep.subr.mxu0 0.0
    %1089 = vmatpush1.msra.mxu0 0.0
    %1090 = vmatprep.subr.mxu0 0.0
    %1091 = vmatpush1.msra.mxu0 0.0
    %1092 = vmatprep.subr.mxu0 0.0
    %1093 = vmatpush1.msra.mxu0 0.0
    %1094 = vmatprep.subr.mxu0 0.0
    %1095 = vmatpush1.msra.mxu0 0.0
    %1096 = vmatprep.subr.mxu0 0.0
    %1097 = vmatpush1.msra.mxu0 0.0
    %1098 = vmatprep.subr.mxu0 0.0
    %1099 = vmatpush1.msra.mxu0 0.0
    %1100 = vmatprep.subr.mxu0 0.0
    %1101 = vmatpush1.msra.mxu0 0.0
    %1102 = vmatprep.subr.mxu0 0.0
    %1103 = vmatpush1.msra.mxu0 0.0
    %1104 = vmatprep.subr.mxu0 0.0
    %1105 = vmatpush1.msra.mxu0 0.0
    %1106 = vmatprep.subr.mxu0 0.0
    %1107 = vmatpush1.msra.mxu0 0.0
    %1108 = vmatprep.subr.mxu0 0.0
    %1109 = vmatpush1.msra.mxu0 0.0
    %1110 = vmatprep.subr.mxu0 0.0
    %1111 = vmatpush1.msra.mxu0 0.0
    %1112 = vmatprep.subr.mxu0 0.0
    %1113 = vmatpush1.msra.mxu0 0.0
    %1114 = vmatprep.subr.mxu0 0.0
    %1115 = vmatpush1.msra.mxu0 0.0
    %1116 = vmatprep.mubr.f32.mxu0 0.0
    %1117 = vmatmul.mubr.f32.gmra.mrb[0].mxu0 %v297
    %v1118 = vpop.f32.mrb[0].mxu0
    %v1119 = vadd.f32 0.0, %v1118
    %v1120 = vpop.f32.mrb[0].mxu0
    %1121 = vmatprep.mubr.f32.mxu0 0.0
    %1122 = vmatmul.mubr.f32.gmra.mrb[0].mxu0 %v300
    %v1123 = vpop.f32.mrb[0].mxu0
    %v1124 = vadd.f32 0.0, %v1123
    %v1125 = vpop.f32.mrb[0].mxu0
    %1126 = vmatprep.mubr.f32.mxu0 0.0
    %1127 = vmatmul.mubr.f32.gmra.mrb[0].mxu0 %v303
    %v1128 = vpop.f32.mrb[0].mxu0
    %v1129 = vadd.f32 0.0, %v1128
    %v1130 = vpop.f32.mrb[0].mxu0
    %1131 = vmatprep.mubr.f32.mxu0 0.0
    %1132 = vmatmul.mubr.f32.gmra.mrb[0].mxu0 %v306
    %v1133 = vpop.f32.mrb[0].mxu0
    %v1134 = vadd.f32 0.0, %v1133
    %v1135 = vpop.f32.mrb[0].mxu0
    %1136 = vmatprep.mubr.f32.mxu0 0.0
    %1137 = vmatmul.mubr.f32.gmra.mrb[0].mxu0 %v309
    %v1138 = vpop.f32.mrb[0].mxu0
    %v1139 = vadd.f32 0.0, %v1138
    %v1140 = vpop.f32.mrb[0].mxu0
    %1141 = vmatprep.mubr.f32.mxu0 0.0
    %1142 = vmatmul.mubr.f32.gmra.mrb[0].mxu0 %v312
    %v1143 = vpop.f32.mrb[0].mxu0
    %v1144 = vadd.f32 0.0, %v1143
    %v1145 = vpop.f32.mrb[0].mxu0
    %1146 = vmatprep.mubr.f32.mxu0 0.0
    %1147 = vmatmul.mubr.f32.gmra.mrb[0].mxu0 %v315
    %v1148 = vpop.f32.mrb[0].mxu0
    %v1149 = vadd.f32 0.0, %v1148
    %v1150 = vpop.f32.mrb[0].mxu0
    %1151 = vmatprep.mubr.f32.mxu0 0.0
    %1152 = vmatmul.mubr.f32.gmra.mrb[0].mxu0 %v318
    %v1153 = vpop.f32.mrb[0].mxu0
    %v1154 = vadd.f32 0.0, %v1153
    %v1155 = vpop.f32.mrb[0].mxu0
    %1156 = vdwg.mxu0
    %v1157 = vld [vmem:[%s5] sm:$0xff]
    %v1158 = vld [vmem:[%s5 + $0x8] sm:$0xff]
    %v1159 = vld [vmem:[%s5 + $0x10] sm:$0xff]
    %v1160 = vld [vmem:[%s5 + $0x18] sm:$0xff]
    %v1161 = vld [vmem:[%s5 + $0x20] sm:$0xff]
    %v1162 = vld [vmem:[%s5 + $0x28] sm:$0xff]
    %v1163 = vld [vmem:[%s5 + $0x30] sm:$0xff]
    %v1164 = vld [vmem:[%s5 + $0x38] sm:$0xff]
    %v1165 = vld [vmem:[%s5 + $0x40] sm:$0xff]
    %v1166 = vld [vmem:[%s5 + $0x48] sm:$0xff]
    %v1167 = vld [vmem:[%s5 + $0x50] sm:$0xff]
    %v1168 = vld [vmem:[%s5 + $0x58] sm:$0xff]
    %v1169 = vld [vmem:[%s5 + $0x60] sm:$0xff]
    %v1170 = vld [vmem:[%s5 + $0x68] sm:$0xff]
    %v1171 = vld [vmem:[%s5 + $0x70] sm:$0xff]
    %v1172 = vld [vmem:[%s5 + $0x78] sm:$0xff]
    %v1173 = vld [vmem:[%s5 + $0x80] sm:$0xff]
    %v1174 = vld [vmem:[%s5 + $0x88] sm:$0xff]
    %v1175 = vld [vmem:[%s5 + $0x90] sm:$0xff]
    %v1176 = vld [vmem:[%s5 + $0x98] sm:$0xff]
    %v1177 = vld [vmem:[%s5 + $0xa0] sm:$0xff]
    %v1178 = vld [vmem:[%s5 + $0xa8] sm:$0xff]
    %v1179 = vld [vmem:[%s5 + $0xb0] sm:$0xff]
    %v1180 = vld [vmem:[%s5 + $0xb8] sm:$0xff]
    %v1181 = vld [vmem:[%s5 + $0xc0] sm:$0xff]
    %v1182 = vld [vmem:[%s5 + $0xc8] sm:$0xff]
    %v1183 = vld [vmem:[%s5 + $0xd0] sm:$0xff]
    %v1184 = vld [vmem:[%s5 + $0xd8] sm:$0xff]
    %v1185 = vld [vmem:[%s5 + $0xe0] sm:$0xff]
    %v1186 = vld [vmem:[%s5 + $0xe8] sm:$0xff]
    %s1187 = scalar_lea.vmem %s5, 240
    %v1188 = vld [vmem:[%s1187] sm:$0xff]
    %v1189 = vld [vmem:[%s1187 + $0x8] sm:$0xff]
    %v1190 = vld [vmem:[%s1187 + $0x10] sm:$0xff]
    %v1191 = vld [vmem:[%s1187 + $0x18] sm:$0xff]
    %v1192 = vld [vmem:[%s1187 + $0x20] sm:$0xff]
    %v1193 = vld [vmem:[%s1187 + $0x28] sm:$0xff]
    %v1194 = vld [vmem:[%s1187 + $0x30] sm:$0xff]
    %v1195 = vld [vmem:[%s1187 + $0x38] sm:$0xff]
    %v1196 = vld [vmem:[%s1187 + $0x40] sm:$0xff]
    %v1197 = vld [vmem:[%s1187 + $0x48] sm:$0xff]
    %v1198 = vld [vmem:[%s1187 + $0x50] sm:$0xff]
    %v1199 = vld [vmem:[%s1187 + $0x58] sm:$0xff]
    %v1200 = vld [vmem:[%s1187 + $0x60] sm:$0xff]
    %v1201 = vld [vmem:[%s1187 + $0x68] sm:$0xff]
    %v1202 = vld [vmem:[%s1187 + $0x70] sm:$0xff]
    %v1203 = vld [vmem:[%s1187 + $0x78] sm:$0xff]
    %v1204 = vld [vmem:[%s1187 + $0x80] sm:$0xff]
    %v1205 = vld [vmem:[%s1187 + $0x88] sm:$0xff]
    %v1206 = vld [vmem:[%s1187 + $0x90] sm:$0xff]
    %v1207 = vld [vmem:[%s1187 + $0x98] sm:$0xff]
    %v1208 = vld [vmem:[%s1187 + $0xa0] sm:$0xff]
    %v1209 = vld [vmem:[%s1187 + $0xa8] sm:$0xff]
    %v1210 = vld [vmem:[%s1187 + $0xb0] sm:$0xff]
    %v1211 = vld [vmem:[%s1187 + $0xb8] sm:$0xff]
    %v1212 = vld [vmem:[%s1187 + $0xc0] sm:$0xff]
    %v1213 = vld [vmem:[%s1187 + $0xc8] sm:$0xff]
    %v1214 = vld [vmem:[%s1187 + $0xd0] sm:$0xff]
    %v1215 = vld [vmem:[%s1187 + $0xd8] sm:$0xff]
    %v1216 = vld [vmem:[%s1187 + $0xe0] sm:$0xff]
    %v1217 = vld [vmem:[%s1187 + $0xe8] sm:$0xff]
    %vm1218 = vcmask 982016
    %v1220 = vsel %vm1218, %v938, 0
    %v1223 = vsel %vm1218, %v939, 0
    %v1226 = vsel %vm1218, %v940, 0
    %v1229 = vsel %vm1218, %v941, 0
    %v1232 = vsel %vm1218, %v942, 0
    %v1235 = vsel %vm1218, %v943, 0
    %v1238 = vsel %vm1218, %v944, 0
    %v1241 = vsel %vm1218, %v945, 0
    %1243 = vmatprep.subr.mxu0 %v1189
    %1244 = vmatpush1.msra.mxu0 %v1188
    %1245 = vmatprep.subr.mxu0 %v1191
    %1246 = vmatpush1.msra.mxu0 %v1190
    %1247 = vmatprep.subr.mxu0 %v1193
    %1248 = vmatpush1.msra.mxu0 %v1192
    %1249 = vmatprep.subr.mxu0 %v1195
    %1250 = vmatpush1.msra.mxu0 %v1194
    %1251 = vmatprep.subr.mxu0 %v1197
    %1252 = vmatpush1.msra.mxu0 %v1196
    %1253 = vmatprep.subr.mxu0 %v1199
    %1254 = vmatpush1.msra.mxu0 %v1198
    %1255 = vmatprep.subr.mxu0 %v1201
    %1256 = vmatpush1.msra.mxu0 %v1200
    %1257 = vmatprep.subr.mxu0 %v1203
    %1258 = vmatpush1.msra.mxu0 %v1202
    %1259 = vmatprep.subr.mxu0 %v1205
    %1260 = vmatpush1.msra.mxu0 %v1204
    %1261 = vmatprep.subr.mxu0 %v1207
    %1262 = vmatpush1.msra.mxu0 %v1206
    %1263 = vmatprep.subr.mxu0 %v1209
    %1264 = vmatpush1.msra.mxu0 %v1208
    %1265 = vmatprep.subr.mxu0 %v1211
    %1266 = vmatpush1.msra.mxu0 %v1210
    %1267 = vmatprep.subr.mxu0 %v1213
    %1268 = vmatpush1.msra.mxu0 %v1212
    %1269 = vmatprep.subr.mxu0 %v1215
    %1270 = vmatpush1.msra.mxu0 %v1214
    %1271 = vmatprep.subr.mxu0 %v1217
    %1272 = vmatpush1.msra.mxu0 %v1216
    %1273 = vmatprep.subr.mxu0 0.0
    %1274 = vmatpush1.msra.mxu0 0.0
    %1275 = vmatprep.subr.mxu0 0.0
    %1276 = vmatpush1.msra.mxu0 0.0
    %1277 = vmatprep.subr.mxu0 0.0
    %1278 = vmatpush1.msra.mxu0 0.0
    %1279 = vmatprep.subr.mxu0 0.0
    %1280 = vmatpush1.msra.mxu0 0.0
    %1281 = vmatprep.subr.mxu0 0.0
    %1282 = vmatpush1.msra.mxu0 0.0
    %1283 = vmatprep.subr.mxu0 0.0
    %1284 = vmatpush1.msra.mxu0 0.0
    %1285 = vmatprep.subr.mxu0 0.0
    %1286 = vmatpush1.msra.mxu0 0.0
    %1287 = vmatprep.subr.mxu0 0.0
    %1288 = vmatpush1.msra.mxu0 0.0
    %1289 = vmatprep.subr.mxu0 0.0
    %1290 = vmatpush1.msra.mxu0 0.0
    %1291 = vmatprep.subr.mxu0 0.0
    %1292 = vmatpush1.msra.mxu0 0.0
    %1293 = vmatprep.subr.mxu0 0.0
    %1294 = vmatpush1.msra.mxu0 0.0
    %1295 = vmatprep.subr.mxu0 0.0
    %1296 = vmatpush1.msra.mxu0 0.0
    %1297 = vmatprep.subr.mxu0 0.0
    %1298 = vmatpush1.msra.mxu0 0.0
    %1299 = vmatprep.subr.mxu0 0.0
    %1300 = vmatpush1.msra.mxu0 0.0
    %1301 = vmatprep.subr.mxu0 0.0
    %1302 = vmatpush1.msra.mxu0 0.0
    %1303 = vmatprep.subr.mxu0 0.0
    %1304 = vmatpush1.msra.mxu0 0.0
    %1305 = vmatprep.subr.mxu0 0.0
    %1306 = vmatpush1.msra.mxu0 0.0
    %1307 = vmatprep.mubr.f32.mxu0 0.0
    %1308 = vmatmul.mubr.f32.gmra.mrb[0].mxu0 %v1220
    %v1309 = vpop.f32.mrb[0].mxu0
    %v1310 = vadd.f32 0.0, %v1309
    %v1311 = vpop.f32.mrb[0].mxu0
    %v1312 = vadd.f32 0.0, %v1311
    %1313 = vmatprep.mubr.f32.mxu0 0.0
    %1314 = vmatmul.mubr.f32.gmra.mrb[0].mxu0 %v1223
    %v1315 = vpop.f32.mrb[0].mxu0
    %v1316 = vadd.f32 0.0, %v1315
    %v1317 = vpop.f32.mrb[0].mxu0
    %v1318 = vadd.f32 0.0, %v1317
    %1319 = vmatprep.mubr.f32.mxu0 0.0
    %1320 = vmatmul.mubr.f32.gmra.mrb[0].mxu0 %v1226
    %v1321 = vpop.f32.mrb[0].mxu0
    %v1322 = vadd.f32 0.0, %v1321
    %v1323 = vpop.f32.mrb[0].mxu0
    %v1324 = vadd.f32 0.0, %v1323
    %1325 = vmatprep.mubr.f32.mxu0 0.0
    %1326 = vmatmul.mubr.f32.gmra.mrb[0].mxu0 %v1229
    %v1327 = vpop.f32.mrb[0].mxu0
    %v1328 = vadd.f32 0.0, %v1327
    %v1329 = vpop.f32.mrb[0].mxu0
    %v1330 = vadd.f32 0.0, %v1329
    %1331 = vmatprep.mubr.f32.mxu0 0.0
    %1332 = vmatmul.mubr.f32.gmra.mrb[0].mxu0 %v1232
    %v1333 = vpop.f32.mrb[0].mxu0
    %v1334 = vadd.f32 0.0, %v1333
    %v1335 = vpop.f32.mrb[0].mxu0
    %v1336 = vadd.f32 0.0, %v1335
    %1337 = vmatprep.mubr.f32.mxu0 0.0
    %1338 = vmatmul.mubr.f32.gmra.mrb[0].mxu0 %v1235
    %v1339 = vpop.f32.mrb[0].mxu0
    %v1340 = vadd.f32 0.0, %v1339
    %v1341 = vpop.f32.mrb[0].mxu0
    %v1342 = vadd.f32 0.0, %v1341
    %1343 = vmatprep.mubr.f32.mxu0 0.0
    %1344 = vmatmul.mubr.f32.gmra.mrb[0].mxu0 %v1238
    %v1345 = vpop.f32.mrb[0].mxu0
    %v1346 = vadd.f32 0.0, %v1345
    %v1347 = vpop.f32.mrb[0].mxu0
    %v1348 = vadd.f32 0.0, %v1347
    %1349 = vmatprep.mubr.f32.mxu0 0.0
    %1350 = vmatmul.mubr.f32.gmra.mrb[0].mxu0 %v1241
    %v1351 = vpop.f32.mrb[0].mxu0
    %v1352 = vadd.f32 0.0, %v1351
    %v1353 = vpop.f32.mrb[0].mxu0
    %v1354 = vadd.f32 0.0, %v1353
    %1355 = vdwg.mxu0
    %v1357 = vsel %vm1218, %v1014, 0
    %v1360 = vsel %vm1218, %v1019, 0
    %v1363 = vsel %vm1218, %v1024, 0
    %v1366 = vsel %vm1218, %v1029, 0
    %v1369 = vsel %vm1218, %v1034, 0
    %v1372 = vsel %vm1218, %v1039, 0
    %v1375 = vsel %vm1218, %v1044, 0
    %v1378 = vsel %vm1218, %v1049, 0
    %1380 = vmatprep.subr.mxu0 %v1158
    %1381 = vmatpush1.msra.mxu0 %v1157
    %1382 = vmatprep.subr.mxu0 %v1160
    %1383 = vmatpush1.msra.mxu0 %v1159
    %1384 = vmatprep.subr.mxu0 %v1162
    %1385 = vmatpush1.msra.mxu0 %v1161
    %1386 = vmatprep.subr.mxu0 %v1164
    %1387 = vmatpush1.msra.mxu0 %v1163
    %1388 = vmatprep.subr.mxu0 %v1166
    %1389 = vmatpush1.msra.mxu0 %v1165
    %1390 = vmatprep.subr.mxu0 %v1168
    %1391 = vmatpush1.msra.mxu0 %v1167
    %1392 = vmatprep.subr.mxu0 %v1170
    %1393 = vmatpush1.msra.mxu0 %v1169
    %1394 = vmatprep.subr.mxu0 %v1172
    %1395 = vmatpush1.msra.mxu0 %v1171
    %1396 = vmatprep.subr.mxu0 %v1174
    %1397 = vmatpush1.msra.mxu0 %v1173
    %1398 = vmatprep.subr.mxu0 %v1176
    %1399 = vmatpush1.msra.mxu0 %v1175
    %1400 = vmatprep.subr.mxu0 %v1178
    %1401 = vmatpush1.msra.mxu0 %v1177
    %1402 = vmatprep.subr.mxu0 %v1180
    %1403 = vmatpush1.msra.mxu0 %v1179
    %1404 = vmatprep.subr.mxu0 %v1182
    %1405 = vmatpush1.msra.mxu0 %v1181
    %1406 = vmatprep.subr.mxu0 %v1184
    %1407 = vmatpush1.msra.mxu0 %v1183
    %1408 = vmatprep.subr.mxu0 %v1186
    %1409 = vmatpush1.msra.mxu0 %v1185
    %1410 = vmatprep.subr.mxu0 0.0
    %1411 = vmatpush1.msra.mxu0 0.0
    %1412 = vmatprep.subr.mxu0 0.0
    %1413 = vmatpush1.msra.mxu0 0.0
    %1414 = vmatprep.subr.mxu0 0.0
    %1415 = vmatpush1.msra.mxu0 0.0
    %1416 = vmatprep.subr.mxu0 0.0
    %1417 = vmatpush1.msra.mxu0 0.0
    %1418 = vmatprep.subr.mxu0 0.0
    %1419 = vmatpush1.msra.mxu0 0.0
    %1420 = vmatprep.subr.mxu0 0.0
    %1421 = vmatpush1.msra.mxu0 0.0
    %1422 = vmatprep.subr.mxu0 0.0
    %1423 = vmatpush1.msra.mxu0 0.0
    %1424 = vmatprep.subr.mxu0 0.0
    %1425 = vmatpush1.msra.mxu0 0.0
    %1426 = vmatprep.subr.mxu0 0.0
    %1427 = vmatpush1.msra.mxu0 0.0
    %1428 = vmatprep.subr.mxu0 0.0
    %1429 = vmatpush1.msra.mxu0 0.0
    %1430 = vmatprep.subr.mxu0 0.0
    %1431 = vmatpush1.msra.mxu0 0.0
    %1432 = vmatprep.subr.mxu0 0.0
    %1433 = vmatpush1.msra.mxu0 0.0
    %1434 = vmatprep.subr.mxu0 0.0
    %1435 = vmatpush1.msra.mxu0 0.0
    %1436 = vmatprep.subr.mxu0 0.0
    %1437 = vmatpush1.msra.mxu0 0.0
    %1438 = vmatprep.subr.mxu0 0.0
    %1439 = vmatpush1.msra.mxu0 0.0
    %1440 = vmatprep.subr.mxu0 0.0
    %1441 = vmatpush1.msra.mxu0 0.0
    %1442 = vmatprep.subr.mxu0 0.0
    %1443 = vmatpush1.msra.mxu0 0.0
    %1444 = vmatprep.mubr.f32.mxu0 0.0
    %1445 = vmatmul.mubr.f32.gmra.mrb[0].mxu0 %v1357
    %v1446 = vpop.f32.mrb[0].mxu0
    %v1447 = vadd.f32 %v1310, %v1446
    %v1448 = vpop.f32.mrb[0].mxu0
    %v1449 = vadd.f32 %v1312, %v1448
    %1450 = vmatprep.mubr.f32.mxu0 0.0
    %1451 = vmatmul.mubr.f32.gmra.mrb[0].mxu0 %v1360
    %v1452 = vpop.f32.mrb[0].mxu0
    %v1453 = vadd.f32 %v1316, %v1452
    %v1454 = vpop.f32.mrb[0].mxu0
    %v1455 = vadd.f32 %v1318, %v1454
    %1456 = vmatprep.mubr.f32.mxu0 0.0
    %1457 = vmatmul.mubr.f32.gmra.mrb[0].mxu0 %v1363
    %v1458 = vpop.f32.mrb[0].mxu0
    %v1459 = vadd.f32 %v1322, %v1458
    %v1460 = vpop.f32.mrb[0].mxu0
    %v1461 = vadd.f32 %v1324, %v1460
    %1462 = vmatprep.mubr.f32.mxu0 0.0
    %1463 = vmatmul.mubr.f32.gmra.mrb[0].mxu0 %v1366
    %v1464 = vpop.f32.mrb[0].mxu0
    %v1465 = vadd.f32 %v1328, %v1464
    %v1466 = vpop.f32.mrb[0].mxu0
    %v1467 = vadd.f32 %v1330, %v1466
    %1468 = vmatprep.mubr.f32.mxu0 0.0
    %1469 = vmatmul.mubr.f32.gmra.mrb[0].mxu0 %v1369
    %v1470 = vpop.f32.mrb[0].mxu0
    %v1471 = vadd.f32 %v1334, %v1470
    %v1472 = vpop.f32.mrb[0].mxu0
    %v1473 = vadd.f32 %v1336, %v1472
    %1474 = vmatprep.mubr.f32.mxu0 0.0
    %1475 = vmatmul.mubr.f32.gmra.mrb[0].mxu0 %v1372
    %v1476 = vpop.f32.mrb[0].mxu0
    %v1477 = vadd.f32 %v1340, %v1476
    %v1478 = vpop.f32.mrb[0].mxu0
    %v1479 = vadd.f32 %v1342, %v1478
    %1480 = vmatprep.mubr.f32.mxu0 0.0
    %1481 = vmatmul.mubr.f32.gmra.mrb[0].mxu0 %v1375
    %v1482 = vpop.f32.mrb[0].mxu0
    %v1483 = vadd.f32 %v1346, %v1482
    %v1484 = vpop.f32.mrb[0].mxu0
    %v1485 = vadd.f32 %v1348, %v1484
    %1486 = vmatprep.mubr.f32.mxu0 0.0
    %1487 = vmatmul.mubr.f32.gmra.mrb[0].mxu0 %v1378
    %v1488 = vpop.f32.mrb[0].mxu0
    %v1489 = vadd.f32 %v1352, %v1488
    %v1490 = vpop.f32.mrb[0].mxu0
    %v1491 = vadd.f32 %v1354, %v1490
    %1492 = vdwg.mxu0
    %s1493 = scalar_lea.vmem %s5, 480
    %v1494 = vld [vmem:[%s1493] sm:$0xff]
    %v1495 = vld [vmem:[%s1493 + $0x8] sm:$0xff]
    %v1496 = vld [vmem:[%s1493 + $0x10] sm:$0xff]
    %v1497 = vld [vmem:[%s1493 + $0x18] sm:$0xff]
    %v1498 = vld [vmem:[%s1493 + $0x20] sm:$0xff]
    %v1499 = vld [vmem:[%s1493 + $0x28] sm:$0xff]
    %v1500 = vld [vmem:[%s1493 + $0x30] sm:$0xff]
    %v1501 = vld [vmem:[%s1493 + $0x38] sm:$0xff]
    %v1502 = vld [vmem:[%s1493 + $0x40] sm:$0xff]
    %v1503 = vld [vmem:[%s1493 + $0x48] sm:$0xff]
    %v1504 = vld [vmem:[%s1493 + $0x50] sm:$0xff]
    %v1505 = vld [vmem:[%s1493 + $0x58] sm:$0xff]
    %v1506 = vld [vmem:[%s1493 + $0x60] sm:$0xff]
    %v1507 = vld [vmem:[%s1493 + $0x68] sm:$0xff]
    %v1508 = vld [vmem:[%s1493 + $0x70] sm:$0xff]
    %v1509 = vld [vmem:[%s1493 + $0x78] sm:$0xff]
    %v1510 = vld [vmem:[%s1493 + $0x80] sm:$0xff]
    %v1511 = vld [vmem:[%s1493 + $0x88] sm:$0xff]
    %v1512 = vld [vmem:[%s1493 + $0x90] sm:$0xff]
    %v1513 = vld [vmem:[%s1493 + $0x98] sm:$0xff]
    %v1514 = vld [vmem:[%s1493 + $0xa0] sm:$0xff]
    %v1515 = vld [vmem:[%s1493 + $0xa8] sm:$0xff]
    %v1516 = vld [vmem:[%s1493 + $0xb0] sm:$0xff]
    %v1517 = vld [vmem:[%s1493 + $0xb8] sm:$0xff]
    %v1518 = vld [vmem:[%s1493 + $0xc0] sm:$0xff]
    %v1519 = vld [vmem:[%s1493 + $0xc8] sm:$0xff]
    %v1520 = vld [vmem:[%s1493 + $0xd0] sm:$0xff]
    %v1521 = vld [vmem:[%s1493 + $0xd8] sm:$0xff]
    %v1522 = vld [vmem:[%s1493 + $0xe0] sm:$0xff]
    %v1523 = vld [vmem:[%s1493 + $0xe8] sm:$0xff]
    %v1525 = vsel %vm1218, %v1119, 0
    %v1528 = vsel %vm1218, %v1124, 0
    %v1531 = vsel %vm1218, %v1129, 0
    %v1534 = vsel %vm1218, %v1134, 0
    %v1537 = vsel %vm1218, %v1139, 0
    %v1540 = vsel %vm1218, %v1144, 0
    %v1543 = vsel %vm1218, %v1149, 0
    %v1546 = vsel %vm1218, %v1154, 0
    %1548 = vmatprep.subr.mxu0 %v1495
    %1549 = vmatpush1.msra.mxu0 %v1494
    %1550 = vmatprep.subr.mxu0 %v1497
    %1551 = vmatpush1.msra.mxu0 %v1496
    %1552 = vmatprep.subr.mxu0 %v1499
    %1553 = vmatpush1.msra.mxu0 %v1498
    %1554 = vmatprep.subr.mxu0 %v1501
    %1555 = vmatpush1.msra.mxu0 %v1500
    %1556 = vmatprep.subr.mxu0 %v1503
    %1557 = vmatpush1.msra.mxu0 %v1502
    %1558 = vmatprep.subr.mxu0 %v1505
    %1559 = vmatpush1.msra.mxu0 %v1504
    %1560 = vmatprep.subr.mxu0 %v1507
    %1561 = vmatpush1.msra.mxu0 %v1506
    %1562 = vmatprep.subr.mxu0 %v1509
    %1563 = vmatpush1.msra.mxu0 %v1508
    %1564 = vmatprep.subr.mxu0 %v1511
    %1565 = vmatpush1.msra.mxu0 %v1510
    %1566 = vmatprep.subr.mxu0 %v1513
    %1567 = vmatpush1.msra.mxu0 %v1512
    %1568 = vmatprep.subr.mxu0 %v1515
    %1569 = vmatpush1.msra.mxu0 %v1514
    %1570 = vmatprep.subr.mxu0 %v1517
    %1571 = vmatpush1.msra.mxu0 %v1516
    %1572 = vmatprep.subr.mxu0 %v1519
    %1573 = vmatpush1.msra.mxu0 %v1518
    %1574 = vmatprep.subr.mxu0 %v1521
    %1575 = vmatpush1.msra.mxu0 %v1520
    %1576 = vmatprep.subr.mxu0 %v1523
    %1577 = vmatpush1.msra.mxu0 %v1522
    %1578 = vmatprep.subr.mxu0 0.0
    %1579 = vmatpush1.msra.mxu0 0.0
    %1580 = vmatprep.subr.mxu0 0.0
    %1581 = vmatpush1.msra.mxu0 0.0
    %1582 = vmatprep.subr.mxu0 0.0
    %1583 = vmatpush1.msra.mxu0 0.0
    %1584 = vmatprep.subr.mxu0 0.0
    %1585 = vmatpush1.msra.mxu0 0.0
    %1586 = vmatprep.subr.mxu0 0.0
    %1587 = vmatpush1.msra.mxu0 0.0
    %1588 = vmatprep.subr.mxu0 0.0
    %1589 = vmatpush1.msra.mxu0 0.0
    %1590 = vmatprep.subr.mxu0 0.0
    %1591 = vmatpush1.msra.mxu0 0.0
    %1592 = vmatprep.subr.mxu0 0.0
    %1593 = vmatpush1.msra.mxu0 0.0
    %1594 = vmatprep.subr.mxu0 0.0
    %1595 = vmatpush1.msra.mxu0 0.0
    %1596 = vmatprep.subr.mxu0 0.0
    %1597 = vmatpush1.msra.mxu0 0.0
    %1598 = vmatprep.subr.mxu0 0.0
    %1599 = vmatpush1.msra.mxu0 0.0
    %1600 = vmatprep.subr.mxu0 0.0
    %1601 = vmatpush1.msra.mxu0 0.0
    %1602 = vmatprep.subr.mxu0 0.0
    %1603 = vmatpush1.msra.mxu0 0.0
    %1604 = vmatprep.subr.mxu0 0.0
    %1605 = vmatpush1.msra.mxu0 0.0
    %1606 = vmatprep.subr.mxu0 0.0
    %1607 = vmatpush1.msra.mxu0 0.0
    %1608 = vmatprep.subr.mxu0 0.0
    %1609 = vmatpush1.msra.mxu0 0.0
    %1610 = vmatprep.subr.mxu0 0.0
    %1611 = vmatpush1.msra.mxu0 0.0
    %1612 = vmatprep.mubr.f32.mxu0 0.0
    %1613 = vmatmul.mubr.f32.gmra.mrb[0].mxu0 %v1525
    %v1614 = vpop.f32.mrb[0].mxu0
    %v1615 = vadd.f32 0.0, %v1614
    %v1616 = vpop.f32.mrb[0].mxu0
    %v1617 = vadd.f32 0.0, %v1616
    %1618 = vmatprep.mubr.f32.mxu0 0.0
    %1619 = vmatmul.mubr.f32.gmra.mrb[0].mxu0 %v1528
    %v1620 = vpop.f32.mrb[0].mxu0
    %v1621 = vadd.f32 0.0, %v1620
    %v1622 = vpop.f32.mrb[0].mxu0
    %v1623 = vadd.f32 0.0, %v1622
    %1624 = vmatprep.mubr.f32.mxu0 0.0
    %1625 = vmatmul.mubr.f32.gmra.mrb[0].mxu0 %v1531
    %v1626 = vpop.f32.mrb[0].mxu0
    %v1627 = vadd.f32 0.0, %v1626
    %v1628 = vpop.f32.mrb[0].mxu0
    %v1629 = vadd.f32 0.0, %v1628
    %1630 = vmatprep.mubr.f32.mxu0 0.0
    %1631 = vmatmul.mubr.f32.gmra.mrb[0].mxu0 %v1534
    %v1632 = vpop.f32.mrb[0].mxu0
    %v1633 = vadd.f32 0.0, %v1632
    %v1634 = vpop.f32.mrb[0].mxu0
    %v1635 = vadd.f32 0.0, %v1634
    %1636 = vmatprep.mubr.f32.mxu0 0.0
    %1637 = vmatmul.mubr.f32.gmra.mrb[0].mxu0 %v1537
    %v1638 = vpop.f32.mrb[0].mxu0
    %v1639 = vadd.f32 0.0, %v1638
    %v1640 = vpop.f32.mrb[0].mxu0
    %v1641 = vadd.f32 0.0, %v1640
    %1642 = vmatprep.mubr.f32.mxu0 0.0
    %1643 = vmatmul.mubr.f32.gmra.mrb[0].mxu0 %v1540
    %v1644 = vpop.f32.mrb[0].mxu0
    %v1645 = vadd.f32 0.0, %v1644
    %v1646 = vpop.f32.mrb[0].mxu0
    %v1647 = vadd.f32 0.0, %v1646
    %1648 = vmatprep.mubr.f32.mxu0 0.0
    %1649 = vmatmul.mubr.f32.gmra.mrb[0].mxu0 %v1543
    %v1650 = vpop.f32.mrb[0].mxu0
    %v1651 = vadd.f32 0.0, %v1650
    %v1652 = vpop.f32.mrb[0].mxu0
    %v1653 = vadd.f32 0.0, %v1652
    %1654 = vmatprep.mubr.f32.mxu0 0.0
    %1655 = vmatmul.mubr.f32.gmra.mrb[0].mxu0 %v1546
    %v1656 = vpop.f32.mrb[0].mxu0
    %v1657 = vadd.f32 0.0, %v1656
    %v1658 = vpop.f32.mrb[0].mxu0
    %v1659 = vadd.f32 0.0, %v1658
    %1660 = vdwg.mxu0
    %v1661 = vadd.f32 %v1447, %v1615
    %v1662 = vadd.f32 %v1449, %v1617
    %v1663 = vadd.f32 %v1453, %v1621
    %v1664 = vadd.f32 %v1455, %v1623
    %v1665 = vadd.f32 %v1459, %v1627
    %v1666 = vadd.f32 %v1461, %v1629
    %v1667 = vadd.f32 %v1465, %v1633
    %v1668 = vadd.f32 %v1467, %v1635
    %v1669 = vadd.f32 %v1471, %v1639
    %v1670 = vadd.f32 %v1473, %v1641
    %v1671 = vadd.f32 %v1477, %v1645
    %v1672 = vadd.f32 %v1479, %v1647
    %v1673 = vadd.f32 %v1483, %v1651
    %v1674 = vadd.f32 %v1485, %v1653
    %v1675 = vadd.f32 %v1489, %v1657
    %v1676 = vadd.f32 %v1491, %v1659
    %v1678 = vlaneseq
    %v1679 = vshrl.u32 %v1678, 7
    %v1680 = vsub.s32 0, %v1679
    %v1681 = vrot.slane %v946, %v1680
    %v1682 = vlaneseq
    %v1683 = vshrl.u32 %v1682, 7
    %v1684 = vsub.s32 1, %v1683
    %v1685 = vrot.slane %v946, %v1684
    %v1688 = vadd.f32 %v1661, %v1681
    %v1689 = vadd.f32 %v1662, %v1685
    %v1690 = vadd.f32 %v1663, %v1681
    %v1691 = vadd.f32 %v1664, %v1685
    %v1692 = vadd.f32 %v1665, %v1681
    %v1693 = vadd.f32 %v1666, %v1685
    %v1694 = vadd.f32 %v1667, %v1681
    %v1695 = vadd.f32 %v1668, %v1685
    %v1696 = vadd.f32 %v1669, %v1681
    %v1697 = vadd.f32 %v1670, %v1685
    %v1698 = vadd.f32 %v1671, %v1681
    %v1699 = vadd.f32 %v1672, %v1685
    %v1700 = vadd.f32 %v1673, %v1681
    %v1701 = vadd.f32 %v1674, %v1685
    %v1702 = vadd.f32 %v1675, %v1681
    %v1703 = vadd.f32 %v1676, %v1685
    %v1704 = vmul.f32 %v1688, %v886
    %v1705 = vmul.f32 %v1689, %v886
    %v1706 = vmul.f32 %v1690, %v891
    %v1707 = vmul.f32 %v1691, %v891
    %v1708 = vmul.f32 %v1692, %v896
    %v1709 = vmul.f32 %v1693, %v896
    %v1710 = vmul.f32 %v1694, %v901
    %v1711 = vmul.f32 %v1695, %v901
    %v1712 = vmul.f32 %v1696, %v906
    %v1713 = vmul.f32 %v1697, %v906
    %v1714 = vmul.f32 %v1698, %v911
    %v1715 = vmul.f32 %v1699, %v911
    %v1716 = vmul.f32 %v1700, %v916
    %v1717 = vmul.f32 %v1701, %v916
    %v1718 = vmul.f32 %v1702, %v921
    %v1719 = vmul.f32 %v1703, %v921
    %v1720 = vld [vmem:[%s15] sm:$0x3]
    %v1722 = vlaneseq
    %v1723 = vshrl.u32 %v1722, 7
    %v1724 = vsub.s32 0, %v1723
    %v1725 = vrot.slane %v1720, %v1724
    %v1726 = vlaneseq
    %v1727 = vshrl.u32 %v1726, 7
    %v1728 = vsub.s32 1, %v1727
    %v1729 = vrot.slane %v1720, %v1728
    %v1732 = vmul.f32 %v1704, %v1725
    %v1733 = vmul.f32 %v1705, %v1729
    %v1734 = vmul.f32 %v1706, %v1725
    %v1735 = vmul.f32 %v1707, %v1729
    %v1736 = vmul.f32 %v1708, %v1725
    %v1737 = vmul.f32 %v1709, %v1729
    %v1738 = vmul.f32 %v1710, %v1725
    %v1739 = vmul.f32 %v1711, %v1729
    %v1740 = vmul.f32 %v1712, %v1725
    %v1741 = vmul.f32 %v1713, %v1729
    %v1742 = vmul.f32 %v1714, %v1725
    %v1743 = vmul.f32 %v1715, %v1729
    %v1744 = vmul.f32 %v1716, %v1725
    %v1745 = vmul.f32 %v1717, %v1729
    %v1746 = vmul.f32 %v1718, %v1725
    %v1747 = vmul.f32 %v1719, %v1729
    %v1748 = vld [vmem:[%s9] sm:$0xff]
    %v1749 = vld [vmem:[%s9 + $0x8] sm:$0xff]
    %v1750 = vld [vmem:[%s9 + $0x10] sm:$0xff]
    %v1751 = vld [vmem:[%s9 + $0x18] sm:$0xff]
    %v1752 = vld [vmem:[%s9 + $0x20] sm:$0xff]
    %v1753 = vld [vmem:[%s9 + $0x28] sm:$0xff]
    %v1754 = vld [vmem:[%s9 + $0x30] sm:$0xff]
    %v1755 = vld [vmem:[%s9 + $0x38] sm:$0xff]
    %v1756 = vld [vmem:[%s9 + $0x40] sm:$0xff]
    %v1757 = vld [vmem:[%s9 + $0x48] sm:$0xff]
    %v1758 = vld [vmem:[%s9 + $0x50] sm:$0xff]
    %v1759 = vld [vmem:[%s9 + $0x58] sm:$0xff]
    %v1760 = vld [vmem:[%s9 + $0x60] sm:$0xff]
    %v1761 = vld [vmem:[%s9 + $0x68] sm:$0xff]
    %v1762 = vld [vmem:[%s9 + $0x70] sm:$0xff]
    %v1763 = vld [vmem:[%s9 + $0x78] sm:$0xff]
    %v1764 = vld [vmem:[%s9 + $0x80] sm:$0xff]
    %v1765 = vld [vmem:[%s9 + $0x88] sm:$0xff]
    %v1766 = vld [vmem:[%s9 + $0x90] sm:$0xff]
    %v1767 = vld [vmem:[%s9 + $0x98] sm:$0xff]
    %v1768 = vld [vmem:[%s9 + $0xa0] sm:$0xff]
    %v1769 = vld [vmem:[%s9 + $0xa8] sm:$0xff]
    %v1770 = vld [vmem:[%s9 + $0xb0] sm:$0xff]
    %v1771 = vld [vmem:[%s9 + $0xb8] sm:$0xff]
    %v1772 = vld [vmem:[%s9 + $0xc0] sm:$0xff]
    %v1773 = vld [vmem:[%s9 + $0xc8] sm:$0xff]
    %v1774 = vld [vmem:[%s9 + $0xd0] sm:$0xff]
    %v1775 = vld [vmem:[%s9 + $0xd8] sm:$0xff]
    %v1776 = vld [vmem:[%s9 + $0xe0] sm:$0xff]
    %v1777 = vld [vmem:[%s9 + $0xe8] sm:$0xff]
    %vm1778 = vcmask 916480
    %v1780 = vsel %vm1778, %v1733, 0
    %v1783 = vsel %vm1778, %v1735, 0
    %v1786 = vsel %vm1778, %v1737, 0
    %v1789 = vsel %vm1778, %v1739, 0
    %v1792 = vsel %vm1778, %v1741, 0
    %v1795 = vsel %vm1778, %v1743, 0
    %v1798 = vsel %vm1778, %v1745, 0
    %v1801 = vsel %vm1778, %v1747, 0
    %1803 = vmatprep.subr.mxu0 0.0
    %1804 = vmatpush1.msra.mxu0 %v1748
    %1805 = vmatprep.subr.mxu0 0.0
    %1806 = vmatpush1.msra.mxu0 %v1749
    %1807 = vmatprep.subr.mxu0 0.0
    %1808 = vmatpush1.msra.mxu0 %v1750
    %1809 = vmatprep.subr.mxu0 0.0
    %1810 = vmatpush1.msra.mxu0 %v1751
    %1811 = vmatprep.subr.mxu0 0.0
    %1812 = vmatpush1.msra.mxu0 %v1752
    %1813 = vmatprep.subr.mxu0 0.0
    %1814 = vmatpush1.msra.mxu0 %v1753
    %1815 = vmatprep.subr.mxu0 0.0
    %1816 = vmatpush1.msra.mxu0 %v1754
    %1817 = vmatprep.subr.mxu0 0.0
    %1818 = vmatpush1.msra.mxu0 %v1755
    %1819 = vmatprep.subr.mxu0 0.0
    %1820 = vmatpush1.msra.mxu0 %v1756
    %1821 = vmatprep.subr.mxu0 0.0
    %1822 = vmatpush1.msra.mxu0 %v1757
    %1823 = vmatprep.subr.mxu0 0.0
    %1824 = vmatpush1.msra.mxu0 %v1758
    %1825 = vmatprep.subr.mxu0 0.0
    %1826 = vmatpush1.msra.mxu0 %v1759
    %1827 = vmatprep.subr.mxu0 0.0
    %1828 = vmatpush1.msra.mxu0 %v1760
    %1829 = vmatprep.subr.mxu0 0.0
    %1830 = vmatpush1.msra.mxu0 %v1761
    %1831 = vmatprep.subr.mxu0 0.0
    %1832 = vmatpush1.msra.mxu0 %v1762
    %1833 = vmatprep.subr.mxu0 0.0
    %1834 = vmatpush1.msra.mxu0 %v1763
    %1835 = vmatprep.subr.mxu0 0.0
    %1836 = vmatpush1.msra.mxu0 %v1764
    %1837 = vmatprep.subr.mxu0 0.0
    %1838 = vmatpush1.msra.mxu0 %v1765
    %1839 = vmatprep.subr.mxu0 0.0
    %1840 = vmatpush1.msra.mxu0 %v1766
    %1841 = vmatprep.subr.mxu0 0.0
    %1842 = vmatpush1.msra.mxu0 %v1767
    %1843 = vmatprep.subr.mxu0 0.0
    %1844 = vmatpush1.msra.mxu0 %v1768
    %1845 = vmatprep.subr.mxu0 0.0
    %1846 = vmatpush1.msra.mxu0 %v1769
    %1847 = vmatprep.subr.mxu0 0.0
    %1848 = vmatpush1.msra.mxu0 %v1770
    %1849 = vmatprep.subr.mxu0 0.0
    %1850 = vmatpush1.msra.mxu0 %v1771
    %1851 = vmatprep.subr.mxu0 0.0
    %1852 = vmatpush1.msra.mxu0 %v1772
    %1853 = vmatprep.subr.mxu0 0.0
    %1854 = vmatpush1.msra.mxu0 %v1773
    %1855 = vmatprep.subr.mxu0 0.0
    %1856 = vmatpush1.msra.mxu0 %v1774
    %1857 = vmatprep.subr.mxu0 0.0
    %1858 = vmatpush1.msra.mxu0 %v1775
    %1859 = vmatprep.subr.mxu0 0.0
    %1860 = vmatpush1.msra.mxu0 %v1776
    %1861 = vmatprep.subr.mxu0 0.0
    %1862 = vmatpush1.msra.mxu0 %v1777
    %1863 = vmatprep.subr.mxu0 0.0
    %1864 = vmatpush1.msra.mxu0 0.0
    %1865 = vmatprep.subr.mxu0 0.0
    %1866 = vmatpush1.msra.mxu0 0.0
    %1867 = vmatprep.mubr.f32.mxu0 %v1780
    %1868 = vmatmul.mubr.f32.gmra.mrb[0].mxu0 %v1732
    %v1869 = vpop.f32.mrb[0].mxu0
    %v1870 = vadd.f32 0.0, %v1869
    %v1871 = vpop.f32.mrb[0].mxu0
    %1872 = vmatprep.mubr.f32.mxu0 %v1783
    %1873 = vmatmul.mubr.f32.gmra.mrb[0].mxu0 %v1734
    %v1874 = vpop.f32.mrb[0].mxu0
    %v1875 = vadd.f32 0.0, %v1874
    %v1876 = vpop.f32.mrb[0].mxu0
    %1877 = vmatprep.mubr.f32.mxu0 %v1786
    %1878 = vmatmul.mubr.f32.gmra.mrb[0].mxu0 %v1736
    %v1879 = vpop.f32.mrb[0].mxu0
    %v1880 = vadd.f32 0.0, %v1879
    %v1881 = vpop.f32.mrb[0].mxu0
    %1882 = vmatprep.mubr.f32.mxu0 %v1789
    %1883 = vmatmul.mubr.f32.gmra.mrb[0].mxu0 %v1738
    %v1884 = vpop.f32.mrb[0].mxu0
    %v1885 = vadd.f32 0.0, %v1884
    %v1886 = vpop.f32.mrb[0].mxu0
    %1887 = vmatprep.mubr.f32.mxu0 %v1792
    %1888 = vmatmul.mubr.f32.gmra.mrb[0].mxu0 %v1740
    %v1889 = vpop.f32.mrb[0].mxu0
    %v1890 = vadd.f32 0.0, %v1889
    %v1891 = vpop.f32.mrb[0].mxu0
    %1892 = vmatprep.mubr.f32.mxu0 %v1795
    %1893 = vmatmul.mubr.f32.gmra.mrb[0].mxu0 %v1742
    %v1894 = vpop.f32.mrb[0].mxu0
    %v1895 = vadd.f32 0.0, %v1894
    %v1896 = vpop.f32.mrb[0].mxu0
    %1897 = vmatprep.mubr.f32.mxu0 %v1798
    %1898 = vmatmul.mubr.f32.gmra.mrb[0].mxu0 %v1744
    %v1899 = vpop.f32.mrb[0].mxu0
    %v1900 = vadd.f32 0.0, %v1899
    %v1901 = vpop.f32.mrb[0].mxu0
    %1902 = vmatprep.mubr.f32.mxu0 %v1801
    %1903 = vmatmul.mubr.f32.gmra.mrb[0].mxu0 %v1746
    %v1904 = vpop.f32.mrb[0].mxu0
    %v1905 = vadd.f32 0.0, %v1904
    %v1906 = vpop.f32.mrb[0].mxu0
    %1907 = vdwg.mxu0
    %v1908 = vmul.f32 %v1732, %v1732
    %v1909 = vmul.f32 %v1733, %v1733
    %v1910 = vmul.f32 %v1734, %v1734
    %v1911 = vmul.f32 %v1735, %v1735
    %v1912 = vmul.f32 %v1736, %v1736
    %v1913 = vmul.f32 %v1737, %v1737
    %v1914 = vmul.f32 %v1738, %v1738
    %v1915 = vmul.f32 %v1739, %v1739
    %v1916 = vmul.f32 %v1740, %v1740
    %v1917 = vmul.f32 %v1741, %v1741
    %v1918 = vmul.f32 %v1742, %v1742
    %v1919 = vmul.f32 %v1743, %v1743
    %v1920 = vmul.f32 %v1744, %v1744
    %v1921 = vmul.f32 %v1745, %v1745
    %v1922 = vmul.f32 %v1746, %v1746
    %v1923 = vmul.f32 %v1747, %v1747
    %v1925 = vsel %vm1778, %v1909, 0
    %v1928 = vsel %vm1778, %v1911, 0
    %v1931 = vsel %vm1778, %v1913, 0
    %v1934 = vsel %vm1778, %v1915, 0
    %v1937 = vsel %vm1778, %v1917, 0
    %v1940 = vsel %vm1778, %v1919, 0
    %v1943 = vsel %vm1778, %v1921, 0
    %v1946 = vsel %vm1778, %v1923, 0
    %1948 = vmatprep.subr.mxu0 0.0
    %1949 = vmatpush1.msra.mxu0 %v1748
    %1950 = vmatprep.subr.mxu0 0.0
    %1951 = vmatpush1.msra.mxu0 %v1749
    %1952 = vmatprep.subr.mxu0 0.0
    %1953 = vmatpush1.msra.mxu0 %v1750
    %1954 = vmatprep.subr.mxu0 0.0
    %1955 = vmatpush1.msra.mxu0 %v1751
    %1956 = vmatprep.subr.mxu0 0.0
    %1957 = vmatpush1.msra.mxu0 %v1752
    %1958 = vmatprep.subr.mxu0 0.0
    %1959 = vmatpush1.msra.mxu0 %v1753
    %1960 = vmatprep.subr.mxu0 0.0
    %1961 = vmatpush1.msra.mxu0 %v1754
    %1962 = vmatprep.subr.mxu0 0.0
    %1963 = vmatpush1.msra.mxu0 %v1755
    %1964 = vmatprep.subr.mxu0 0.0
    %1965 = vmatpush1.msra.mxu0 %v1756
    %1966 = vmatprep.subr.mxu0 0.0
    %1967 = vmatpush1.msra.mxu0 %v1757
    %1968 = vmatprep.subr.mxu0 0.0
    %1969 = vmatpush1.msra.mxu0 %v1758
    %1970 = vmatprep.subr.mxu0 0.0
    %1971 = vmatpush1.msra.mxu0 %v1759
    %1972 = vmatprep.subr.mxu0 0.0
    %1973 = vmatpush1.msra.mxu0 %v1760
    %1974 = vmatprep.subr.mxu0 0.0
    %1975 = vmatpush1.msra.mxu0 %v1761
    %1976 = vmatprep.subr.mxu0 0.0
    %1977 = vmatpush1.msra.mxu0 %v1762
    %1978 = vmatprep.subr.mxu0 0.0
    %1979 = vmatpush1.msra.mxu0 %v1763
    %1980 = vmatprep.subr.mxu0 0.0
    %1981 = vmatpush1.msra.mxu0 %v1764
    %1982 = vmatprep.subr.mxu0 0.0
    %1983 = vmatpush1.msra.mxu0 %v1765
    %1984 = vmatprep.subr.mxu0 0.0
    %1985 = vmatpush1.msra.mxu0 %v1766
    %1986 = vmatprep.subr.mxu0 0.0
    %1987 = vmatpush1.msra.mxu0 %v1767
    %1988 = vmatprep.subr.mxu0 0.0
    %1989 = vmatpush1.msra.mxu0 %v1768
    %1990 = vmatprep.subr.mxu0 0.0
    %1991 = vmatpush1.msra.mxu0 %v1769
    %1992 = vmatprep.subr.mxu0 0.0
    %1993 = vmatpush1.msra.mxu0 %v1770
    %1994 = vmatprep.subr.mxu0 0.0
    %1995 = vmatpush1.msra.mxu0 %v1771
    %1996 = vmatprep.subr.mxu0 0.0
    %1997 = vmatpush1.msra.mxu0 %v1772
    %1998 = vmatprep.subr.mxu0 0.0
    %1999 = vmatpush1.msra.mxu0 %v1773
    %2000 = vmatprep.subr.mxu0 0.0
    %2001 = vmatpush1.msra.mxu0 %v1774
    %2002 = vmatprep.subr.mxu0 0.0
    %2003 = vmatpush1.msra.mxu0 %v1775
    %2004 = vmatprep.subr.mxu0 0.0
    %2005 = vmatpush1.msra.mxu0 %v1776
    %2006 = vmatprep.subr.mxu0 0.0
    %2007 = vmatpush1.msra.mxu0 %v1777
    %2008 = vmatprep.subr.mxu0 0.0
    %2009 = vmatpush1.msra.mxu0 0.0
    %2010 = vmatprep.subr.mxu0 0.0
    %2011 = vmatpush1.msra.mxu0 0.0
    %2012 = vmatprep.mubr.f32.mxu0 %v1925
    %2013 = vmatmul.mubr.f32.gmra.mrb[0].mxu0 %v1908
    %v2014 = vpop.f32.mrb[0].mxu0
    %v2015 = vadd.f32 0.0, %v2014
    %v2016 = vpop.f32.mrb[0].mxu0
    %2017 = vmatprep.mubr.f32.mxu0 %v1928
    %2018 = vmatmul.mubr.f32.gmra.mrb[0].mxu0 %v1910
    %v2019 = vpop.f32.mrb[0].mxu0
    %v2020 = vadd.f32 0.0, %v2019
    %v2021 = vpop.f32.mrb[0].mxu0
    %2022 = vmatprep.mubr.f32.mxu0 %v1931
    %2023 = vmatmul.mubr.f32.gmra.mrb[0].mxu0 %v1912
    %v2024 = vpop.f32.mrb[0].mxu0
    %v2025 = vadd.f32 0.0, %v2024
    %v2026 = vpop.f32.mrb[0].mxu0
    %2027 = vmatprep.mubr.f32.mxu0 %v1934
    %2028 = vmatmul.mubr.f32.gmra.mrb[0].mxu0 %v1914
    %v2029 = vpop.f32.mrb[0].mxu0
    %v2030 = vadd.f32 0.0, %v2029
    %v2031 = vpop.f32.mrb[0].mxu0
    %2032 = vmatprep.mubr.f32.mxu0 %v1937
    %2033 = vmatmul.mubr.f32.gmra.mrb[0].mxu0 %v1916
    %v2034 = vpop.f32.mrb[0].mxu0
    %v2035 = vadd.f32 0.0, %v2034
    %v2036 = vpop.f32.mrb[0].mxu0
    %2037 = vmatprep.mubr.f32.mxu0 %v1940
    %2038 = vmatmul.mubr.f32.gmra.mrb[0].mxu0 %v1918
    %v2039 = vpop.f32.mrb[0].mxu0
    %v2040 = vadd.f32 0.0, %v2039
    %v2041 = vpop.f32.mrb[0].mxu0
    %2042 = vmatprep.mubr.f32.mxu0 %v1943
    %2043 = vmatmul.mubr.f32.gmra.mrb[0].mxu0 %v1920
    %v2044 = vpop.f32.mrb[0].mxu0
    %v2045 = vadd.f32 0.0, %v2044
    %v2046 = vpop.f32.mrb[0].mxu0
    %2047 = vmatprep.mubr.f32.mxu0 %v1946
    %2048 = vmatmul.mubr.f32.gmra.mrb[0].mxu0 %v1922
    %v2049 = vpop.f32.mrb[0].mxu0
    %v2050 = vadd.f32 0.0, %v2049
    %v2051 = vpop.f32.mrb[0].mxu0
    %2052 = vdwg.mxu0
    %vm2053 = vcmask 64512
    %v2054 = vsel %vm2053, %v1870, 0.0
    %v2055 = vsel %vm2053, %v1875, 0.0
    %v2056 = vadd.f32 %v2054, %v2055
    %v2057 = vsel %vm2053, %v1880, 0.0
    %v2058 = vadd.f32 %v2056, %v2057
    %v2059 = vsel %vm2053, %v1885, 0.0
    %v2060 = vadd.f32 %v2058, %v2059
    %v2061 = vsel %vm2053, %v1890, 0.0
    %v2062 = vadd.f32 %v2060, %v2061
    %v2063 = vsel %vm2053, %v1895, 0.0
    %v2064 = vadd.f32 %v2062, %v2063
    %v2065 = vsel %vm2053, %v1900, 0.0
    %v2066 = vadd.f32 %v2064, %v2065
    %v2067 = vsel %vm2053, %v1905, 0.0
    %v2068 = vadd.f32 %v2066, %v2067
    %v2069 = vrot.slane %v2068, 4
    %v2070 = vadd.f32 %v2068, %v2069
    %v2071 = vrot.slane %v2070, 2
    %v2072 = vadd.f32 %v2070, %v2071
    %v2073 = vrot.slane %v2072, 1
    %v2074 = vadd.f32 %v2072, %v2073
    %v2075 = vmul.f32 %v2074, 0.0006377551
    %v2076 = vsel %vm2053, %v2015, 0.0
    %v2077 = vsel %vm2053, %v2020, 0.0
    %v2078 = vadd.f32 %v2076, %v2077
    %v2079 = vsel %vm2053, %v2025, 0.0
    %v2080 = vadd.f32 %v2078, %v2079
    %v2081 = vsel %vm2053, %v2030, 0.0
    %v2082 = vadd.f32 %v2080, %v2081
    %v2083 = vsel %vm2053, %v2035, 0.0
    %v2084 = vadd.f32 %v2082, %v2083
    %v2085 = vsel %vm2053, %v2040, 0.0
    %v2086 = vadd.f32 %v2084, %v2085
    %v2087 = vsel %vm2053, %v2045, 0.0
    %v2088 = vadd.f32 %v2086, %v2087
    %v2089 = vsel %vm2053, %v2050, 0.0
    %v2090 = vadd.f32 %v2088, %v2089
    %v2091 = vrot.slane %v2090, 4
    %v2092 = vadd.f32 %v2090, %v2091
    %v2093 = vrot.slane %v2092, 2
    %v2094 = vadd.f32 %v2092, %v2093
    %v2095 = vrot.slane %v2094, 1
    %v2096 = vadd.f32 %v2094, %v2095
    %v2097 = vmul.f32 %v2096, 0.0006377551
    %v2098 = vmul.f32 %v2075, %v2075
    %v2099 = vsub.f32 %v2097, %v2098
    %v2100 = vld [vmem:[%s7] sm:$0x1]
    %v2101 = vadd.f32 %v2099, 1e-05
    %v2102 = vrsqrt.pop %v2101
    %v2103 = vmul.f32 %v2100, %v2102
    %v2104 = vld [vmem:[%s8] sm:$0x1]
    %v2105 = vmul.f32 %v2075, %v2103
    %v2106 = vsub.f32 %v2104, %v2105
    %v2107 = vld [vmem:[#allocation7] sm:$0xff]
    %v2108 = vld [vmem:[#allocation7 + $0x8] sm:$0xff]
    %v2110 = vsel %vm2053, %v2103, 0
    %2112 = vmatprep.subr.mxu0 %v2108
    %2113 = vmatpush1.msra.mxu0 %v2107
    %2114 = vmatprep.subr.mxu0 0.0
    %2115 = vmatpush1.msra.mxu0 0.0
    %2116 = vmatprep.subr.mxu0 0.0
    %2117 = vmatpush1.msra.mxu0 0.0
    %2118 = vmatprep.subr.mxu0 0.0
    %2119 = vmatpush1.msra.mxu0 0.0
    %2120 = vmatprep.subr.mxu0 0.0
    %2121 = vmatpush1.msra.mxu0 0.0
    %2122 = vmatprep.subr.mxu0 0.0
    %2123 = vmatpush1.msra.mxu0 0.0
    %2124 = vmatprep.subr.mxu0 0.0
    %2125 = vmatpush1.msra.mxu0 0.0
    %2126 = vmatprep.subr.mxu0 0.0
    %2127 = vmatpush1.msra.mxu0 0.0
    %2128 = vmatprep.subr.mxu0 0.0
    %2129 = vmatpush1.msra.mxu0 0.0
    %2130 = vmatprep.subr.mxu0 0.0
    %2131 = vmatpush1.msra.mxu0 0.0
    %2132 = vmatprep.subr.mxu0 0.0
    %2133 = vmatpush1.msra.mxu0 0.0
    %2134 = vmatprep.subr.mxu0 0.0
    %2135 = vmatpush1.msra.mxu0 0.0
    %2136 = vmatprep.subr.mxu0 0.0
    %2137 = vmatpush1.msra.mxu0 0.0
    %2138 = vmatprep.subr.mxu0 0.0
    %2139 = vmatpush1.msra.mxu0 0.0
    %2140 = vmatprep.subr.mxu0 0.0
    %2141 = vmatpush1.msra.mxu0 0.0
    %2142 = vmatprep.subr.mxu0 0.0
    %2143 = vmatpush1.msra.mxu0 0.0
    %2144 = vmatprep.subr.mxu0 0.0
    %2145 = vmatpush1.msra.mxu0 0.0
    %2146 = vmatprep.subr.mxu0 0.0
    %2147 = vmatpush1.msra.mxu0 0.0
    %2148 = vmatprep.subr.mxu0 0.0
    %2149 = vmatpush1.msra.mxu0 0.0
    %2150 = vmatprep.subr.mxu0 0.0
    %2151 = vmatpush1.msra.mxu0 0.0
    %2152 = vmatprep.subr.mxu0 0.0
    %2153 = vmatpush1.msra.mxu0 0.0
    %2154 = vmatprep.subr.mxu0 0.0
    %2155 = vmatpush1.msra.mxu0 0.0
    %2156 = vmatprep.subr.mxu0 0.0
    %2157 = vmatpush1.msra.mxu0 0.0
    %2158 = vmatprep.subr.mxu0 0.0
    %2159 = vmatpush1.msra.mxu0 0.0
    %2160 = vmatprep.subr.mxu0 0.0
    %2161 = vmatpush1.msra.mxu0 0.0
    %2162 = vmatprep.subr.mxu0 0.0
    %2163 = vmatpush1.msra.mxu0 0.0
    %2164 = vmatprep.subr.mxu0 0.0
    %2165 = vmatpush1.msra.mxu0 0.0
    %2166 = vmatprep.subr.mxu0 0.0
    %2167 = vmatpush1.msra.mxu0 0.0
    %2168 = vmatprep.subr.mxu0 0.0
    %2169 = vmatpush1.msra.mxu0 0.0
    %2170 = vmatprep.subr.mxu0 0.0
    %2171 = vmatpush1.msra.mxu0 0.0
    %2172 = vmatprep.subr.mxu0 0.0
    %2173 = vmatpush1.msra.mxu0 0.0
    %2174 = vmatprep.subr.mxu0 0.0
    %2175 = vmatpush1.msra.mxu0 0.0
    %2176 = vmatprep.mubr.f32.mxu0 0.0
    %2177 = vmatmul.mubr.f32.gmra.mrb[0].mxu0 %v2110
    %v2178 = vpop.f32.mrb[0].mxu0
    %v2179 = vadd.f32 0.0, %v2178
    %v2180 = vpop.f32.mrb[0].mxu0
    %v2181 = vadd.f32 0.0, %v2180
    %2182 = vdwg.mxu0
    %v2184 = vsel %vm2053, %v2106, 0
    %2186 = vmatprep.subr.mxu0 %v2108
    %2187 = vmatpush1.msra.mxu0 %v2107
    %2188 = vmatprep.subr.mxu0 0.0
    %2189 = vmatpush1.msra.mxu0 0.0
    %2190 = vmatprep.subr.mxu0 0.0
    %2191 = vmatpush1.msra.mxu0 0.0
    %2192 = vmatprep.subr.mxu0 0.0
    %2193 = vmatpush1.msra.mxu0 0.0
    %2194 = vmatprep.subr.mxu0 0.0
    %2195 = vmatpush1.msra.mxu0 0.0
    %2196 = vmatprep.subr.mxu0 0.0
    %2197 = vmatpush1.msra.mxu0 0.0
    %2198 = vmatprep.subr.mxu0 0.0
    %2199 = vmatpush1.msra.mxu0 0.0
    %2200 = vmatprep.subr.mxu0 0.0
    %2201 = vmatpush1.msra.mxu0 0.0
    %2202 = vmatprep.subr.mxu0 0.0
    %2203 = vmatpush1.msra.mxu0 0.0
    %2204 = vmatprep.subr.mxu0 0.0
    %2205 = vmatpush1.msra.mxu0 0.0
    %2206 = vmatprep.subr.mxu0 0.0
    %2207 = vmatpush1.msra.mxu0 0.0
    %2208 = vmatprep.subr.mxu0 0.0
    %2209 = vmatpush1.msra.mxu0 0.0
    %2210 = vmatprep.subr.mxu0 0.0
    %2211 = vmatpush1.msra.mxu0 0.0
    %2212 = vmatprep.subr.mxu0 0.0
    %2213 = vmatpush1.msra.mxu0 0.0
    %2214 = vmatprep.subr.mxu0 0.0
    %2215 = vmatpush1.msra.mxu0 0.0
    %2216 = vmatprep.subr.mxu0 0.0
    %2217 = vmatpush1.msra.mxu0 0.0
    %2218 = vmatprep.subr.mxu0 0.0
    %2219 = vmatpush1.msra.mxu0 0.0
    %2220 = vmatprep.subr.mxu0 0.0
    %2221 = vmatpush1.msra.mxu0 0.0
    %2222 = vmatprep.subr.mxu0 0.0
    %2223 = vmatpush1.msra.mxu0 0.0
    %2224 = vmatprep.subr.mxu0 0.0
    %2225 = vmatpush1.msra.mxu0 0.0
    %2226 = vmatprep.subr.mxu0 0.0
    %2227 = vmatpush1.msra.mxu0 0.0
    %2228 = vmatprep.subr.mxu0 0.0
    %2229 = vmatpush1.msra.mxu0 0.0
    %2230 = vmatprep.subr.mxu0 0.0
    %2231 = vmatpush1.msra.mxu0 0.0
    %2232 = vmatprep.subr.mxu0 0.0
    %2233 = vmatpush1.msra.mxu0 0.0
    %2234 = vmatprep.subr.mxu0 0.0
    %2235 = vmatpush1.msra.mxu0 0.0
    %2236 = vmatprep.subr.mxu0 0.0
    %2237 = vmatpush1.msra.mxu0 0.0
    %2238 = vmatprep.subr.mxu0 0.0
    %2239 = vmatpush1.msra.mxu0 0.0
    %2240 = vmatprep.subr.mxu0 0.0
    %2241 = vmatpush1.msra.mxu0 0.0
    %2242 = vmatprep.subr.mxu0 0.0
    %2243 = vmatpush1.msra.mxu0 0.0
    %2244 = vmatprep.subr.mxu0 0.0
    %2245 = vmatpush1.msra.mxu0 0.0
    %2246 = vmatprep.subr.mxu0 0.0
    %2247 = vmatpush1.msra.mxu0 0.0
    %2248 = vmatprep.subr.mxu0 0.0
    %2249 = vmatpush1.msra.mxu0 0.0
    %2250 = vmatprep.mubr.f32.mxu0 0.0
    %2251 = vmatmul.mubr.f32.gmra.mrb[0].mxu0 %v2184
    %v2252 = vpop.f32.mrb[0].mxu0
    %v2253 = vadd.f32 0.0, %v2252
    %v2254 = vpop.f32.mrb[0].mxu0
    %v2255 = vadd.f32 0.0, %v2254
    %2256 = vdwg.mxu0
    %v2257 = vlaneseq
    %v2258 = vshrl.u32 %v2257, 7
    %v2259 = vsub.s32 0, %v2258
    %v2260 = vrot.slane %v2179, %v2259
    %v2261 = vlaneseq
    %v2262 = vshrl.u32 %v2261, 7
    %v2263 = vsub.s32 0, %v2262
    %v2264 = vrot.slane %v2181, %v2263
    %v2265 = vmul.f32 %v1732, %v2260
    %v2266 = vmul.f32 %v1733, %v2264
    %v2267 = vmul.f32 %v1734, %v2260
    %v2268 = vmul.f32 %v1735, %v2264
    %v2269 = vmul.f32 %v1736, %v2260
    %v2270 = vmul.f32 %v1737, %v2264
    %v2271 = vmul.f32 %v1738, %v2260
    %v2272 = vmul.f32 %v1739, %v2264
    %v2273 = vmul.f32 %v1740, %v2260
    %v2274 = vmul.f32 %v1741, %v2264
    %v2275 = vmul.f32 %v1742, %v2260
    %v2276 = vmul.f32 %v1743, %v2264
    %v2277 = vmul.f32 %v1744, %v2260
    %v2278 = vmul.f32 %v1745, %v2264
    %v2279 = vmul.f32 %v1746, %v2260
    %v2280 = vmul.f32 %v1747, %v2264
    %v2281 = vlaneseq
    %v2282 = vshrl.u32 %v2281, 7
    %v2283 = vsub.s32 0, %v2282
    %v2284 = vrot.slane %v2253, %v2283
    %v2285 = vlaneseq
    %v2286 = vshrl.u32 %v2285, 7
    %v2287 = vsub.s32 0, %v2286
    %v2288 = vrot.slane %v2255, %v2287
    %v2289 = vadd.f32 %v2265, %v2284
    %v2290 = vadd.f32 %v2266, %v2288
    %v2291 = vadd.f32 %v2267, %v2284
    %v2292 = vadd.f32 %v2268, %v2288
    %v2293 = vadd.f32 %v2269, %v2284
    %v2294 = vadd.f32 %v2270, %v2288
    %v2295 = vadd.f32 %v2271, %v2284
    %v2296 = vadd.f32 %v2272, %v2288
    %v2297 = vadd.f32 %v2273, %v2284
    %v2298 = vadd.f32 %v2274, %v2288
    %v2299 = vadd.f32 %v2275, %v2284
    %v2300 = vadd.f32 %v2276, %v2288
    %v2301 = vadd.f32 %v2277, %v2284
    %v2302 = vadd.f32 %v2278, %v2288
    %v2303 = vadd.f32 %v2279, %v2284
    %v2304 = vadd.f32 %v2280, %v2288
    %vm2305 = vcmp.gt.f32.partialorder %v2289, 0.0
    %vm2306 = vcmp.gt.f32.partialorder %v2290, 0.0
    %vm2307 = vcmp.gt.f32.partialorder %v2291, 0.0
    %vm2308 = vcmp.gt.f32.partialorder %v2292, 0.0
    %vm2309 = vcmp.gt.f32.partialorder %v2293, 0.0
    %vm2310 = vcmp.gt.f32.partialorder %v2294, 0.0
    %vm2311 = vcmp.gt.f32.partialorder %v2295, 0.0
    %vm2312 = vcmp.gt.f32.partialorder %v2296, 0.0
    %vm2313 = vcmp.gt.f32.partialorder %v2297, 0.0
    %vm2314 = vcmp.gt.f32.partialorder %v2298, 0.0
    %vm2315 = vcmp.gt.f32.partialorder %v2299, 0.0
    %vm2316 = vcmp.gt.f32.partialorder %v2300, 0.0
    %vm2317 = vcmp.gt.f32.partialorder %v2301, 0.0
    %vm2318 = vcmp.gt.f32.partialorder %v2302, 0.0
    %vm2319 = vcmp.gt.f32.partialorder %v2303, 0.0
    %vm2320 = vcmp.gt.f32.partialorder %v2304, 0.0
    %v2321 = vmul.f32 %v2289, 0.01
    %v2322 = vmul.f32 %v2290, 0.01
    %v2323 = vmul.f32 %v2291, 0.01
    %v2324 = vmul.f32 %v2292, 0.01
    %v2325 = vmul.f32 %v2293, 0.01
    %v2326 = vmul.f32 %v2294, 0.01
    %v2327 = vmul.f32 %v2295, 0.01
    %v2328 = vmul.f32 %v2296, 0.01
    %v2329 = vmul.f32 %v2297, 0.01
    %v2330 = vmul.f32 %v2298, 0.01
    %v2331 = vmul.f32 %v2299, 0.01
    %v2332 = vmul.f32 %v2300, 0.01
    %v2333 = vmul.f32 %v2301, 0.01
    %v2334 = vmul.f32 %v2302, 0.01
    %v2335 = vmul.f32 %v2303, 0.01
    %v2336 = vmul.f32 %v2304, 0.01
    %v2337 = vsel %vm2305, %v2289, %v2321
    %v2338 = vsel %vm2306, %v2290, %v2322
    %v2339 = vsel %vm2307, %v2291, %v2323
    %v2340 = vsel %vm2308, %v2292, %v2324
    %v2341 = vsel %vm2309, %v2293, %v2325
    %v2342 = vsel %vm2310, %v2294, %v2326
    %v2343 = vsel %vm2311, %v2295, %v2327
    %v2344 = vsel %vm2312, %v2296, %v2328
    %v2345 = vsel %vm2313, %v2297, %v2329
    %v2346 = vsel %vm2314, %v2298, %v2330
    %v2347 = vsel %vm2315, %v2299, %v2331
    %v2348 = vsel %vm2316, %v2300, %v2332
    %v2349 = vsel %vm2317, %v2301, %v2333
    %v2350 = vsel %vm2318, %v2302, %v2334
    %v2351 = vsel %vm2319, %v2303, %v2335
    %v2352 = vsel %vm2320, %v2304, %v2336
    %v2353 = vmul.f32 %v2337, %v886
    %v2354 = vmul.f32 %v2338, %v886
    %v2355 = vmul.f32 %v2339, %v891
    %v2356 = vmul.f32 %v2340, %v891
    %v2357 = vmul.f32 %v2341, %v896
    %v2358 = vmul.f32 %v2342, %v896
    %v2359 = vmul.f32 %v2343, %v901
    %v2360 = vmul.f32 %v2344, %v901
    %v2361 = vmul.f32 %v2345, %v906
    %v2362 = vmul.f32 %v2346, %v906
    %v2363 = vmul.f32 %v2347, %v911
    %v2364 = vmul.f32 %v2348, %v911
    %v2365 = vmul.f32 %v2349, %v916
    %v2366 = vmul.f32 %v2350, %v916
    %v2367 = vmul.f32 %v2351, %v921
    %v2368 = vmul.f32 %v2352, %v921
    %v2369 = vmul.f32 %v2353, %v1725
    %v2370 = vmul.f32 %v2354, %v1729
    %v2371 = vmul.f32 %v2355, %v1725
    %v2372 = vmul.f32 %v2356, %v1729
    %v2373 = vmul.f32 %v2357, %v1725
    %v2374 = vmul.f32 %v2358, %v1729
    %v2375 = vmul.f32 %v2359, %v1725
    %v2376 = vmul.f32 %v2360, %v1729
    %v2377 = vmul.f32 %v2361, %v1725
    %v2378 = vmul.f32 %v2362, %v1729
    %v2379 = vmul.f32 %v2363, %v1725
    %v2380 = vmul.f32 %v2364, %v1729
    %v2381 = vmul.f32 %v2365, %v1725
    %v2382 = vmul.f32 %v2366, %v1729
    %v2383 = vmul.f32 %v2367, %v1725
    %v2384 = vmul.f32 %v2368, %v1729
    %v2385 = vld [vmem:[%s12] sm:$0xf]
    %2386 = vmatprep.subr.mxu0 %v2370
    %2387 = vmatpush1.msra.mxu0 %v2369
    %2388 = vmatprep.subr.mxu0 %v2372
    %2389 = vmatpush1.msra.mxu0 %v2371
    %2390 = vmatprep.subr.mxu0 %v2374
    %2391 = vmatpush1.msra.mxu0 %v2373
    %2392 = vmatprep.subr.mxu0 %v2376
    %2393 = vmatpush1.msra.mxu0 %v2375
    %2394 = vmatprep.subr.mxu0 %v2378
    %2395 = vmatpush1.msra.mxu0 %v2377
    %2396 = vmatprep.subr.mxu0 %v2380
    %2397 = vmatpush1.msra.mxu0 %v2379
    %2398 = vmatprep.subr.mxu0 %v2382
    %2399 = vmatpush1.msra.mxu0 %v2381
    %2400 = vmatprep.subr.mxu0 %v2384
    %2401 = vmatpush1.msra.mxu0 %v2383
    %2402 = vmatprep.subr.mxu0 0.0
    %2403 = vmatpush1.msra.mxu0 0.0
    %2404 = vmatprep.subr.mxu0 0.0
    %2405 = vmatpush1.msra.mxu0 0.0
    %2406 = vmatprep.subr.mxu0 0.0
    %2407 = vmatpush1.msra.mxu0 0.0
    %2408 = vmatprep.subr.mxu0 0.0
    %2409 = vmatpush1.msra.mxu0 0.0
    %2410 = vmatprep.subr.mxu0 0.0
    %2411 = vmatpush1.msra.mxu0 0.0
    %2412 = vmatprep.subr.mxu0 0.0
    %2413 = vmatpush1.msra.mxu0 0.0
    %2414 = vmatprep.subr.mxu0 0.0
    %2415 = vmatpush1.msra.mxu0 0.0
    %2416 = vmatprep.subr.mxu0 0.0
    %2417 = vmatpush1.msra.mxu0 0.0
    %2418 = vmatprep.subr.mxu0 0.0
    %2419 = vmatpush1.msra.mxu0 0.0
    %2420 = vmatprep.subr.mxu0 0.0
    %2421 = vmatpush1.msra.mxu0 0.0
    %2422 = vmatprep.subr.mxu0 0.0
    %2423 = vmatpush1.msra.mxu0 0.0
    %2424 = vmatprep.subr.mxu0 0.0
    %2425 = vmatpush1.msra.mxu0 0.0
    %2426 = vmatprep.subr.mxu0 0.0
    %2427 = vmatpush1.msra.mxu0 0.0
    %2428 = vmatprep.subr.mxu0 0.0
    %2429 = vmatpush1.msra.mxu0 0.0
    %2430 = vmatprep.subr.mxu0 0.0
    %2431 = vmatpush1.msra.mxu0 0.0
    %2432 = vmatprep.subr.mxu0 0.0
    %2433 = vmatpush1.msra.mxu0 0.0
    %2434 = vmatprep.subr.mxu0 0.0
    %2435 = vmatpush1.msra.mxu0 0.0
    %2436 = vmatprep.subr.mxu0 0.0
    %2437 = vmatpush1.msra.mxu0 0.0
    %2438 = vmatprep.subr.mxu0 0.0
    %2439 = vmatpush1.msra.mxu0 0.0
    %2440 = vmatprep.subr.mxu0 0.0
    %2441 = vmatpush1.msra.mxu0 0.0
    %2442 = vmatprep.subr.mxu0 0.0
    %2443 = vmatpush1.msra.mxu0 0.0
    %2444 = vmatprep.subr.mxu0 0.0
    %2445 = vmatpush1.msra.mxu0 0.0
    %2446 = vmatprep.subr.mxu0 0.0
    %2447 = vmatpush1.msra.mxu0 0.0
    %2448 = vmatprep.subr.mxu0 0.0
    %2449 = vmatpush1.msra.mxu0 0.0
    %2450 = vmatprep.mubr.f32.mxu0 0.0
    %2451 = vmatmul.mubr.f32.gmra.mrb[0].mxu0 %v168
    %v2452 = vpop.f32.mrb[0].mxu0
    %v2453 = vadd.f32 0.0, %v2452
    %v2454 = vpop.f32.mrb[0].mxu0
    %v2455 = vadd.f32 0.0, %v2454
    %2456 = vmatprep.mubr.f32.mxu0 0.0
    %2457 = vmatmul.mubr.f32.gmra.mrb[0].mxu0 %v171
    %v2458 = vpop.f32.mrb[0].mxu0
    %v2459 = vadd.f32 0.0, %v2458
    %v2460 = vpop.f32.mrb[0].mxu0
    %v2461 = vadd.f32 0.0, %v2460
    %2462 = vmatprep.mubr.f32.mxu0 0.0
    %2463 = vmatmul.mubr.f32.gmra.mrb[0].mxu0 %v174
    %v2464 = vpop.f32.mrb[0].mxu0
    %v2465 = vadd.f32 0.0, %v2464
    %v2466 = vpop.f32.mrb[0].mxu0
    %v2467 = vadd.f32 0.0, %v2466
    %2468 = vmatprep.mubr.f32.mxu0 0.0
    %2469 = vmatmul.mubr.f32.gmra.mrb[0].mxu0 %v177
    %v2470 = vpop.f32.mrb[0].mxu0
    %v2471 = vadd.f32 0.0, %v2470
    %v2472 = vpop.f32.mrb[0].mxu0
    %v2473 = vadd.f32 0.0, %v2472
    %2474 = vmatprep.mubr.f32.mxu0 0.0
    %2475 = vmatmul.mubr.f32.gmra.mrb[0].mxu0 %v180
    %v2476 = vpop.f32.mrb[0].mxu0
    %v2477 = vadd.f32 0.0, %v2476
    %v2478 = vpop.f32.mrb[0].mxu0
    %v2479 = vadd.f32 0.0, %v2478
    %2480 = vmatprep.mubr.f32.mxu0 0.0
    %2481 = vmatmul.mubr.f32.gmra.mrb[0].mxu0 %v183
    %v2482 = vpop.f32.mrb[0].mxu0
    %v2483 = vadd.f32 0.0, %v2482
    %v2484 = vpop.f32.mrb[0].mxu0
    %v2485 = vadd.f32 0.0, %v2484
    %2486 = vmatprep.mubr.f32.mxu0 0.0
    %2487 = vmatmul.mubr.f32.gmra.mrb[0].mxu0 %v186
    %v2488 = vpop.f32.mrb[0].mxu0
    %v2489 = vadd.f32 0.0, %v2488
    %v2490 = vpop.f32.mrb[0].mxu0
    %v2491 = vadd.f32 0.0, %v2490
    %2492 = vmatprep.mubr.f32.mxu0 0.0
    %2493 = vmatmul.mubr.f32.gmra.mrb[0].mxu0 %v189
    %v2494 = vpop.f32.mrb[0].mxu0
    %v2495 = vadd.f32 0.0, %v2494
    %v2496 = vpop.f32.mrb[0].mxu0
    %v2497 = vadd.f32 0.0, %v2496
    %2498 = vdwg.mxu0
    %2499 = vmatprep.subr.mxu0 %v2370
    %2500 = vmatpush1.msra.mxu0 %v2369
    %2501 = vmatprep.subr.mxu0 %v2372
    %2502 = vmatpush1.msra.mxu0 %v2371
    %2503 = vmatprep.subr.mxu0 %v2374
    %2504 = vmatpush1.msra.mxu0 %v2373
    %2505 = vmatprep.subr.mxu0 %v2376
    %2506 = vmatpush1.msra.mxu0 %v2375
    %2507 = vmatprep.subr.mxu0 %v2378
    %2508 = vmatpush1.msra.mxu0 %v2377
    %2509 = vmatprep.subr.mxu0 %v2380
    %2510 = vmatpush1.msra.mxu0 %v2379
    %2511 = vmatprep.subr.mxu0 %v2382
    %2512 = vmatpush1.msra.mxu0 %v2381
    %2513 = vmatprep.subr.mxu0 %v2384
    %2514 = vmatpush1.msra.mxu0 %v2383
    %2515 = vmatprep.subr.mxu0 0.0
    %2516 = vmatpush1.msra.mxu0 0.0
    %2517 = vmatprep.subr.mxu0 0.0
    %2518 = vmatpush1.msra.mxu0 0.0
    %2519 = vmatprep.subr.mxu0 0.0
    %2520 = vmatpush1.msra.mxu0 0.0
    %2521 = vmatprep.subr.mxu0 0.0
    %2522 = vmatpush1.msra.mxu0 0.0
    %2523 = vmatprep.subr.mxu0 0.0
    %2524 = vmatpush1.msra.mxu0 0.0
    %2525 = vmatprep.subr.mxu0 0.0
    %2526 = vmatpush1.msra.mxu0 0.0
    %2527 = vmatprep.subr.mxu0 0.0
    %2528 = vmatpush1.msra.mxu0 0.0
    %2529 = vmatprep.subr.mxu0 0.0
    %2530 = vmatpush1.msra.mxu0 0.0
    %2531 = vmatprep.subr.mxu0 0.0
    %2532 = vmatpush1.msra.mxu0 0.0
    %2533 = vmatprep.subr.mxu0 0.0
    %2534 = vmatpush1.msra.mxu0 0.0
    %2535 = vmatprep.subr.mxu0 0.0
    %2536 = vmatpush1.msra.mxu0 0.0
    %2537 = vmatprep.subr.mxu0 0.0
    %2538 = vmatpush1.msra.mxu0 0.0
    %2539 = vmatprep.subr.mxu0 0.0
    %2540 = vmatpush1.msra.mxu0 0.0
    %2541 = vmatprep.subr.mxu0 0.0
    %2542 = vmatpush1.msra.mxu0 0.0
    %2543 = vmatprep.subr.mxu0 0.0
    %2544 = vmatpush1.msra.mxu0 0.0
    %2545 = vmatprep.subr.mxu0 0.0
    %2546 = vmatpush1.msra.mxu0 0.0
    %2547 = vmatprep.subr.mxu0 0.0
    %2548 = vmatpush1.msra.mxu0 0.0
    %2549 = vmatprep.subr.mxu0 0.0
    %2550 = vmatpush1.msra.mxu0 0.0
    %2551 = vmatprep.subr.mxu0 0.0
    %2552 = vmatpush1.msra.mxu0 0.0
    %2553 = vmatprep.subr.mxu0 0.0
    %2554 = vmatpush1.msra.mxu0 0.0
    %2555 = vmatprep.subr.mxu0 0.0
    %2556 = vmatpush1.msra.mxu0 0.0
    %2557 = vmatprep.subr.mxu0 0.0
    %2558 = vmatpush1.msra.mxu0 0.0
    %2559 = vmatprep.subr.mxu0 0.0
    %2560 = vmatpush1.msra.mxu0 0.0
    %2561 = vmatprep.subr.mxu0 0.0
    %2562 = vmatpush1.msra.mxu0 0.0
    %2563 = vmatprep.mubr.f32.mxu0 0.0
    %2564 = vmatmul.mubr.f32.gmra.mrb[0].mxu0 %v297
    %v2565 = vpop.f32.mrb[0].mxu0
    %v2566 = vadd.f32 0.0, %v2565
    %v2567 = vpop.f32.mrb[0].mxu0
    %v2568 = vadd.f32 0.0, %v2567
    %2569 = vmatprep.mubr.f32.mxu0 0.0
    %2570 = vmatmul.mubr.f32.gmra.mrb[0].mxu0 %v300
    %v2571 = vpop.f32.mrb[0].mxu0
    %v2572 = vadd.f32 0.0, %v2571
    %v2573 = vpop.f32.mrb[0].mxu0
    %v2574 = vadd.f32 0.0, %v2573
    %2575 = vmatprep.mubr.f32.mxu0 0.0
    %2576 = vmatmul.mubr.f32.gmra.mrb[0].mxu0 %v303
    %v2577 = vpop.f32.mrb[0].mxu0
    %v2578 = vadd.f32 0.0, %v2577
    %v2579 = vpop.f32.mrb[0].mxu0
    %v2580 = vadd.f32 0.0, %v2579
    %2581 = vmatprep.mubr.f32.mxu0 0.0
    %2582 = vmatmul.mubr.f32.gmra.mrb[0].mxu0 %v306
    %v2583 = vpop.f32.mrb[0].mxu0
    %v2584 = vadd.f32 0.0, %v2583
    %v2585 = vpop.f32.mrb[0].mxu0
    %v2586 = vadd.f32 0.0, %v2585
    %2587 = vmatprep.mubr.f32.mxu0 0.0
    %2588 = vmatmul.mubr.f32.gmra.mrb[0].mxu0 %v309
    %v2589 = vpop.f32.mrb[0].mxu0
    %v2590 = vadd.f32 0.0, %v2589
    %v2591 = vpop.f32.mrb[0].mxu0
    %v2592 = vadd.f32 0.0, %v2591
    %2593 = vmatprep.mubr.f32.mxu0 0.0
    %2594 = vmatmul.mubr.f32.gmra.mrb[0].mxu0 %v312
    %v2595 = vpop.f32.mrb[0].mxu0
    %v2596 = vadd.f32 0.0, %v2595
    %v2597 = vpop.f32.mrb[0].mxu0
    %v2598 = vadd.f32 0.0, %v2597
    %2599 = vmatprep.mubr.f32.mxu0 0.0
    %2600 = vmatmul.mubr.f32.gmra.mrb[0].mxu0 %v315
    %v2601 = vpop.f32.mrb[0].mxu0
    %v2602 = vadd.f32 0.0, %v2601
    %v2603 = vpop.f32.mrb[0].mxu0
    %v2604 = vadd.f32 0.0, %v2603
    %2605 = vmatprep.mubr.f32.mxu0 0.0
    %2606 = vmatmul.mubr.f32.gmra.mrb[0].mxu0 %v318
    %v2607 = vpop.f32.mrb[0].mxu0
    %v2608 = vadd.f32 0.0, %v2607
    %v2609 = vpop.f32.mrb[0].mxu0
    %v2610 = vadd.f32 0.0, %v2609
    %2611 = vdwg.mxu0
    %v2612 = vld [vmem:[%s11] sm:$0xff]
    %v2613 = vld [vmem:[%s11 + $0x8] sm:$0xff]
    %v2614 = vld [vmem:[%s11 + $0x10] sm:$0xff]
    %v2615 = vld [vmem:[%s11 + $0x18] sm:$0xff]
    %v2616 = vld [vmem:[%s11 + $0x20] sm:$0xff]
    %v2617 = vld [vmem:[%s11 + $0x28] sm:$0xff]
    %v2618 = vld [vmem:[%s11 + $0x30] sm:$0xff]
    %v2619 = vld [vmem:[%s11 + $0x38] sm:$0xff]
    %v2620 = vld [vmem:[%s11 + $0x40] sm:$0xff]
    %v2621 = vld [vmem:[%s11 + $0x48] sm:$0xff]
    %v2622 = vld [vmem:[%s11 + $0x50] sm:$0xff]
    %v2623 = vld [vmem:[%s11 + $0x58] sm:$0xff]
    %v2624 = vld [vmem:[%s11 + $0x60] sm:$0xff]
    %v2625 = vld [vmem:[%s11 + $0x68] sm:$0xff]
    %v2626 = vld [vmem:[%s11 + $0x70] sm:$0xff]
    %v2627 = vld [vmem:[%s11 + $0x78] sm:$0xff]
    %v2628 = vld [vmem:[%s11 + $0x80] sm:$0xff]
    %v2629 = vld [vmem:[%s11 + $0x88] sm:$0xff]
    %v2630 = vld [vmem:[%s11 + $0x90] sm:$0xff]
    %v2631 = vld [vmem:[%s11 + $0x98] sm:$0xff]
    %v2632 = vld [vmem:[%s11 + $0xa0] sm:$0xff]
    %v2633 = vld [vmem:[%s11 + $0xa8] sm:$0xff]
    %v2634 = vld [vmem:[%s11 + $0xb0] sm:$0xff]
    %v2635 = vld [vmem:[%s11 + $0xb8] sm:$0xff]
    %v2636 = vld [vmem:[%s11 + $0xc0] sm:$0xff]
    %v2637 = vld [vmem:[%s11 + $0xc8] sm:$0xff]
    %v2638 = vld [vmem:[%s11 + $0xd0] sm:$0xff]
    %v2639 = vld [vmem:[%s11 + $0xd8] sm:$0xff]
    %v2640 = vld [vmem:[%s11 + $0xe0] sm:$0xff]
    %v2641 = vld [vmem:[%s11 + $0xe8] sm:$0xff]
    %v2642 = vld [vmem:[%s11 + $0xf0] sm:$0xff]
    %v2643 = vld [vmem:[%s11 + $0xf8] sm:$0xff]
    %v2644 = vld [vmem:[%s11 + $0x100] sm:$0xff]
    %v2645 = vld [vmem:[%s11 + $0x108] sm:$0xff]
    %v2646 = vld [vmem:[%s11 + $0x110] sm:$0xff]
    %v2647 = vld [vmem:[%s11 + $0x118] sm:$0xff]
    %v2648 = vld [vmem:[%s11 + $0x120] sm:$0xff]
    %v2649 = vld [vmem:[%s11 + $0x128] sm:$0xff]
    %v2650 = vld [vmem:[%s11 + $0x130] sm:$0xff]
    %v2651 = vld [vmem:[%s11 + $0x138] sm:$0xff]
    %v2652 = vld [vmem:[%s11 + $0x140] sm:$0xff]
    %v2653 = vld [vmem:[%s11 + $0x148] sm:$0xff]
    %v2654 = vld [vmem:[%s11 + $0x150] sm:$0xff]
    %v2655 = vld [vmem:[%s11 + $0x158] sm:$0xff]
    %v2656 = vld [vmem:[%s11 + $0x160] sm:$0xff]
    %v2657 = vld [vmem:[%s11 + $0x168] sm:$0xff]
    %v2658 = vld [vmem:[%s11 + $0x170] sm:$0xff]
    %v2659 = vld [vmem:[%s11 + $0x178] sm:$0xff]
    %v2660 = vld [vmem:[%s11 + $0x180] sm:$0xff]
    %v2661 = vld [vmem:[%s11 + $0x188] sm:$0xff]
    %v2662 = vld [vmem:[%s11 + $0x190] sm:$0xff]
    %v2663 = vld [vmem:[%s11 + $0x198] sm:$0xff]
    %v2664 = vld [vmem:[%s11 + $0x1a0] sm:$0xff]
    %v2665 = vld [vmem:[%s11 + $0x1a8] sm:$0xff]
    %v2666 = vld [vmem:[%s11 + $0x1b0] sm:$0xff]
    %v2667 = vld [vmem:[%s11 + $0x1b8] sm:$0xff]
    %v2668 = vld [vmem:[%s11 + $0x1c0] sm:$0xff]
    %v2669 = vld [vmem:[%s11 + $0x1c8] sm:$0xff]
    %v2670 = vld [vmem:[%s11 + $0x1d0] sm:$0xff]
    %v2671 = vld [vmem:[%s11 + $0x1d8] sm:$0xff]
    %v2672 = vld [vmem:[%s11 + $0x1e0] sm:$0xff]
    %v2673 = vld [vmem:[%s11 + $0x1e8] sm:$0xff]
    %v2674 = vld [vmem:[%s11 + $0x1f0] sm:$0xff]
    %v2675 = vld [vmem:[%s11 + $0x1f8] sm:$0xff]
    %v2676 = vld [vmem:[%s11 + $0x200] sm:$0xff]
    %v2677 = vld [vmem:[%s11 + $0x208] sm:$0xff]
    %v2678 = vld [vmem:[%s11 + $0x210] sm:$0xff]
    %v2679 = vld [vmem:[%s11 + $0x218] sm:$0xff]
    %v2680 = vld [vmem:[%s11 + $0x220] sm:$0xff]
    %v2681 = vld [vmem:[%s11 + $0x228] sm:$0xff]
    %v2682 = vld [vmem:[%s11 + $0x230] sm:$0xff]
    %v2683 = vld [vmem:[%s11 + $0x238] sm:$0xff]
    %v2684 = vld [vmem:[%s11 + $0x240] sm:$0xff]
    %v2685 = vld [vmem:[%s11 + $0x248] sm:$0xff]
    %v2686 = vld [vmem:[%s11 + $0x250] sm:$0xff]
    %v2687 = vld [vmem:[%s11 + $0x258] sm:$0xff]
    %v2688 = vld [vmem:[%s11 + $0x260] sm:$0xff]
    %v2689 = vld [vmem:[%s11 + $0x268] sm:$0xff]
    %v2690 = vld [vmem:[%s11 + $0x270] sm:$0xff]
    %v2691 = vld [vmem:[%s11 + $0x278] sm:$0xff]
    %v2692 = vld [vmem:[%s11 + $0x280] sm:$0xff]
    %v2693 = vld [vmem:[%s11 + $0x288] sm:$0xff]
    %v2694 = vld [vmem:[%s11 + $0x290] sm:$0xff]
    %v2695 = vld [vmem:[%s11 + $0x298] sm:$0xff]
    %v2696 = vld [vmem:[%s11 + $0x2a0] sm:$0xff]
    %v2697 = vld [vmem:[%s11 + $0x2a8] sm:$0xff]
    %v2698 = vld [vmem:[%s11 + $0x2b0] sm:$0xff]
    %v2699 = vld [vmem:[%s11 + $0x2b8] sm:$0xff]
    %v2700 = vld [vmem:[%s11 + $0x2c0] sm:$0xff]
    %v2701 = vld [vmem:[%s11 + $0x2c8] sm:$0xff]
    %v2702 = vld [vmem:[%s11 + $0x2d0] sm:$0xff]
    %v2703 = vld [vmem:[%s11 + $0x2d8] sm:$0xff]
    %v2704 = vld [vmem:[%s11 + $0x2e0] sm:$0xff]
    %v2705 = vld [vmem:[%s11 + $0x2e8] sm:$0xff]
    %v2706 = vld [vmem:[%s11 + $0x2f0] sm:$0xff]
    %v2707 = vld [vmem:[%s11 + $0x2f8] sm:$0xff]
    %v2708 = vld [vmem:[%s11 + $0x300] sm:$0xff]
    %v2709 = vld [vmem:[%s11 + $0x308] sm:$0xff]
    %v2710 = vld [vmem:[%s11 + $0x310] sm:$0xff]
    %v2711 = vld [vmem:[%s11 + $0x318] sm:$0xff]
    %v2712 = vld [vmem:[%s11 + $0x320] sm:$0xff]
    %v2713 = vld [vmem:[%s11 + $0x328] sm:$0xff]
    %v2714 = vld [vmem:[%s11 + $0x330] sm:$0xff]
    %v2715 = vld [vmem:[%s11 + $0x338] sm:$0xff]
    %v2716 = vld [vmem:[%s11 + $0x340] sm:$0xff]
    %v2717 = vld [vmem:[%s11 + $0x348] sm:$0xff]
    %v2718 = vld [vmem:[%s11 + $0x350] sm:$0xff]
    %v2719 = vld [vmem:[%s11 + $0x358] sm:$0xff]
    %v2720 = vld [vmem:[%s11 + $0x360] sm:$0xff]
    %v2721 = vld [vmem:[%s11 + $0x368] sm:$0xff]
    %v2722 = vld [vmem:[%s11 + $0x370] sm:$0xff]
    %v2723 = vld [vmem:[%s11 + $0x378] sm:$0xff]
    %v2724 = vld [vmem:[%s11 + $0x380] sm:$0xff]
    %v2725 = vld [vmem:[%s11 + $0x388] sm:$0xff]
    %v2726 = vld [vmem:[%s11 + $0x390] sm:$0xff]
    %v2727 = vld [vmem:[%s11 + $0x398] sm:$0xff]
    %v2728 = vld [vmem:[%s11 + $0x3a0] sm:$0xff]
    %v2729 = vld [vmem:[%s11 + $0x3a8] sm:$0xff]
    %v2730 = vld [vmem:[%s11 + $0x3b0] sm:$0xff]
    %v2731 = vld [vmem:[%s11 + $0x3b8] sm:$0xff]
    %s2732 = scalar_lea.vmem %s11, 960
    %v2733 = vld [vmem:[%s2732] sm:$0xff]
    %v2734 = vld [vmem:[%s2732 + $0x8] sm:$0xff]
    %v2735 = vld [vmem:[%s2732 + $0x10] sm:$0xff]
    %v2736 = vld [vmem:[%s2732 + $0x18] sm:$0xff]
    %v2737 = vld [vmem:[%s2732 + $0x20] sm:$0xff]
    %v2738 = vld [vmem:[%s2732 + $0x28] sm:$0xff]
    %v2739 = vld [vmem:[%s2732 + $0x30] sm:$0xff]
    %v2740 = vld [vmem:[%s2732 + $0x38] sm:$0xff]
    %v2741 = vld [vmem:[%s2732 + $0x40] sm:$0xff]
    %v2742 = vld [vmem:[%s2732 + $0x48] sm:$0xff]
    %v2743 = vld [vmem:[%s2732 + $0x50] sm:$0xff]
    %v2744 = vld [vmem:[%s2732 + $0x58] sm:$0xff]
    %v2745 = vld [vmem:[%s2732 + $0x60] sm:$0xff]
    %v2746 = vld [vmem:[%s2732 + $0x68] sm:$0xff]
    %v2747 = vld [vmem:[%s2732 + $0x70] sm:$0xff]
    %v2748 = vld [vmem:[%s2732 + $0x78] sm:$0xff]
    %v2749 = vld [vmem:[%s2732 + $0x80] sm:$0xff]
    %v2750 = vld [vmem:[%s2732 + $0x88] sm:$0xff]
    %v2751 = vld [vmem:[%s2732 + $0x90] sm:$0xff]
    %v2752 = vld [vmem:[%s2732 + $0x98] sm:$0xff]
    %v2753 = vld [vmem:[%s2732 + $0xa0] sm:$0xff]
    %v2754 = vld [vmem:[%s2732 + $0xa8] sm:$0xff]
    %v2755 = vld [vmem:[%s2732 + $0xb0] sm:$0xff]
    %v2756 = vld [vmem:[%s2732 + $0xb8] sm:$0xff]
    %v2757 = vld [vmem:[%s2732 + $0xc0] sm:$0xff]
    %v2758 = vld [vmem:[%s2732 + $0xc8] sm:$0xff]
    %v2759 = vld [vmem:[%s2732 + $0xd0] sm:$0xff]
    %v2760 = vld [vmem:[%s2732 + $0xd8] sm:$0xff]
    %v2761 = vld [vmem:[%s2732 + $0xe0] sm:$0xff]
    %v2762 = vld [vmem:[%s2732 + $0xe8] sm:$0xff]
    %v2763 = vld [vmem:[%s2732 + $0xf0] sm:$0xff]
    %v2764 = vld [vmem:[%s2732 + $0xf8] sm:$0xff]
    %v2765 = vld [vmem:[%s2732 + $0x100] sm:$0xff]
    %v2766 = vld [vmem:[%s2732 + $0x108] sm:$0xff]
    %v2767 = vld [vmem:[%s2732 + $0x110] sm:$0xff]
    %v2768 = vld [vmem:[%s2732 + $0x118] sm:$0xff]
    %v2769 = vld [vmem:[%s2732 + $0x120] sm:$0xff]
    %v2770 = vld [vmem:[%s2732 + $0x128] sm:$0xff]
    %v2771 = vld [vmem:[%s2732 + $0x130] sm:$0xff]
    %v2772 = vld [vmem:[%s2732 + $0x138] sm:$0xff]
    %v2773 = vld [vmem:[%s2732 + $0x140] sm:$0xff]
    %v2774 = vld [vmem:[%s2732 + $0x148] sm:$0xff]
    %v2775 = vld [vmem:[%s2732 + $0x150] sm:$0xff]
    %v2776 = vld [vmem:[%s2732 + $0x158] sm:$0xff]
    %v2777 = vld [vmem:[%s2732 + $0x160] sm:$0xff]
    %v2778 = vld [vmem:[%s2732 + $0x168] sm:$0xff]
    %v2779 = vld [vmem:[%s2732 + $0x170] sm:$0xff]
    %v2780 = vld [vmem:[%s2732 + $0x178] sm:$0xff]
    %v2781 = vld [vmem:[%s2732 + $0x180] sm:$0xff]
    %v2782 = vld [vmem:[%s2732 + $0x188] sm:$0xff]
    %v2783 = vld [vmem:[%s2732 + $0x190] sm:$0xff]
    %v2784 = vld [vmem:[%s2732 + $0x198] sm:$0xff]
    %v2785 = vld [vmem:[%s2732 + $0x1a0] sm:$0xff]
    %v2786 = vld [vmem:[%s2732 + $0x1a8] sm:$0xff]
    %v2787 = vld [vmem:[%s2732 + $0x1b0] sm:$0xff]
    %v2788 = vld [vmem:[%s2732 + $0x1b8] sm:$0xff]
    %v2789 = vld [vmem:[%s2732 + $0x1c0] sm:$0xff]
    %v2790 = vld [vmem:[%s2732 + $0x1c8] sm:$0xff]
    %v2791 = vld [vmem:[%s2732 + $0x1d0] sm:$0xff]
    %v2792 = vld [vmem:[%s2732 + $0x1d8] sm:$0xff]
    %v2793 = vld [vmem:[%s2732 + $0x1e0] sm:$0xff]
    %v2794 = vld [vmem:[%s2732 + $0x1e8] sm:$0xff]
    %v2795 = vld [vmem:[%s2732 + $0x1f0] sm:$0xff]
    %v2796 = vld [vmem:[%s2732 + $0x1f8] sm:$0xff]
    %v2797 = vld [vmem:[%s2732 + $0x200] sm:$0xff]
    %v2798 = vld [vmem:[%s2732 + $0x208] sm:$0xff]
    %v2799 = vld [vmem:[%s2732 + $0x210] sm:$0xff]
    %v2800 = vld [vmem:[%s2732 + $0x218] sm:$0xff]
    %v2801 = vld [vmem:[%s2732 + $0x220] sm:$0xff]
    %v2802 = vld [vmem:[%s2732 + $0x228] sm:$0xff]
    %v2803 = vld [vmem:[%s2732 + $0x230] sm:$0xff]
    %v2804 = vld [vmem:[%s2732 + $0x238] sm:$0xff]
    %v2805 = vld [vmem:[%s2732 + $0x240] sm:$0xff]
    %v2806 = vld [vmem:[%s2732 + $0x248] sm:$0xff]
    %v2807 = vld [vmem:[%s2732 + $0x250] sm:$0xff]
    %v2808 = vld [vmem:[%s2732 + $0x258] sm:$0xff]
    %v2809 = vld [vmem:[%s2732 + $0x260] sm:$0xff]
    %v2810 = vld [vmem:[%s2732 + $0x268] sm:$0xff]
    %v2811 = vld [vmem:[%s2732 + $0x270] sm:$0xff]
    %v2812 = vld [vmem:[%s2732 + $0x278] sm:$0xff]
    %v2813 = vld [vmem:[%s2732 + $0x280] sm:$0xff]
    %v2814 = vld [vmem:[%s2732 + $0x288] sm:$0xff]
    %v2815 = vld [vmem:[%s2732 + $0x290] sm:$0xff]
    %v2816 = vld [vmem:[%s2732 + $0x298] sm:$0xff]
    %v2817 = vld [vmem:[%s2732 + $0x2a0] sm:$0xff]
    %v2818 = vld [vmem:[%s2732 + $0x2a8] sm:$0xff]
    %v2819 = vld [vmem:[%s2732 + $0x2b0] sm:$0xff]
    %v2820 = vld [vmem:[%s2732 + $0x2b8] sm:$0xff]
    %v2821 = vld [vmem:[%s2732 + $0x2c0] sm:$0xff]
    %v2822 = vld [vmem:[%s2732 + $0x2c8] sm:$0xff]
    %v2823 = vld [vmem:[%s2732 + $0x2d0] sm:$0xff]
    %v2824 = vld [vmem:[%s2732 + $0x2d8] sm:$0xff]
    %v2825 = vld [vmem:[%s2732 + $0x2e0] sm:$0xff]
    %v2826 = vld [vmem:[%s2732 + $0x2e8] sm:$0xff]
    %v2827 = vld [vmem:[%s2732 + $0x2f0] sm:$0xff]
    %v2828 = vld [vmem:[%s2732 + $0x2f8] sm:$0xff]
    %v2829 = vld [vmem:[%s2732 + $0x300] sm:$0xff]
    %v2830 = vld [vmem:[%s2732 + $0x308] sm:$0xff]
    %v2831 = vld [vmem:[%s2732 + $0x310] sm:$0xff]
    %v2832 = vld [vmem:[%s2732 + $0x318] sm:$0xff]
    %v2833 = vld [vmem:[%s2732 + $0x320] sm:$0xff]
    %v2834 = vld [vmem:[%s2732 + $0x328] sm:$0xff]
    %v2835 = vld [vmem:[%s2732 + $0x330] sm:$0xff]
    %v2836 = vld [vmem:[%s2732 + $0x338] sm:$0xff]
    %v2837 = vld [vmem:[%s2732 + $0x340] sm:$0xff]
    %v2838 = vld [vmem:[%s2732 + $0x348] sm:$0xff]
    %v2839 = vld [vmem:[%s2732 + $0x350] sm:$0xff]
    %v2840 = vld [vmem:[%s2732 + $0x358] sm:$0xff]
    %v2841 = vld [vmem:[%s2732 + $0x360] sm:$0xff]
    %v2842 = vld [vmem:[%s2732 + $0x368] sm:$0xff]
    %v2843 = vld [vmem:[%s2732 + $0x370] sm:$0xff]
    %v2844 = vld [vmem:[%s2732 + $0x378] sm:$0xff]
    %v2845 = vld [vmem:[%s2732 + $0x380] sm:$0xff]
    %v2846 = vld [vmem:[%s2732 + $0x388] sm:$0xff]
    %v2847 = vld [vmem:[%s2732 + $0x390] sm:$0xff]
    %v2848 = vld [vmem:[%s2732 + $0x398] sm:$0xff]
    %v2849 = vld [vmem:[%s2732 + $0x3a0] sm:$0xff]
    %v2850 = vld [vmem:[%s2732 + $0x3a8] sm:$0xff]
    %v2851 = vld [vmem:[%s2732 + $0x3b0] sm:$0xff]
    %v2852 = vld [vmem:[%s2732 + $0x3b8] sm:$0xff]
    %v2854 = vsel %vm1778, %v2370, 0
    %v2857 = vsel %vm1778, %v2372, 0
    %v2860 = vsel %vm1778, %v2374, 0
    %v2863 = vsel %vm1778, %v2376, 0
    %v2866 = vsel %vm1778, %v2378, 0
    %v2869 = vsel %vm1778, %v2380, 0
    %v2872 = vsel %vm1778, %v2382, 0
    %v2875 = vsel %vm1778, %v2384, 0
    %2877 = vmatprep.subr.mxu0 %v2734
    %2878 = vmatpush1.msra.mxu0 %v2733
    %2879 = vmatprep.subr.mxu0 %v2738
    %2880 = vmatpush1.msra.mxu0 %v2737
    %2881 = vmatprep.subr.mxu0 %v2742
    %2882 = vmatpush1.msra.mxu0 %v2741
    %2883 = vmatprep.subr.mxu0 %v2746
    %2884 = vmatpush1.msra.mxu0 %v2745
    %2885 = vmatprep.subr.mxu0 %v2750
    %2886 = vmatpush1.msra.mxu0 %v2749
    %2887 = vmatprep.subr.mxu0 %v2754
    %2888 = vmatpush1.msra.mxu0 %v2753
    %2889 = vmatprep.subr.mxu0 %v2758
    %2890 = vmatpush1.msra.mxu0 %v2757
    %2891 = vmatprep.subr.mxu0 %v2762
    %2892 = vmatpush1.msra.mxu0 %v2761
    %2893 = vmatprep.subr.mxu0 %v2766
    %2894 = vmatpush1.msra.mxu0 %v2765
    %2895 = vmatprep.subr.mxu0 %v2770
    %2896 = vmatpush1.msra.mxu0 %v2769
    %2897 = vmatprep.subr.mxu0 %v2774
    %2898 = vmatpush1.msra.mxu0 %v2773
    %2899 = vmatprep.subr.mxu0 %v2778
    %2900 = vmatpush1.msra.mxu0 %v2777
    %2901 = vmatprep.subr.mxu0 %v2782
    %2902 = vmatpush1.msra.mxu0 %v2781
    %2903 = vmatprep.subr.mxu0 %v2786
    %2904 = vmatpush1.msra.mxu0 %v2785
    %2905 = vmatprep.subr.mxu0 %v2790
    %2906 = vmatpush1.msra.mxu0 %v2789
    %2907 = vmatprep.subr.mxu0 %v2794
    %2908 = vmatpush1.msra.mxu0 %v2793
    %2909 = vmatprep.subr.mxu0 %v2798
    %2910 = vmatpush1.msra.mxu0 %v2797
    %2911 = vmatprep.subr.mxu0 %v2802
    %2912 = vmatpush1.msra.mxu0 %v2801
    %2913 = vmatprep.subr.mxu0 %v2806
    %2914 = vmatpush1.msra.mxu0 %v2805
    %2915 = vmatprep.subr.mxu0 %v2810
    %2916 = vmatpush1.msra.mxu0 %v2809
    %2917 = vmatprep.subr.mxu0 %v2814
    %2918 = vmatpush1.msra.mxu0 %v2813
    %2919 = vmatprep.subr.mxu0 %v2818
    %2920 = vmatpush1.msra.mxu0 %v2817
    %2921 = vmatprep.subr.mxu0 %v2822
    %2922 = vmatpush1.msra.mxu0 %v2821
    %2923 = vmatprep.subr.mxu0 %v2826
    %2924 = vmatpush1.msra.mxu0 %v2825
    %2925 = vmatprep.subr.mxu0 %v2830
    %2926 = vmatpush1.msra.mxu0 %v2829
    %2927 = vmatprep.subr.mxu0 %v2834
    %2928 = vmatpush1.msra.mxu0 %v2833
    %2929 = vmatprep.subr.mxu0 %v2838
    %2930 = vmatpush1.msra.mxu0 %v2837
    %2931 = vmatprep.subr.mxu0 %v2842
    %2932 = vmatpush1.msra.mxu0 %v2841
    %2933 = vmatprep.subr.mxu0 %v2846
    %2934 = vmatpush1.msra.mxu0 %v2845
    %2935 = vmatprep.subr.mxu0 %v2850
    %2936 = vmatpush1.msra.mxu0 %v2849
    %2937 = vmatprep.subr.mxu0 0.0
    %2938 = vmatpush1.msra.mxu0 0.0
    %2939 = vmatprep.subr.mxu0 0.0
    %2940 = vmatpush1.msra.mxu0 0.0
    %2941 = vmatprep.mubr.f32.mxu0 %v2854
    %2942 = vmatmul.mubr.f32.gmra.mrb[0].mxu0 %v2369
    %v2943 = vpop.f32.mrb[0].mxu0
    %v2944 = vadd.f32 0.0, %v2943
    %v2945 = vpop.f32.mrb[0].mxu0
    %v2946 = vadd.f32 0.0, %v2945
    %2947 = vmatprep.mubr.f32.mxu0 %v2857
    %2948 = vmatmul.mubr.f32.gmra.mrb[0].mxu0 %v2371
    %v2949 = vpop.f32.mrb[0].mxu0
    %v2950 = vadd.f32 0.0, %v2949
    %v2951 = vpop.f32.mrb[0].mxu0
    %v2952 = vadd.f32 0.0, %v2951
    %2953 = vmatprep.mubr.f32.mxu0 %v2860
    %2954 = vmatmul.mubr.f32.gmra.mrb[0].mxu0 %v2373
    %v2955 = vpop.f32.mrb[0].mxu0
    %v2956 = vadd.f32 0.0, %v2955
    %v2957 = vpop.f32.mrb[0].mxu0
    %v2958 = vadd.f32 0.0, %v2957
    %2959 = vmatprep.mubr.f32.mxu0 %v2863
    %2960 = vmatmul.mubr.f32.gmra.mrb[0].mxu0 %v2375
    %v2961 = vpop.f32.mrb[0].mxu0
    %v2962 = vadd.f32 0.0, %v2961
    %v2963 = vpop.f32.mrb[0].mxu0
    %v2964 = vadd.f32 0.0, %v2963
    %2965 = vmatprep.mubr.f32.mxu0 %v2866
    %2966 = vmatmul.mubr.f32.gmra.mrb[0].mxu0 %v2377
    %v2967 = vpop.f32.mrb[0].mxu0
    %v2968 = vadd.f32 0.0, %v2967
    %v2969 = vpop.f32.mrb[0].mxu0
    %v2970 = vadd.f32 0.0, %v2969
    %2971 = vmatprep.mubr.f32.mxu0 %v2869
    %2972 = vmatmul.mubr.f32.gmra.mrb[0].mxu0 %v2379
    %v2973 = vpop.f32.mrb[0].mxu0
    %v2974 = vadd.f32 0.0, %v2973
    %v2975 = vpop.f32.mrb[0].mxu0
    %v2976 = vadd.f32 0.0, %v2975
    %2977 = vmatprep.mubr.f32.mxu0 %v2872
    %2978 = vmatmul.mubr.f32.gmra.mrb[0].mxu0 %v2381
    %v2979 = vpop.f32.mrb[0].mxu0
    %v2980 = vadd.f32 0.0, %v2979
    %v2981 = vpop.f32.mrb[0].mxu0
    %v2982 = vadd.f32 0.0, %v2981
    %2983 = vmatprep.mubr.f32.mxu0 %v2875
    %2984 = vmatmul.mubr.f32.gmra.mrb[0].mxu0 %v2383
    %v2985 = vpop.f32.mrb[0].mxu0
    %v2986 = vadd.f32 0.0, %v2985
    %v2987 = vpop.f32.mrb[0].mxu0
    %v2988 = vadd.f32 0.0, %v2987
    %2989 = vdwg.mxu0
    %2990 = vmatprep.subr.mxu0 %v2736
    %2991 = vmatpush1.msra.mxu0 %v2735
    %2992 = vmatprep.subr.mxu0 %v2740
    %2993 = vmatpush1.msra.mxu0 %v2739
    %2994 = vmatprep.subr.mxu0 %v2744
    %2995 = vmatpush1.msra.mxu0 %v2743
    %2996 = vmatprep.subr.mxu0 %v2748
    %2997 = vmatpush1.msra.mxu0 %v2747
    %2998 = vmatprep.subr.mxu0 %v2752
    %2999 = vmatpush1.msra.mxu0 %v2751
    %3000 = vmatprep.subr.mxu0 %v2756
    %3001 = vmatpush1.msra.mxu0 %v2755
    %3002 = vmatprep.subr.mxu0 %v2760
    %3003 = vmatpush1.msra.mxu0 %v2759
    %3004 = vmatprep.subr.mxu0 %v2764
    %3005 = vmatpush1.msra.mxu0 %v2763
    %3006 = vmatprep.subr.mxu0 %v2768
    %3007 = vmatpush1.msra.mxu0 %v2767
    %3008 = vmatprep.subr.mxu0 %v2772
    %3009 = vmatpush1.msra.mxu0 %v2771
    %3010 = vmatprep.subr.mxu0 %v2776
    %3011 = vmatpush1.msra.mxu0 %v2775
    %3012 = vmatprep.subr.mxu0 %v2780
    %3013 = vmatpush1.msra.mxu0 %v2779
    %3014 = vmatprep.subr.mxu0 %v2784
    %3015 = vmatpush1.msra.mxu0 %v2783
    %3016 = vmatprep.subr.mxu0 %v2788
    %3017 = vmatpush1.msra.mxu0 %v2787
    %3018 = vmatprep.subr.mxu0 %v2792
    %3019 = vmatpush1.msra.mxu0 %v2791
    %3020 = vmatprep.subr.mxu0 %v2796
    %3021 = vmatpush1.msra.mxu0 %v2795
    %3022 = vmatprep.subr.mxu0 %v2800
    %3023 = vmatpush1.msra.mxu0 %v2799
    %3024 = vmatprep.subr.mxu0 %v2804
    %3025 = vmatpush1.msra.mxu0 %v2803
    %3026 = vmatprep.subr.mxu0 %v2808
    %3027 = vmatpush1.msra.mxu0 %v2807
    %3028 = vmatprep.subr.mxu0 %v2812
    %3029 = vmatpush1.msra.mxu0 %v2811
    %3030 = vmatprep.subr.mxu0 %v2816
    %3031 = vmatpush1.msra.mxu0 %v2815
    %3032 = vmatprep.subr.mxu0 %v2820
    %3033 = vmatpush1.msra.mxu0 %v2819
    %3034 = vmatprep.subr.mxu0 %v2824
    %3035 = vmatpush1.msra.mxu0 %v2823
    %3036 = vmatprep.subr.mxu0 %v2828
    %3037 = vmatpush1.msra.mxu0 %v2827
    %3038 = vmatprep.subr.mxu0 %v2832
    %3039 = vmatpush1.msra.mxu0 %v2831
    %3040 = vmatprep.subr.mxu0 %v2836
    %3041 = vmatpush1.msra.mxu0 %v2835
    %3042 = vmatprep.subr.mxu0 %v2840
    %3043 = vmatpush1.msra.mxu0 %v2839
    %3044 = vmatprep.subr.mxu0 %v2844
    %3045 = vmatpush1.msra.mxu0 %v2843
    %3046 = vmatprep.subr.mxu0 %v2848
    %3047 = vmatpush1.msra.mxu0 %v2847
    %3048 = vmatprep.subr.mxu0 %v2852
    %3049 = vmatpush1.msra.mxu0 %v2851
    %3050 = vmatprep.subr.mxu0 0.0
    %3051 = vmatpush1.msra.mxu0 0.0
    %3052 = vmatprep.subr.mxu0 0.0
    %3053 = vmatpush1.msra.mxu0 0.0
    %3054 = vmatprep.mubr.f32.mxu0 %v2854
    %3055 = vmatmul.mubr.f32.gmra.mrb[0].mxu0 %v2369
    %v3056 = vpop.f32.mrb[0].mxu0
    %v3057 = vadd.f32 0.0, %v3056
    %v3058 = vpop.f32.mrb[0].mxu0
    %v3059 = vadd.f32 0.0, %v3058
    %3060 = vmatprep.mubr.f32.mxu0 %v2857
    %3061 = vmatmul.mubr.f32.gmra.mrb[0].mxu0 %v2371
    %v3062 = vpop.f32.mrb[0].mxu0
    %v3063 = vadd.f32 0.0, %v3062
    %v3064 = vpop.f32.mrb[0].mxu0
    %v3065 = vadd.f32 0.0, %v3064
    %3066 = vmatprep.mubr.f32.mxu0 %v2860
    %3067 = vmatmul.mubr.f32.gmra.mrb[0].mxu0 %v2373
    %v3068 = vpop.f32.mrb[0].mxu0
    %v3069 = vadd.f32 0.0, %v3068
    %v3070 = vpop.f32.mrb[0].mxu0
    %v3071 = vadd.f32 0.0, %v3070
    %3072 = vmatprep.mubr.f32.mxu0 %v2863
    %3073 = vmatmul.mubr.f32.gmra.mrb[0].mxu0 %v2375
    %v3074 = vpop.f32.mrb[0].mxu0
    %v3075 = vadd.f32 0.0, %v3074
    %v3076 = vpop.f32.mrb[0].mxu0
    %v3077 = vadd.f32 0.0, %v3076
    %3078 = vmatprep.mubr.f32.mxu0 %v2866
    %3079 = vmatmul.mubr.f32.gmra.mrb[0].mxu0 %v2377
    %v3080 = vpop.f32.mrb[0].mxu0
    %v3081 = vadd.f32 0.0, %v3080
    %v3082 = vpop.f32.mrb[0].mxu0
    %v3083 = vadd.f32 0.0, %v3082
    %3084 = vmatprep.mubr.f32.mxu0 %v2869
    %3085 = vmatmul.mubr.f32.gmra.mrb[0].mxu0 %v2379
    %v3086 = vpop.f32.mrb[0].mxu0
    %v3087 = vadd.f32 0.0, %v3086
    %v3088 = vpop.f32.mrb[0].mxu0
    %v3089 = vadd.f32 0.0, %v3088
    %3090 = vmatprep.mubr.f32.mxu0 %v2872
    %3091 = vmatmul.mubr.f32.gmra.mrb[0].mxu0 %v2381
    %v3092 = vpop.f32.mrb[0].mxu0
    %v3093 = vadd.f32 0.0, %v3092
    %v3094 = vpop.f32.mrb[0].mxu0
    %v3095 = vadd.f32 0.0, %v3094
    %3096 = vmatprep.mubr.f32.mxu0 %v2875
    %3097 = vmatmul.mubr.f32.gmra.mrb[0].mxu0 %v2383
    %v3098 = vpop.f32.mrb[0].mxu0
    %v3099 = vadd.f32 0.0, %v3098
    %v3100 = vpop.f32.mrb[0].mxu0
    %v3101 = vadd.f32 0.0, %v3100
    %3102 = vdwg.mxu0
    %v3104 = vsel %vm1778, %v2455, 0
    %v3107 = vsel %vm1778, %v2461, 0
    %v3110 = vsel %vm1778, %v2467, 0
    %v3113 = vsel %vm1778, %v2473, 0
    %v3116 = vsel %vm1778, %v2479, 0
    %v3119 = vsel %vm1778, %v2485, 0
    %v3122 = vsel %vm1778, %v2491, 0
    %v3125 = vsel %vm1778, %v2497, 0
    %3127 = vmatprep.subr.mxu0 %v2613
    %3128 = vmatpush1.msra.mxu0 %v2612
    %3129 = vmatprep.subr.mxu0 %v2617
    %3130 = vmatpush1.msra.mxu0 %v2616
    %3131 = vmatprep.subr.mxu0 %v2621
    %3132 = vmatpush1.msra.mxu0 %v2620
    %3133 = vmatprep.subr.mxu0 %v2625
    %3134 = vmatpush1.msra.mxu0 %v2624
    %3135 = vmatprep.subr.mxu0 %v2629
    %3136 = vmatpush1.msra.mxu0 %v2628
    %3137 = vmatprep.subr.mxu0 %v2633
    %3138 = vmatpush1.msra.mxu0 %v2632
    %3139 = vmatprep.subr.mxu0 %v2637
    %3140 = vmatpush1.msra.mxu0 %v2636
    %3141 = vmatprep.subr.mxu0 %v2641
    %3142 = vmatpush1.msra.mxu0 %v2640
    %3143 = vmatprep.subr.mxu0 %v2645
    %3144 = vmatpush1.msra.mxu0 %v2644
    %3145 = vmatprep.subr.mxu0 %v2649
    %3146 = vmatpush1.msra.mxu0 %v2648
    %3147 = vmatprep.subr.mxu0 %v2653
    %3148 = vmatpush1.msra.mxu0 %v2652
    %3149 = vmatprep.subr.mxu0 %v2657
    %3150 = vmatpush1.msra.mxu0 %v2656
    %3151 = vmatprep.subr.mxu0 %v2661
    %3152 = vmatpush1.msra.mxu0 %v2660
    %3153 = vmatprep.subr.mxu0 %v2665
    %3154 = vmatpush1.msra.mxu0 %v2664
    %3155 = vmatprep.subr.mxu0 %v2669
    %3156 = vmatpush1.msra.mxu0 %v2668
    %3157 = vmatprep.subr.mxu0 %v2673
    %3158 = vmatpush1.msra.mxu0 %v2672
    %3159 = vmatprep.subr.mxu0 %v2677
    %3160 = vmatpush1.msra.mxu0 %v2676
    %3161 = vmatprep.subr.mxu0 %v2681
    %3162 = vmatpush1.msra.mxu0 %v2680
    %3163 = vmatprep.subr.mxu0 %v2685
    %3164 = vmatpush1.msra.mxu0 %v2684
    %3165 = vmatprep.subr.mxu0 %v2689
    %3166 = vmatpush1.msra.mxu0 %v2688
    %3167 = vmatprep.subr.mxu0 %v2693
    %3168 = vmatpush1.msra.mxu0 %v2692
    %3169 = vmatprep.subr.mxu0 %v2697
    %3170 = vmatpush1.msra.mxu0 %v2696
    %3171 = vmatprep.subr.mxu0 %v2701
    %3172 = vmatpush1.msra.mxu0 %v2700
    %3173 = vmatprep.subr.mxu0 %v2705
    %3174 = vmatpush1.msra.mxu0 %v2704
    %3175 = vmatprep.subr.mxu0 %v2709
    %3176 = vmatpush1.msra.mxu0 %v2708
    %3177 = vmatprep.subr.mxu0 %v2713
    %3178 = vmatpush1.msra.mxu0 %v2712
    %3179 = vmatprep.subr.mxu0 %v2717
    %3180 = vmatpush1.msra.mxu0 %v2716
    %3181 = vmatprep.subr.mxu0 %v2721
    %3182 = vmatpush1.msra.mxu0 %v2720
    %3183 = vmatprep.subr.mxu0 %v2725
    %3184 = vmatpush1.msra.mxu0 %v2724
    %3185 = vmatprep.subr.mxu0 %v2729
    %3186 = vmatpush1.msra.mxu0 %v2728
    %3187 = vmatprep.subr.mxu0 0.0
    %3188 = vmatpush1.msra.mxu0 0.0
    %3189 = vmatprep.subr.mxu0 0.0
    %3190 = vmatpush1.msra.mxu0 0.0
    %3191 = vmatprep.mubr.f32.mxu0 %v3104
    %3192 = vmatmul.mubr.f32.gmra.mrb[0].mxu0 %v2453
    %v3193 = vpop.f32.mrb[0].mxu0
    %v3194 = vadd.f32 %v2944, %v3193
    %v3195 = vpop.f32.mrb[0].mxu0
    %v3196 = vadd.f32 %v2946, %v3195
    %3197 = vmatprep.mubr.f32.mxu0 %v3107
    %3198 = vmatmul.mubr.f32.gmra.mrb[0].mxu0 %v2459
    %v3199 = vpop.f32.mrb[0].mxu0
    %v3200 = vadd.f32 %v2950, %v3199
    %v3201 = vpop.f32.mrb[0].mxu0
    %v3202 = vadd.f32 %v2952, %v3201
    %3203 = vmatprep.mubr.f32.mxu0 %v3110
    %3204 = vmatmul.mubr.f32.gmra.mrb[0].mxu0 %v2465
    %v3205 = vpop.f32.mrb[0].mxu0
    %v3206 = vadd.f32 %v2956, %v3205
    %v3207 = vpop.f32.mrb[0].mxu0
    %v3208 = vadd.f32 %v2958, %v3207
    %3209 = vmatprep.mubr.f32.mxu0 %v3113
    %3210 = vmatmul.mubr.f32.gmra.mrb[0].mxu0 %v2471
    %v3211 = vpop.f32.mrb[0].mxu0
    %v3212 = vadd.f32 %v2962, %v3211
    %v3213 = vpop.f32.mrb[0].mxu0
    %v3214 = vadd.f32 %v2964, %v3213
    %3215 = vmatprep.mubr.f32.mxu0 %v3116
    %3216 = vmatmul.mubr.f32.gmra.mrb[0].mxu0 %v2477
    %v3217 = vpop.f32.mrb[0].mxu0
    %v3218 = vadd.f32 %v2968, %v3217
    %v3219 = vpop.f32.mrb[0].mxu0
    %v3220 = vadd.f32 %v2970, %v3219
    %3221 = vmatprep.mubr.f32.mxu0 %v3119
    %3222 = vmatmul.mubr.f32.gmra.mrb[0].mxu0 %v2483
    %v3223 = vpop.f32.mrb[0].mxu0
    %v3224 = vadd.f32 %v2974, %v3223
    %v3225 = vpop.f32.mrb[0].mxu0
    %v3226 = vadd.f32 %v2976, %v3225
    %3227 = vmatprep.mubr.f32.mxu0 %v3122
    %3228 = vmatmul.mubr.f32.gmra.mrb[0].mxu0 %v2489
    %v3229 = vpop.f32.mrb[0].mxu0
    %v3230 = vadd.f32 %v2980, %v3229
    %v3231 = vpop.f32.mrb[0].mxu0
    %v3232 = vadd.f32 %v2982, %v3231
    %3233 = vmatprep.mubr.f32.mxu0 %v3125
    %3234 = vmatmul.mubr.f32.gmra.mrb[0].mxu0 %v2495
    %v3235 = vpop.f32.mrb[0].mxu0
    %v3236 = vadd.f32 %v2986, %v3235
    %v3237 = vpop.f32.mrb[0].mxu0
    %v3238 = vadd.f32 %v2988, %v3237
    %3239 = vdwg.mxu0
    %3240 = vmatprep.subr.mxu0 %v2615
    %3241 = vmatpush1.msra.mxu0 %v2614
    %3242 = vmatprep.subr.mxu0 %v2619
    %3243 = vmatpush1.msra.mxu0 %v2618
    %3244 = vmatprep.subr.mxu0 %v2623
    %3245 = vmatpush1.msra.mxu0 %v2622
    %3246 = vmatprep.subr.mxu0 %v2627
    %3247 = vmatpush1.msra.mxu0 %v2626
    %3248 = vmatprep.subr.mxu0 %v2631
    %3249 = vmatpush1.msra.mxu0 %v2630
    %3250 = vmatprep.subr.mxu0 %v2635
    %3251 = vmatpush1.msra.mxu0 %v2634
    %3252 = vmatprep.subr.mxu0 %v2639
    %3253 = vmatpush1.msra.mxu0 %v2638
    %3254 = vmatprep.subr.mxu0 %v2643
    %3255 = vmatpush1.msra.mxu0 %v2642
    %3256 = vmatprep.subr.mxu0 %v2647
    %3257 = vmatpush1.msra.mxu0 %v2646
    %3258 = vmatprep.subr.mxu0 %v2651
    %3259 = vmatpush1.msra.mxu0 %v2650
    %3260 = vmatprep.subr.mxu0 %v2655
    %3261 = vmatpush1.msra.mxu0 %v2654
    %3262 = vmatprep.subr.mxu0 %v2659
    %3263 = vmatpush1.msra.mxu0 %v2658
    %3264 = vmatprep.subr.mxu0 %v2663
    %3265 = vmatpush1.msra.mxu0 %v2662
    %3266 = vmatprep.subr.mxu0 %v2667
    %3267 = vmatpush1.msra.mxu0 %v2666
    %3268 = vmatprep.subr.mxu0 %v2671
    %3269 = vmatpush1.msra.mxu0 %v2670
    %3270 = vmatprep.subr.mxu0 %v2675
    %3271 = vmatpush1.msra.mxu0 %v2674
    %3272 = vmatprep.subr.mxu0 %v2679
    %3273 = vmatpush1.msra.mxu0 %v2678
    %3274 = vmatprep.subr.mxu0 %v2683
    %3275 = vmatpush1.msra.mxu0 %v2682
    %3276 = vmatprep.subr.mxu0 %v2687
    %3277 = vmatpush1.msra.mxu0 %v2686
    %3278 = vmatprep.subr.mxu0 %v2691
    %3279 = vmatpush1.msra.mxu0 %v2690
    %3280 = vmatprep.subr.mxu0 %v2695
    %3281 = vmatpush1.msra.mxu0 %v2694
    %3282 = vmatprep.subr.mxu0 %v2699
    %3283 = vmatpush1.msra.mxu0 %v2698
    %3284 = vmatprep.subr.mxu0 %v2703
    %3285 = vmatpush1.msra.mxu0 %v2702
    %3286 = vmatprep.subr.mxu0 %v2707
    %3287 = vmatpush1.msra.mxu0 %v2706
    %3288 = vmatprep.subr.mxu0 %v2711
    %3289 = vmatpush1.msra.mxu0 %v2710
    %3290 = vmatprep.subr.mxu0 %v2715
    %3291 = vmatpush1.msra.mxu0 %v2714
    %3292 = vmatprep.subr.mxu0 %v2719
    %3293 = vmatpush1.msra.mxu0 %v2718
    %3294 = vmatprep.subr.mxu0 %v2723
    %3295 = vmatpush1.msra.mxu0 %v2722
    %3296 = vmatprep.subr.mxu0 %v2727
    %3297 = vmatpush1.msra.mxu0 %v2726
    %3298 = vmatprep.subr.mxu0 %v2731
    %3299 = vmatpush1.msra.mxu0 %v2730
    %3300 = vmatprep.subr.mxu0 0.0
    %3301 = vmatpush1.msra.mxu0 0.0
    %3302 = vmatprep.subr.mxu0 0.0
    %3303 = vmatpush1.msra.mxu0 0.0
    %3304 = vmatprep.mubr.f32.mxu0 %v3104
    %3305 = vmatmul.mubr.f32.gmra.mrb[0].mxu0 %v2453
    %v3306 = vpop.f32.mrb[0].mxu0
    %v3307 = vadd.f32 %v3057, %v3306
    %v3308 = vpop.f32.mrb[0].mxu0
    %v3309 = vadd.f32 %v3059, %v3308
    %3310 = vmatprep.mubr.f32.mxu0 %v3107
    %3311 = vmatmul.mubr.f32.gmra.mrb[0].mxu0 %v2459
    %v3312 = vpop.f32.mrb[0].mxu0
    %v3313 = vadd.f32 %v3063, %v3312
    %v3314 = vpop.f32.mrb[0].mxu0
    %v3315 = vadd.f32 %v3065, %v3314
    %3316 = vmatprep.mubr.f32.mxu0 %v3110
    %3317 = vmatmul.mubr.f32.gmra.mrb[0].mxu0 %v2465
    %v3318 = vpop.f32.mrb[0].mxu0
    %v3319 = vadd.f32 %v3069, %v3318
    %v3320 = vpop.f32.mrb[0].mxu0
    %v3321 = vadd.f32 %v3071, %v3320
    %3322 = vmatprep.mubr.f32.mxu0 %v3113
    %3323 = vmatmul.mubr.f32.gmra.mrb[0].mxu0 %v2471
    %v3324 = vpop.f32.mrb[0].mxu0
    %v3325 = vadd.f32 %v3075, %v3324
    %v3326 = vpop.f32.mrb[0].mxu0
    %v3327 = vadd.f32 %v3077, %v3326
    %3328 = vmatprep.mubr.f32.mxu0 %v3116
    %3329 = vmatmul.mubr.f32.gmra.mrb[0].mxu0 %v2477
    %v3330 = vpop.f32.mrb[0].mxu0
    %v3331 = vadd.f32 %v3081, %v3330
    %v3332 = vpop.f32.mrb[0].mxu0
    %v3333 = vadd.f32 %v3083, %v3332
    %3334 = vmatprep.mubr.f32.mxu0 %v3119
    %3335 = vmatmul.mubr.f32.gmra.mrb[0].mxu0 %v2483
    %v3336 = vpop.f32.mrb[0].mxu0
    %v3337 = vadd.f32 %v3087, %v3336
    %v3338 = vpop.f32.mrb[0].mxu0
    %v3339 = vadd.f32 %v3089, %v3338
    %3340 = vmatprep.mubr.f32.mxu0 %v3122
    %3341 = vmatmul.mubr.f32.gmra.mrb[0].mxu0 %v2489
    %v3342 = vpop.f32.mrb[0].mxu0
    %v3343 = vadd.f32 %v3093, %v3342
    %v3344 = vpop.f32.mrb[0].mxu0
    %v3345 = vadd.f32 %v3095, %v3344
    %3346 = vmatprep.mubr.f32.mxu0 %v3125
    %3347 = vmatmul.mubr.f32.gmra.mrb[0].mxu0 %v2495
    %v3348 = vpop.f32.mrb[0].mxu0
    %v3349 = vadd.f32 %v3099, %v3348
    %v3350 = vpop.f32.mrb[0].mxu0
    %v3351 = vadd.f32 %v3101, %v3350
    %3352 = vdwg.mxu0
    %s3353 = scalar_lea.vmem %s11, 1920
    %v3354 = vld [vmem:[%s3353] sm:$0xff]
    %v3355 = vld [vmem:[%s3353 + $0x8] sm:$0xff]
    %v3356 = vld [vmem:[%s3353 + $0x10] sm:$0xff]
    %v3357 = vld [vmem:[%s3353 + $0x18] sm:$0xff]
    %v3358 = vld [vmem:[%s3353 + $0x20] sm:$0xff]
    %v3359 = vld [vmem:[%s3353 + $0x28] sm:$0xff]
    %v3360 = vld [vmem:[%s3353 + $0x30] sm:$0xff]
    %v3361 = vld [vmem:[%s3353 + $0x38] sm:$0xff]
    %v3362 = vld [vmem:[%s3353 + $0x40] sm:$0xff]
    %v3363 = vld [vmem:[%s3353 + $0x48] sm:$0xff]
    %v3364 = vld [vmem:[%s3353 + $0x50] sm:$0xff]
    %v3365 = vld [vmem:[%s3353 + $0x58] sm:$0xff]
    %v3366 = vld [vmem:[%s3353 + $0x60] sm:$0xff]
    %v3367 = vld [vmem:[%s3353 + $0x68] sm:$0xff]
    %v3368 = vld [vmem:[%s3353 + $0x70] sm:$0xff]
    %v3369 = vld [vmem:[%s3353 + $0x78] sm:$0xff]
    %v3370 = vld [vmem:[%s3353 + $0x80] sm:$0xff]
    %v3371 = vld [vmem:[%s3353 + $0x88] sm:$0xff]
    %v3372 = vld [vmem:[%s3353 + $0x90] sm:$0xff]
    %v3373 = vld [vmem:[%s3353 + $0x98] sm:$0xff]
    %v3374 = vld [vmem:[%s3353 + $0xa0] sm:$0xff]
    %v3375 = vld [vmem:[%s3353 + $0xa8] sm:$0xff]
    %v3376 = vld [vmem:[%s3353 + $0xb0] sm:$0xff]
    %v3377 = vld [vmem:[%s3353 + $0xb8] sm:$0xff]
    %v3378 = vld [vmem:[%s3353 + $0xc0] sm:$0xff]
    %v3379 = vld [vmem:[%s3353 + $0xc8] sm:$0xff]
    %v3380 = vld [vmem:[%s3353 + $0xd0] sm:$0xff]
    %v3381 = vld [vmem:[%s3353 + $0xd8] sm:$0xff]
    %v3382 = vld [vmem:[%s3353 + $0xe0] sm:$0xff]
    %v3383 = vld [vmem:[%s3353 + $0xe8] sm:$0xff]
    %v3384 = vld [vmem:[%s3353 + $0xf0] sm:$0xff]
    %v3385 = vld [vmem:[%s3353 + $0xf8] sm:$0xff]
    %v3386 = vld [vmem:[%s3353 + $0x100] sm:$0xff]
    %v3387 = vld [vmem:[%s3353 + $0x108] sm:$0xff]
    %v3388 = vld [vmem:[%s3353 + $0x110] sm:$0xff]
    %v3389 = vld [vmem:[%s3353 + $0x118] sm:$0xff]
    %v3390 = vld [vmem:[%s3353 + $0x120] sm:$0xff]
    %v3391 = vld [vmem:[%s3353 + $0x128] sm:$0xff]
    %v3392 = vld [vmem:[%s3353 + $0x130] sm:$0xff]
    %v3393 = vld [vmem:[%s3353 + $0x138] sm:$0xff]
    %v3394 = vld [vmem:[%s3353 + $0x140] sm:$0xff]
    %v3395 = vld [vmem:[%s3353 + $0x148] sm:$0xff]
    %v3396 = vld [vmem:[%s3353 + $0x150] sm:$0xff]
    %v3397 = vld [vmem:[%s3353 + $0x158] sm:$0xff]
    %v3398 = vld [vmem:[%s3353 + $0x160] sm:$0xff]
    %v3399 = vld [vmem:[%s3353 + $0x168] sm:$0xff]
    %v3400 = vld [vmem:[%s3353 + $0x170] sm:$0xff]
    %v3401 = vld [vmem:[%s3353 + $0x178] sm:$0xff]
    %v3402 = vld [vmem:[%s3353 + $0x180] sm:$0xff]
    %v3403 = vld [vmem:[%s3353 + $0x188] sm:$0xff]
    %v3404 = vld [vmem:[%s3353 + $0x190] sm:$0xff]
    %v3405 = vld [vmem:[%s3353 + $0x198] sm:$0xff]
    %v3406 = vld [vmem:[%s3353 + $0x1a0] sm:$0xff]
    %v3407 = vld [vmem:[%s3353 + $0x1a8] sm:$0xff]
    %v3408 = vld [vmem:[%s3353 + $0x1b0] sm:$0xff]
    %v3409 = vld [vmem:[%s3353 + $0x1b8] sm:$0xff]
    %v3410 = vld [vmem:[%s3353 + $0x1c0] sm:$0xff]
    %v3411 = vld [vmem:[%s3353 + $0x1c8] sm:$0xff]
    %v3412 = vld [vmem:[%s3353 + $0x1d0] sm:$0xff]
    %v3413 = vld [vmem:[%s3353 + $0x1d8] sm:$0xff]
    %v3414 = vld [vmem:[%s3353 + $0x1e0] sm:$0xff]
    %v3415 = vld [vmem:[%s3353 + $0x1e8] sm:$0xff]
    %v3416 = vld [vmem:[%s3353 + $0x1f0] sm:$0xff]
    %v3417 = vld [vmem:[%s3353 + $0x1f8] sm:$0xff]
    %v3418 = vld [vmem:[%s3353 + $0x200] sm:$0xff]
    %v3419 = vld [vmem:[%s3353 + $0x208] sm:$0xff]
    %v3420 = vld [vmem:[%s3353 + $0x210] sm:$0xff]
    %v3421 = vld [vmem:[%s3353 + $0x218] sm:$0xff]
    %v3422 = vld [vmem:[%s3353 + $0x220] sm:$0xff]
    %v3423 = vld [vmem:[%s3353 + $0x228] sm:$0xff]
    %v3424 = vld [vmem:[%s3353 + $0x230] sm:$0xff]
    %v3425 = vld [vmem:[%s3353 + $0x238] sm:$0xff]
    %v3426 = vld [vmem:[%s3353 + $0x240] sm:$0xff]
    %v3427 = vld [vmem:[%s3353 + $0x248] sm:$0xff]
    %v3428 = vld [vmem:[%s3353 + $0x250] sm:$0xff]
    %v3429 = vld [vmem:[%s3353 + $0x258] sm:$0xff]
    %v3430 = vld [vmem:[%s3353 + $0x260] sm:$0xff]
    %v3431 = vld [vmem:[%s3353 + $0x268] sm:$0xff]
    %v3432 = vld [vmem:[%s3353 + $0x270] sm:$0xff]
    %v3433 = vld [vmem:[%s3353 + $0x278] sm:$0xff]
    %v3434 = vld [vmem:[%s3353 + $0x280] sm:$0xff]
    %v3435 = vld [vmem:[%s3353 + $0x288] sm:$0xff]
    %v3436 = vld [vmem:[%s3353 + $0x290] sm:$0xff]
    %v3437 = vld [vmem:[%s3353 + $0x298] sm:$0xff]
    %v3438 = vld [vmem:[%s3353 + $0x2a0] sm:$0xff]
    %v3439 = vld [vmem:[%s3353 + $0x2a8] sm:$0xff]
    %v3440 = vld [vmem:[%s3353 + $0x2b0] sm:$0xff]
    %v3441 = vld [vmem:[%s3353 + $0x2b8] sm:$0xff]
    %v3442 = vld [vmem:[%s3353 + $0x2c0] sm:$0xff]
    %v3443 = vld [vmem:[%s3353 + $0x2c8] sm:$0xff]
    %v3444 = vld [vmem:[%s3353 + $0x2d0] sm:$0xff]
    %v3445 = vld [vmem:[%s3353 + $0x2d8] sm:$0xff]
    %v3446 = vld [vmem:[%s3353 + $0x2e0] sm:$0xff]
    %v3447 = vld [vmem:[%s3353 + $0x2e8] sm:$0xff]
    %v3448 = vld [vmem:[%s3353 + $0x2f0] sm:$0xff]
    %v3449 = vld [vmem:[%s3353 + $0x2f8] sm:$0xff]
    %v3450 = vld [vmem:[%s3353 + $0x300] sm:$0xff]
    %v3451 = vld [vmem:[%s3353 + $0x308] sm:$0xff]
    %v3452 = vld [vmem:[%s3353 + $0x310] sm:$0xff]
    %v3453 = vld [vmem:[%s3353 + $0x318] sm:$0xff]
    %v3454 = vld [vmem:[%s3353 + $0x320] sm:$0xff]
    %v3455 = vld [vmem:[%s3353 + $0x328] sm:$0xff]
    %v3456 = vld [vmem:[%s3353 + $0x330] sm:$0xff]
    %v3457 = vld [vmem:[%s3353 + $0x338] sm:$0xff]
    %v3458 = vld [vmem:[%s3353 + $0x340] sm:$0xff]
    %v3459 = vld [vmem:[%s3353 + $0x348] sm:$0xff]
    %v3460 = vld [vmem:[%s3353 + $0x350] sm:$0xff]
    %v3461 = vld [vmem:[%s3353 + $0x358] sm:$0xff]
    %v3462 = vld [vmem:[%s3353 + $0x360] sm:$0xff]
    %v3463 = vld [vmem:[%s3353 + $0x368] sm:$0xff]
    %v3464 = vld [vmem:[%s3353 + $0x370] sm:$0xff]
    %v3465 = vld [vmem:[%s3353 + $0x378] sm:$0xff]
    %v3466 = vld [vmem:[%s3353 + $0x380] sm:$0xff]
    %v3467 = vld [vmem:[%s3353 + $0x388] sm:$0xff]
    %v3468 = vld [vmem:[%s3353 + $0x390] sm:$0xff]
    %v3469 = vld [vmem:[%s3353 + $0x398] sm:$0xff]
    %v3470 = vld [vmem:[%s3353 + $0x3a0] sm:$0xff]
    %v3471 = vld [vmem:[%s3353 + $0x3a8] sm:$0xff]
    %v3472 = vld [vmem:[%s3353 + $0x3b0] sm:$0xff]
    %v3473 = vld [vmem:[%s3353 + $0x3b8] sm:$0xff]
    %v3475 = vsel %vm1778, %v2568, 0
    %v3478 = vsel %vm1778, %v2574, 0
    %v3481 = vsel %vm1778, %v2580, 0
    %v3484 = vsel %vm1778, %v2586, 0
    %v3487 = vsel %vm1778, %v2592, 0
    %v3490 = vsel %vm1778, %v2598, 0
    %v3493 = vsel %vm1778, %v2604, 0
    %v3496 = vsel %vm1778, %v2610, 0
    %3498 = vmatprep.subr.mxu0 %v3355
    %3499 = vmatpush1.msra.mxu0 %v3354
    %3500 = vmatprep.subr.mxu0 %v3359
    %3501 = vmatpush1.msra.mxu0 %v3358
    %3502 = vmatprep.subr.mxu0 %v3363
    %3503 = vmatpush1.msra.mxu0 %v3362
    %3504 = vmatprep.subr.mxu0 %v3367
    %3505 = vmatpush1.msra.mxu0 %v3366
    %3506 = vmatprep.subr.mxu0 %v3371
    %3507 = vmatpush1.msra.mxu0 %v3370
    %3508 = vmatprep.subr.mxu0 %v3375
    %3509 = vmatpush1.msra.mxu0 %v3374
    %3510 = vmatprep.subr.mxu0 %v3379
    %3511 = vmatpush1.msra.mxu0 %v3378
    %3512 = vmatprep.subr.mxu0 %v3383
    %3513 = vmatpush1.msra.mxu0 %v3382
    %3514 = vmatprep.subr.mxu0 %v3387
    %3515 = vmatpush1.msra.mxu0 %v3386
    %3516 = vmatprep.subr.mxu0 %v3391
    %3517 = vmatpush1.msra.mxu0 %v3390
    %3518 = vmatprep.subr.mxu0 %v3395
    %3519 = vmatpush1.msra.mxu0 %v3394
    %3520 = vmatprep.subr.mxu0 %v3399
    %3521 = vmatpush1.msra.mxu0 %v3398
    %3522 = vmatprep.subr.mxu0 %v3403
    %3523 = vmatpush1.msra.mxu0 %v3402
    %3524 = vmatprep.subr.mxu0 %v3407
    %3525 = vmatpush1.msra.mxu0 %v3406
    %3526 = vmatprep.subr.mxu0 %v3411
    %3527 = vmatpush1.msra.mxu0 %v3410
    %3528 = vmatprep.subr.mxu0 %v3415
    %3529 = vmatpush1.msra.mxu0 %v3414
    %3530 = vmatprep.subr.mxu0 %v3419
    %3531 = vmatpush1.msra.mxu0 %v3418
    %3532 = vmatprep.subr.mxu0 %v3423
    %3533 = vmatpush1.msra.mxu0 %v3422
    %3534 = vmatprep.subr.mxu0 %v3427
    %3535 = vmatpush1.msra.mxu0 %v3426
    %3536 = vmatprep.subr.mxu0 %v3431
    %3537 = vmatpush1.msra.mxu0 %v3430
    %3538 = vmatprep.subr.mxu0 %v3435
    %3539 = vmatpush1.msra.mxu0 %v3434
    %3540 = vmatprep.subr.mxu0 %v3439
    %3541 = vmatpush1.msra.mxu0 %v3438
    %3542 = vmatprep.subr.mxu0 %v3443
    %3543 = vmatpush1.msra.mxu0 %v3442
    %3544 = vmatprep.subr.mxu0 %v3447
    %3545 = vmatpush1.msra.mxu0 %v3446
    %3546 = vmatprep.subr.mxu0 %v3451
    %3547 = vmatpush1.msra.mxu0 %v3450
    %3548 = vmatprep.subr.mxu0 %v3455
    %3549 = vmatpush1.msra.mxu0 %v3454
    %3550 = vmatprep.subr.mxu0 %v3459
    %3551 = vmatpush1.msra.mxu0 %v3458
    %3552 = vmatprep.subr.mxu0 %v3463
    %3553 = vmatpush1.msra.mxu0 %v3462
    %3554 = vmatprep.subr.mxu0 %v3467
    %3555 = vmatpush1.msra.mxu0 %v3466
    %3556 = vmatprep.subr.mxu0 %v3471
    %3557 = vmatpush1.msra.mxu0 %v3470
    %3558 = vmatprep.subr.mxu0 0.0
    %3559 = vmatpush1.msra.mxu0 0.0
    %3560 = vmatprep.subr.mxu0 0.0
    %3561 = vmatpush1.msra.mxu0 0.0
    %3562 = vmatprep.mubr.f32.mxu0 %v3475
    %3563 = vmatmul.mubr.f32.gmra.mrb[0].mxu0 %v2566
    %v3564 = vpop.f32.mrb[0].mxu0
    %v3565 = vadd.f32 0.0, %v3564
    %v3566 = vpop.f32.mrb[0].mxu0
    %v3567 = vadd.f32 0.0, %v3566
    %3568 = vmatprep.mubr.f32.mxu0 %v3478
    %3569 = vmatmul.mubr.f32.gmra.mrb[0].mxu0 %v2572
    %v3570 = vpop.f32.mrb[0].mxu0
    %v3571 = vadd.f32 0.0, %v3570
    %v3572 = vpop.f32.mrb[0].mxu0
    %v3573 = vadd.f32 0.0, %v3572
    %3574 = vmatprep.mubr.f32.mxu0 %v3481
    %3575 = vmatmul.mubr.f32.gmra.mrb[0].mxu0 %v2578
    %v3576 = vpop.f32.mrb[0].mxu0
    %v3577 = vadd.f32 0.0, %v3576
    %v3578 = vpop.f32.mrb[0].mxu0
    %v3579 = vadd.f32 0.0, %v3578
    %3580 = vmatprep.mubr.f32.mxu0 %v3484
    %3581 = vmatmul.mubr.f32.gmra.mrb[0].mxu0 %v2584
    %v3582 = vpop.f32.mrb[0].mxu0
    %v3583 = vadd.f32 0.0, %v3582
    %v3584 = vpop.f32.mrb[0].mxu0
    %v3585 = vadd.f32 0.0, %v3584
    %3586 = vmatprep.mubr.f32.mxu0 %v3487
    %3587 = vmatmul.mubr.f32.gmra.mrb[0].mxu0 %v2590
    %v3588 = vpop.f32.mrb[0].mxu0
    %v3589 = vadd.f32 0.0, %v3588
    %v3590 = vpop.f32.mrb[0].mxu0
    %v3591 = vadd.f32 0.0, %v3590
    %3592 = vmatprep.mubr.f32.mxu0 %v3490
    %3593 = vmatmul.mubr.f32.gmra.mrb[0].mxu0 %v2596
    %v3594 = vpop.f32.mrb[0].mxu0
    %v3595 = vadd.f32 0.0, %v3594
    %v3596 = vpop.f32.mrb[0].mxu0
    %v3597 = vadd.f32 0.0, %v3596
    %3598 = vmatprep.mubr.f32.mxu0 %v3493
    %3599 = vmatmul.mubr.f32.gmra.mrb[0].mxu0 %v2602
    %v3600 = vpop.f32.mrb[0].mxu0
    %v3601 = vadd.f32 0.0, %v3600
    %v3602 = vpop.f32.mrb[0].mxu0
    %v3603 = vadd.f32 0.0, %v3602
    %3604 = vmatprep.mubr.f32.mxu0 %v3496
    %3605 = vmatmul.mubr.f32.gmra.mrb[0].mxu0 %v2608
    %v3606 = vpop.f32.mrb[0].mxu0
    %v3607 = vadd.f32 0.0, %v3606
    %v3608 = vpop.f32.mrb[0].mxu0
    %v3609 = vadd.f32 0.0, %v3608
    %3610 = vdwg.mxu0
    %3611 = vmatprep.subr.mxu0 %v3357
    %3612 = vmatpush1.msra.mxu0 %v3356
    %3613 = vmatprep.subr.mxu0 %v3361
    %3614 = vmatpush1.msra.mxu0 %v3360
    %3615 = vmatprep.subr.mxu0 %v3365
    %3616 = vmatpush1.msra.mxu0 %v3364
    %3617 = vmatprep.subr.mxu0 %v3369
    %3618 = vmatpush1.msra.mxu0 %v3368
    %3619 = vmatprep.subr.mxu0 %v3373
    %3620 = vmatpush1.msra.mxu0 %v3372
    %3621 = vmatprep.subr.mxu0 %v3377
    %3622 = vmatpush1.msra.mxu0 %v3376
    %3623 = vmatprep.subr.mxu0 %v3381
    %3624 = vmatpush1.msra.mxu0 %v3380
    %3625 = vmatprep.subr.mxu0 %v3385
    %3626 = vmatpush1.msra.mxu0 %v3384
    %3627 = vmatprep.subr.mxu0 %v3389
    %3628 = vmatpush1.msra.mxu0 %v3388
    %3629 = vmatprep.subr.mxu0 %v3393
    %3630 = vmatpush1.msra.mxu0 %v3392
    %3631 = vmatprep.subr.mxu0 %v3397
    %3632 = vmatpush1.msra.mxu0 %v3396
    %3633 = vmatprep.subr.mxu0 %v3401
    %3634 = vmatpush1.msra.mxu0 %v3400
    %3635 = vmatprep.subr.mxu0 %v3405
    %3636 = vmatpush1.msra.mxu0 %v3404
    %3637 = vmatprep.subr.mxu0 %v3409
    %3638 = vmatpush1.msra.mxu0 %v3408
    %3639 = vmatprep.subr.mxu0 %v3413
    %3640 = vmatpush1.msra.mxu0 %v3412
    %3641 = vmatprep.subr.mxu0 %v3417
    %3642 = vmatpush1.msra.mxu0 %v3416
    %3643 = vmatprep.subr.mxu0 %v3421
    %3644 = vmatpush1.msra.mxu0 %v3420
    %3645 = vmatprep.subr.mxu0 %v3425
    %3646 = vmatpush1.msra.mxu0 %v3424
    %3647 = vmatprep.subr.mxu0 %v3429
    %3648 = vmatpush1.msra.mxu0 %v3428
    %3649 = vmatprep.subr.mxu0 %v3433
    %3650 = vmatpush1.msra.mxu0 %v3432
    %3651 = vmatprep.subr.mxu0 %v3437
    %3652 = vmatpush1.msra.mxu0 %v3436
    %3653 = vmatprep.subr.mxu0 %v3441
    %3654 = vmatpush1.msra.mxu0 %v3440
    %3655 = vmatprep.subr.mxu0 %v3445
    %3656 = vmatpush1.msra.mxu0 %v3444
    %3657 = vmatprep.subr.mxu0 %v3449
    %3658 = vmatpush1.msra.mxu0 %v3448
    %3659 = vmatprep.subr.mxu0 %v3453
    %3660 = vmatpush1.msra.mxu0 %v3452
    %3661 = vmatprep.subr.mxu0 %v3457
    %3662 = vmatpush1.msra.mxu0 %v3456
    %3663 = vmatprep.subr.mxu0 %v3461
    %3664 = vmatpush1.msra.mxu0 %v3460
    %3665 = vmatprep.subr.mxu0 %v3465
    %3666 = vmatpush1.msra.mxu0 %v3464
    %3667 = vmatprep.subr.mxu0 %v3469
    %3668 = vmatpush1.msra.mxu0 %v3468
    %3669 = vmatprep.subr.mxu0 %v3473
    %3670 = vmatpush1.msra.mxu0 %v3472
    %3671 = vmatprep.subr.mxu0 0.0
    %3672 = vmatpush1.msra.mxu0 0.0
    %3673 = vmatprep.subr.mxu0 0.0
    %3674 = vmatpush1.msra.mxu0 0.0
    %3675 = vmatprep.mubr.f32.mxu0 %v3475
    %3676 = vmatmul.mubr.f32.gmra.mrb[0].mxu0 %v2566
    %v3677 = vpop.f32.mrb[0].mxu0
    %v3678 = vadd.f32 0.0, %v3677
    %v3679 = vpop.f32.mrb[0].mxu0
    %v3680 = vadd.f32 0.0, %v3679
    %3681 = vmatprep.mubr.f32.mxu0 %v3478
    %3682 = vmatmul.mubr.f32.gmra.mrb[0].mxu0 %v2572
    %v3683 = vpop.f32.mrb[0].mxu0
    %v3684 = vadd.f32 0.0, %v3683
    %v3685 = vpop.f32.mrb[0].mxu0
    %v3686 = vadd.f32 0.0, %v3685
    %3687 = vmatprep.mubr.f32.mxu0 %v3481
    %3688 = vmatmul.mubr.f32.gmra.mrb[0].mxu0 %v2578
    %v3689 = vpop.f32.mrb[0].mxu0
    %v3690 = vadd.f32 0.0, %v3689
    %v3691 = vpop.f32.mrb[0].mxu0
    %v3692 = vadd.f32 0.0, %v3691
    %3693 = vmatprep.mubr.f32.mxu0 %v3484
    %3694 = vmatmul.mubr.f32.gmra.mrb[0].mxu0 %v2584
    %v3695 = vpop.f32.mrb[0].mxu0
    %v3696 = vadd.f32 0.0, %v3695
    %v3697 = vpop.f32.mrb[0].mxu0
    %v3698 = vadd.f32 0.0, %v3697
    %3699 = vmatprep.mubr.f32.mxu0 %v3487
    %3700 = vmatmul.mubr.f32.gmra.mrb[0].mxu0 %v2590
    %v3701 = vpop.f32.mrb[0].mxu0
    %v3702 = vadd.f32 0.0, %v3701
    %v3703 = vpop.f32.mrb[0].mxu0
    %v3704 = vadd.f32 0.0, %v3703
    %3705 = vmatprep.mubr.f32.mxu0 %v3490
    %3706 = vmatmul.mubr.f32.gmra.mrb[0].mxu0 %v2596
    %v3707 = vpop.f32.mrb[0].mxu0
    %v3708 = vadd.f32 0.0, %v3707
    %v3709 = vpop.f32.mrb[0].mxu0
    %v3710 = vadd.f32 0.0, %v3709
    %3711 = vmatprep.mubr.f32.mxu0 %v3493
    %3712 = vmatmul.mubr.f32.gmra.mrb[0].mxu0 %v2602
    %v3713 = vpop.f32.mrb[0].mxu0
    %v3714 = vadd.f32 0.0, %v3713
    %v3715 = vpop.f32.mrb[0].mxu0
    %v3716 = vadd.f32 0.0, %v3715
    %3717 = vmatprep.mubr.f32.mxu0 %v3496
    %3718 = vmatmul.mubr.f32.gmra.mrb[0].mxu0 %v2608
    %v3719 = vpop.f32.mrb[0].mxu0
    %v3720 = vadd.f32 0.0, %v3719
    %v3721 = vpop.f32.mrb[0].mxu0
    %v3722 = vadd.f32 0.0, %v3721
    %3723 = vdwg.mxu0
    %v3724 = vadd.f32 %v3194, %v3565
    %v3725 = vadd.f32 %v3196, %v3567
    %v3726 = vadd.f32 %v3307, %v3678
    %v3727 = vadd.f32 %v3309, %v3680
    %v3728 = vadd.f32 %v3200, %v3571
    %v3729 = vadd.f32 %v3202, %v3573
    %v3730 = vadd.f32 %v3313, %v3684
    %v3731 = vadd.f32 %v3315, %v3686
    %v3732 = vadd.f32 %v3206, %v3577
    %v3733 = vadd.f32 %v3208, %v3579
    %v3734 = vadd.f32 %v3319, %v3690
    %v3735 = vadd.f32 %v3321, %v3692
    %v3736 = vadd.f32 %v3212, %v3583
    %v3737 = vadd.f32 %v3214, %v3585
    %v3738 = vadd.f32 %v3325, %v3696
    %v3739 = vadd.f32 %v3327, %v3698
    %v3740 = vadd.f32 %v3218, %v3589
    %v3741 = vadd.f32 %v3220, %v3591
    %v3742 = vadd.f32 %v3331, %v3702
    %v3743 = vadd.f32 %v3333, %v3704
    %v3744 = vadd.f32 %v3224, %v3595
    %v3745 = vadd.f32 %v3226, %v3597
    %v3746 = vadd.f32 %v3337, %v3708
    %v3747 = vadd.f32 %v3339, %v3710
    %v3748 = vadd.f32 %v3230, %v3601
    %v3749 = vadd.f32 %v3232, %v3603
    %v3750 = vadd.f32 %v3343, %v3714
    %v3751 = vadd.f32 %v3345, %v3716
    %v3752 = vadd.f32 %v3236, %v3607
    %v3753 = vadd.f32 %v3238, %v3609
    %v3754 = vadd.f32 %v3349, %v3720
    %v3755 = vadd.f32 %v3351, %v3722
    %v3757 = vlaneseq
    %v3758 = vshrl.u32 %v3757, 7
    %v3759 = vsub.s32 0, %v3758
    %v3760 = vrot.slane %v2385, %v3759
    %v3761 = vlaneseq
    %v3762 = vshrl.u32 %v3761, 7
    %v3763 = vsub.s32 1, %v3762
    %v3764 = vrot.slane %v2385, %v3763
    %v3765 = vlaneseq
    %v3766 = vshrl.u32 %v3765, 7
    %v3767 = vsub.s32 2, %v3766
    %v3768 = vrot.slane %v2385, %v3767
    %v3769 = vlaneseq
    %v3770 = vshrl.u32 %v3769, 7
    %v3771 = vsub.s32 3, %v3770
    %v3772 = vrot.slane %v2385, %v3771
    %v3777 = vadd.f32 %v3724, %v3760
    %v3778 = vadd.f32 %v3725, %v3764
    %v3779 = vadd.f32 %v3726, %v3768
    %v3780 = vadd.f32 %v3727, %v3772
    %v3781 = vadd.f32 %v3728, %v3760
    %v3782 = vadd.f32 %v3729, %v3764
    %v3783 = vadd.f32 %v3730, %v3768
    %v3784 = vadd.f32 %v3731, %v3772
    %v3785 = vadd.f32 %v3732, %v3760
    %v3786 = vadd.f32 %v3733, %v3764
    %v3787 = vadd.f32 %v3734, %v3768
    %v3788 = vadd.f32 %v3735, %v3772
    %v3789 = vadd.f32 %v3736, %v3760
    %v3790 = vadd.f32 %v3737, %v3764
    %v3791 = vadd.f32 %v3738, %v3768
    %v3792 = vadd.f32 %v3739, %v3772
    %v3793 = vadd.f32 %v3740, %v3760
    %v3794 = vadd.f32 %v3741, %v3764
    %v3795 = vadd.f32 %v3742, %v3768
    %v3796 = vadd.f32 %v3743, %v3772
    %v3797 = vadd.f32 %v3744, %v3760
    %v3798 = vadd.f32 %v3745, %v3764
    %v3799 = vadd.f32 %v3746, %v3768
    %v3800 = vadd.f32 %v3747, %v3772
    %v3801 = vadd.f32 %v3748, %v3760
    %v3802 = vadd.f32 %v3749, %v3764
    %v3803 = vadd.f32 %v3750, %v3768
    %v3804 = vadd.f32 %v3751, %v3772
    %v3805 = vadd.f32 %v3752, %v3760
    %v3806 = vadd.f32 %v3753, %v3764
    %v3807 = vadd.f32 %v3754, %v3768
    %v3808 = vadd.f32 %v3755, %v3772
    %vm3809 = vcmp.gt.f32.partialorder %v3777, 0.0
    %vm3810 = vcmp.gt.f32.partialorder %v3778, 0.0
    %vm3811 = vcmp.gt.f32.partialorder %v3779, 0.0
    %vm3812 = vcmp.gt.f32.partialorder %v3780, 0.0
    %vm3813 = vcmp.gt.f32.partialorder %v3781, 0.0
    %vm3814 = vcmp.gt.f32.partialorder %v3782, 0.0
    %vm3815 = vcmp.gt.f32.partialorder %v3783, 0.0
    %vm3816 = vcmp.gt.f32.partialorder %v3784, 0.0
    %vm3817 = vcmp.gt.f32.partialorder %v3785, 0.0
    %vm3818 = vcmp.gt.f32.partialorder %v3786, 0.0
    %vm3819 = vcmp.gt.f32.partialorder %v3787, 0.0
    %vm3820 = vcmp.gt.f32.partialorder %v3788, 0.0
    %vm3821 = vcmp.gt.f32.partialorder %v3789, 0.0
    %vm3822 = vcmp.gt.f32.partialorder %v3790, 0.0
    %vm3823 = vcmp.gt.f32.partialorder %v3791, 0.0
    %vm3824 = vcmp.gt.f32.partialorder %v3792, 0.0
    %vm3825 = vcmp.gt.f32.partialorder %v3793, 0.0
    %vm3826 = vcmp.gt.f32.partialorder %v3794, 0.0
    %vm3827 = vcmp.gt.f32.partialorder %v3795, 0.0
    %vm3828 = vcmp.gt.f32.partialorder %v3796, 0.0
    %vm3829 = vcmp.gt.f32.partialorder %v3797, 0.0
    %vm3830 = vcmp.gt.f32.partialorder %v3798, 0.0
    %vm3831 = vcmp.gt.f32.partialorder %v3799, 0.0
    %vm3832 = vcmp.gt.f32.partialorder %v3800, 0.0
    %vm3833 = vcmp.gt.f32.partialorder %v3801, 0.0
    %vm3834 = vcmp.gt.f32.partialorder %v3802, 0.0
    %vm3835 = vcmp.gt.f32.partialorder %v3803, 0.0
    %vm3836 = vcmp.gt.f32.partialorder %v3804, 0.0
    %vm3837 = vcmp.gt.f32.partialorder %v3805, 0.0
    %vm3838 = vcmp.gt.f32.partialorder %v3806, 0.0
    %vm3839 = vcmp.gt.f32.partialorder %v3807, 0.0
    %vm3840 = vcmp.gt.f32.partialorder %v3808, 0.0
    %v3841 = vmul.f32 %v3777, 0.01
    %v3842 = vmul.f32 %v3778, 0.01
    %v3843 = vmul.f32 %v3779, 0.01
    %v3844 = vmul.f32 %v3780, 0.01
    %v3845 = vmul.f32 %v3781, 0.01
    %v3846 = vmul.f32 %v3782, 0.01
    %v3847 = vmul.f32 %v3783, 0.01
    %v3848 = vmul.f32 %v3784, 0.01
    %v3849 = vmul.f32 %v3785, 0.01
    %v3850 = vmul.f32 %v3786, 0.01
    %v3851 = vmul.f32 %v3787, 0.01
    %v3852 = vmul.f32 %v3788, 0.01
    %v3853 = vmul.f32 %v3789, 0.01
    %v3854 = vmul.f32 %v3790, 0.01
    %v3855 = vmul.f32 %v3791, 0.01
    %v3856 = vmul.f32 %v3792, 0.01
    %v3857 = vmul.f32 %v3793, 0.01
    %v3858 = vmul.f32 %v3794, 0.01
    %v3859 = vmul.f32 %v3795, 0.01
    %v3860 = vmul.f32 %v3796, 0.01
    %v3861 = vmul.f32 %v3797, 0.01
    %v3862 = vmul.f32 %v3798, 0.01
    %v3863 = vmul.f32 %v3799, 0.01
    %v3864 = vmul.f32 %v3800, 0.01
    %v3865 = vmul.f32 %v3801, 0.01
    %v3866 = vmul.f32 %v3802, 0.01
    %v3867 = vmul.f32 %v3803, 0.01
    %v3868 = vmul.f32 %v3804, 0.01
    %v3869 = vmul.f32 %v3805, 0.01
    %v3870 = vmul.f32 %v3806, 0.01
    %v3871 = vmul.f32 %v3807, 0.01
    %v3872 = vmul.f32 %v3808, 0.01
    %v3873 = vsel %vm3809, %v3777, %v3841
    %v3874 = vsel %vm3810, %v3778, %v3842
    %v3875 = vsel %vm3811, %v3779, %v3843
    %v3876 = vsel %vm3812, %v3780, %v3844
    %v3877 = vsel %vm3813, %v3781, %v3845
    %v3878 = vsel %vm3814, %v3782, %v3846
    %v3879 = vsel %vm3815, %v3783, %v3847
    %v3880 = vsel %vm3816, %v3784, %v3848
    %v3881 = vsel %vm3817, %v3785, %v3849
    %v3882 = vsel %vm3818, %v3786, %v3850
    %v3883 = vsel %vm3819, %v3787, %v3851
    %v3884 = vsel %vm3820, %v3788, %v3852
    %v3885 = vsel %vm3821, %v3789, %v3853
    %v3886 = vsel %vm3822, %v3790, %v3854
    %v3887 = vsel %vm3823, %v3791, %v3855
    %v3888 = vsel %vm3824, %v3792, %v3856
    %v3889 = vsel %vm3825, %v3793, %v3857
    %v3890 = vsel %vm3826, %v3794, %v3858
    %v3891 = vsel %vm3827, %v3795, %v3859
    %v3892 = vsel %vm3828, %v3796, %v3860
    %v3893 = vsel %vm3829, %v3797, %v3861
    %v3894 = vsel %vm3830, %v3798, %v3862
    %v3895 = vsel %vm3831, %v3799, %v3863
    %v3896 = vsel %vm3832, %v3800, %v3864
    %v3897 = vsel %vm3833, %v3801, %v3865
    %v3898 = vsel %vm3834, %v3802, %v3866
    %v3899 = vsel %vm3835, %v3803, %v3867
    %v3900 = vsel %vm3836, %v3804, %v3868
    %v3901 = vsel %vm3837, %v3805, %v3869
    %v3902 = vsel %vm3838, %v3806, %v3870
    %v3903 = vsel %vm3839, %v3807, %v3871
    %v3904 = vsel %vm3840, %v3808, %v3872
    %v3905 = vld [vmem:[%s16] sm:$0xff]
    %v3906 = vld [vmem:[%s16 + $0x8] sm:$0xff]
    %v3907 = vld [vmem:[%s16 + $0x10] sm:$0xff]
    %v3908 = vld [vmem:[%s16 + $0x18] sm:$0xff]
    %v3909 = vld [vmem:[%s16 + $0x20] sm:$0xff]
    %v3910 = vld [vmem:[%s16 + $0x28] sm:$0xff]
    %v3911 = vld [vmem:[%s16 + $0x30] sm:$0xff]
    %v3912 = vld [vmem:[%s16 + $0x38] sm:$0xff]
    %v3913 = vld [vmem:[%s16 + $0x40] sm:$0xff]
    %v3914 = vld [vmem:[%s16 + $0x48] sm:$0xff]
    %v3915 = vld [vmem:[%s16 + $0x50] sm:$0xff]
    %v3916 = vld [vmem:[%s16 + $0x58] sm:$0xff]
    %v3917 = vld [vmem:[%s16 + $0x60] sm:$0xff]
    %v3918 = vld [vmem:[%s16 + $0x68] sm:$0xff]
    %v3919 = vld [vmem:[%s16 + $0x70] sm:$0xff]
    %v3920 = vld [vmem:[%s16 + $0x78] sm:$0xff]
    %v3921 = vld [vmem:[%s16 + $0x80] sm:$0xff]
    %v3922 = vld [vmem:[%s16 + $0x88] sm:$0xff]
    %v3923 = vld [vmem:[%s16 + $0x90] sm:$0xff]
    %v3924 = vld [vmem:[%s16 + $0x98] sm:$0xff]
    %v3925 = vld [vmem:[%s16 + $0xa0] sm:$0xff]
    %v3926 = vld [vmem:[%s16 + $0xa8] sm:$0xff]
    %v3927 = vld [vmem:[%s16 + $0xb0] sm:$0xff]
    %v3928 = vld [vmem:[%s16 + $0xb8] sm:$0xff]
    %v3929 = vld [vmem:[%s16 + $0xc0] sm:$0xff]
    %v3930 = vld [vmem:[%s16 + $0xc8] sm:$0xff]
    %v3931 = vld [vmem:[%s16 + $0xd0] sm:$0xff]
    %v3932 = vld [vmem:[%s16 + $0xd8] sm:$0xff]
    %v3933 = vld [vmem:[%s16 + $0xe0] sm:$0xff]
    %v3934 = vld [vmem:[%s16 + $0xe8] sm:$0xff]
    %v3935 = vld [vmem:[%s16 + $0xf0] sm:$0xff]
    %v3936 = vld [vmem:[%s16 + $0xf8] sm:$0xff]
    %v3937 = vld [vmem:[%s16 + $0x100] sm:$0xff]
    %v3938 = vld [vmem:[%s16 + $0x108] sm:$0xff]
    %v3939 = vld [vmem:[%s16 + $0x110] sm:$0xff]
    %v3940 = vld [vmem:[%s16 + $0x118] sm:$0xff]
    %v3941 = vld [vmem:[%s16 + $0x120] sm:$0xff]
    %v3942 = vld [vmem:[%s16 + $0x128] sm:$0xff]
    %v3943 = vld [vmem:[%s16 + $0x130] sm:$0xff]
    %v3944 = vld [vmem:[%s16 + $0x138] sm:$0xff]
    %v3945 = vld [vmem:[%s16 + $0x140] sm:$0xff]
    %v3946 = vld [vmem:[%s16 + $0x148] sm:$0xff]
    %v3947 = vld [vmem:[%s16 + $0x150] sm:$0xff]
    %v3948 = vld [vmem:[%s16 + $0x158] sm:$0xff]
    %v3949 = vld [vmem:[%s16 + $0x160] sm:$0xff]
    %v3950 = vld [vmem:[%s16 + $0x168] sm:$0xff]
    %v3951 = vld [vmem:[%s16 + $0x170] sm:$0xff]
    %v3952 = vld [vmem:[%s16 + $0x178] sm:$0xff]
    %v3953 = vld [vmem:[%s16 + $0x180] sm:$0xff]
    %v3954 = vld [vmem:[%s16 + $0x188] sm:$0xff]
    %v3955 = vld [vmem:[%s16 + $0x190] sm:$0xff]
    %v3956 = vld [vmem:[%s16 + $0x198] sm:$0xff]
    %v3957 = vld [vmem:[%s16 + $0x1a0] sm:$0xff]
    %v3958 = vld [vmem:[%s16 + $0x1a8] sm:$0xff]
    %v3959 = vld [vmem:[%s16 + $0x1b0] sm:$0xff]
    %v3960 = vld [vmem:[%s16 + $0x1b8] sm:$0xff]
    %v3961 = vld [vmem:[%s16 + $0x1c0] sm:$0xff]
    %v3962 = vld [vmem:[%s16 + $0x1c8] sm:$0xff]
    %v3963 = vld [vmem:[%s16 + $0x1d0] sm:$0xff]
    %v3964 = vld [vmem:[%s16 + $0x1d8] sm:$0xff]
    %v3965 = vld [vmem:[%s16 + $0x1e0] sm:$0xff]
    %v3966 = vld [vmem:[%s16 + $0x1e8] sm:$0xff]
    %v3967 = vld [vmem:[%s16 + $0x1f0] sm:$0xff]
    %v3968 = vld [vmem:[%s16 + $0x1f8] sm:$0xff]
    %v3969 = vld [vmem:[%s16 + $0x200] sm:$0xff]
    %v3970 = vld [vmem:[%s16 + $0x208] sm:$0xff]
    %v3971 = vld [vmem:[%s16 + $0x210] sm:$0xff]
    %v3972 = vld [vmem:[%s16 + $0x218] sm:$0xff]
    %v3973 = vld [vmem:[%s16 + $0x220] sm:$0xff]
    %v3974 = vld [vmem:[%s16 + $0x228] sm:$0xff]
    %v3975 = vld [vmem:[%s16 + $0x230] sm:$0xff]
    %v3976 = vld [vmem:[%s16 + $0x238] sm:$0xff]
    %v3977 = vld [vmem:[%s16 + $0x240] sm:$0xff]
    %v3978 = vld [vmem:[%s16 + $0x248] sm:$0xff]
    %v3979 = vld [vmem:[%s16 + $0x250] sm:$0xff]
    %v3980 = vld [vmem:[%s16 + $0x258] sm:$0xff]
    %v3981 = vld [vmem:[%s16 + $0x260] sm:$0xff]
    %v3982 = vld [vmem:[%s16 + $0x268] sm:$0xff]
    %v3983 = vld [vmem:[%s16 + $0x270] sm:$0xff]
    %v3984 = vld [vmem:[%s16 + $0x278] sm:$0xff]
    %v3985 = vld [vmem:[%s16 + $0x280] sm:$0xff]
    %v3986 = vld [vmem:[%s16 + $0x288] sm:$0xff]
    %v3987 = vld [vmem:[%s16 + $0x290] sm:$0xff]
    %v3988 = vld [vmem:[%s16 + $0x298] sm:$0xff]
    %v3989 = vld [vmem:[%s16 + $0x2a0] sm:$0xff]
    %v3990 = vld [vmem:[%s16 + $0x2a8] sm:$0xff]
    %v3991 = vld [vmem:[%s16 + $0x2b0] sm:$0xff]
    %v3992 = vld [vmem:[%s16 + $0x2b8] sm:$0xff]
    %v3993 = vld [vmem:[%s16 + $0x2c0] sm:$0xff]
    %v3994 = vld [vmem:[%s16 + $0x2c8] sm:$0xff]
    %v3995 = vld [vmem:[%s16 + $0x2d0] sm:$0xff]
    %v3996 = vld [vmem:[%s16 + $0x2d8] sm:$0xff]
    %v3997 = vld [vmem:[%s16 + $0x2e0] sm:$0xff]
    %v3998 = vld [vmem:[%s16 + $0x2e8] sm:$0xff]
    %v3999 = vld [vmem:[%s16 + $0x2f0] sm:$0xff]
    %v4000 = vld [vmem:[%s16 + $0x2f8] sm:$0xff]
    %v4001 = vld [vmem:[%s16 + $0x300] sm:$0xff]
    %v4002 = vld [vmem:[%s16 + $0x308] sm:$0xff]
    %v4003 = vld [vmem:[%s16 + $0x310] sm:$0xff]
    %v4004 = vld [vmem:[%s16 + $0x318] sm:$0xff]
    %v4005 = vld [vmem:[%s16 + $0x320] sm:$0xff]
    %v4006 = vld [vmem:[%s16 + $0x328] sm:$0xff]
    %v4007 = vld [vmem:[%s16 + $0x330] sm:$0xff]
    %v4008 = vld [vmem:[%s16 + $0x338] sm:$0xff]
    %v4009 = vld [vmem:[%s16 + $0x340] sm:$0xff]
    %v4010 = vld [vmem:[%s16 + $0x348] sm:$0xff]
    %v4011 = vld [vmem:[%s16 + $0x350] sm:$0xff]
    %v4012 = vld [vmem:[%s16 + $0x358] sm:$0xff]
    %v4013 = vld [vmem:[%s16 + $0x360] sm:$0xff]
    %v4014 = vld [vmem:[%s16 + $0x368] sm:$0xff]
    %v4015 = vld [vmem:[%s16 + $0x370] sm:$0xff]
    %v4016 = vld [vmem:[%s16 + $0x378] sm:$0xff]
    %v4017 = vld [vmem:[%s16 + $0x380] sm:$0xff]
    %v4018 = vld [vmem:[%s16 + $0x388] sm:$0xff]
    %v4019 = vld [vmem:[%s16 + $0x390] sm:$0xff]
    %v4020 = vld [vmem:[%s16 + $0x398] sm:$0xff]
    %v4021 = vld [vmem:[%s16 + $0x3a0] sm:$0xff]
    %v4022 = vld [vmem:[%s16 + $0x3a8] sm:$0xff]
    %v4023 = vld [vmem:[%s16 + $0x3b0] sm:$0xff]
    %v4024 = vld [vmem:[%s16 + $0x3b8] sm:$0xff]
    %v4025 = vld [vmem:[%s16 + $0x3c0] sm:$0xff]
    %v4026 = vld [vmem:[%s16 + $0x3c8] sm:$0xff]
    %v4027 = vld [vmem:[%s16 + $0x3d0] sm:$0xff]
    %v4028 = vld [vmem:[%s16 + $0x3d8] sm:$0xff]
    %v4029 = vld [vmem:[%s16 + $0x3e0] sm:$0xff]
    %v4030 = vld [vmem:[%s16 + $0x3e8] sm:$0xff]
    %v4031 = vld [vmem:[%s16 + $0x3f0] sm:$0xff]
    %v4032 = vld [vmem:[%s16 + $0x3f8] sm:$0xff]
    %v4033 = vld [vmem:[%s16 + $0x400] sm:$0xff]
    %v4034 = vld [vmem:[%s16 + $0x408] sm:$0xff]
    %v4035 = vld [vmem:[%s16 + $0x410] sm:$0xff]
    %v4036 = vld [vmem:[%s16 + $0x418] sm:$0xff]
    %v4037 = vld [vmem:[%s16 + $0x420] sm:$0xff]
    %v4038 = vld [vmem:[%s16 + $0x428] sm:$0xff]
    %v4039 = vld [vmem:[%s16 + $0x430] sm:$0xff]
    %v4040 = vld [vmem:[%s16 + $0x438] sm:$0xff]
    %v4041 = vld [vmem:[%s16 + $0x440] sm:$0xff]
    %v4042 = vld [vmem:[%s16 + $0x448] sm:$0xff]
    %v4043 = vld [vmem:[%s16 + $0x450] sm:$0xff]
    %v4044 = vld [vmem:[%s16 + $0x458] sm:$0xff]
    %v4045 = vld [vmem:[%s16 + $0x460] sm:$0xff]
    %v4046 = vld [vmem:[%s16 + $0x468] sm:$0xff]
    %v4047 = vld [vmem:[%s16 + $0x470] sm:$0xff]
    %v4048 = vld [vmem:[%s16 + $0x478] sm:$0xff]
    %v4049 = vld [vmem:[%s16 + $0x480] sm:$0xff]
    %v4050 = vld [vmem:[%s16 + $0x488] sm:$0xff]
    %v4051 = vld [vmem:[%s16 + $0x490] sm:$0xff]
    %v4052 = vld [vmem:[%s16 + $0x498] sm:$0xff]
    %v4053 = vld [vmem:[%s16 + $0x4a0] sm:$0xff]
    %v4054 = vld [vmem:[%s16 + $0x4a8] sm:$0xff]
    %v4055 = vld [vmem:[%s16 + $0x4b0] sm:$0xff]
    %v4056 = vld [vmem:[%s16 + $0x4b8] sm:$0xff]
    %v4057 = vld [vmem:[%s16 + $0x4c0] sm:$0xff]
    %v4058 = vld [vmem:[%s16 + $0x4c8] sm:$0xff]
    %v4059 = vld [vmem:[%s16 + $0x4d0] sm:$0xff]
    %v4060 = vld [vmem:[%s16 + $0x4d8] sm:$0xff]
    %v4061 = vld [vmem:[%s16 + $0x4e0] sm:$0xff]
    %v4062 = vld [vmem:[%s16 + $0x4e8] sm:$0xff]
    %v4063 = vld [vmem:[%s16 + $0x4f0] sm:$0xff]
    %v4064 = vld [vmem:[%s16 + $0x4f8] sm:$0xff]
    %v4065 = vld [vmem:[%s16 + $0x500] sm:$0xff]
    %v4066 = vld [vmem:[%s16 + $0x508] sm:$0xff]
    %v4067 = vld [vmem:[%s16 + $0x510] sm:$0xff]
    %v4068 = vld [vmem:[%s16 + $0x518] sm:$0xff]
    %v4069 = vld [vmem:[%s16 + $0x520] sm:$0xff]
    %v4070 = vld [vmem:[%s16 + $0x528] sm:$0xff]
    %v4071 = vld [vmem:[%s16 + $0x530] sm:$0xff]
    %v4072 = vld [vmem:[%s16 + $0x538] sm:$0xff]
    %v4073 = vld [vmem:[%s16 + $0x540] sm:$0xff]
    %v4074 = vld [vmem:[%s16 + $0x548] sm:$0xff]
    %v4075 = vld [vmem:[%s16 + $0x550] sm:$0xff]
    %v4076 = vld [vmem:[%s16 + $0x558] sm:$0xff]
    %v4077 = vld [vmem:[%s16 + $0x560] sm:$0xff]
    %v4078 = vld [vmem:[%s16 + $0x568] sm:$0xff]
    %v4079 = vld [vmem:[%s16 + $0x570] sm:$0xff]
    %v4080 = vld [vmem:[%s16 + $0x578] sm:$0xff]
    %v4081 = vld [vmem:[%s16 + $0x580] sm:$0xff]
    %v4082 = vld [vmem:[%s16 + $0x588] sm:$0xff]
    %v4083 = vld [vmem:[%s16 + $0x590] sm:$0xff]
    %v4084 = vld [vmem:[%s16 + $0x598] sm:$0xff]
    %vm4085 = vcmask 785408
    %v4087 = vsel %vm4085, %v3876, 0
    %v4090 = vsel %vm4085, %v3880, 0
    %v4093 = vsel %vm4085, %v3884, 0
    %v4096 = vsel %vm4085, %v3888, 0
    %v4099 = vsel %vm4085, %v3892, 0
    %v4102 = vsel %vm4085, %v3896, 0
    %v4105 = vsel %vm4085, %v3900, 0
    %v4108 = vsel %vm4085, %v3904, 0
    %4110 = vmatprep.subr.mxu0 %v3906
    %4111 = vmatpush1.msra.mxu0 %v3905
    %4112 = vmatprep.subr.mxu0 %v3909
    %4113 = vmatpush1.msra.mxu0 %v3908
    %4114 = vmatprep.subr.mxu0 %v3912
    %4115 = vmatpush1.msra.mxu0 %v3911
    %4116 = vmatprep.subr.mxu0 %v3915
    %4117 = vmatpush1.msra.mxu0 %v3914
    %4118 = vmatprep.subr.mxu0 %v3918
    %4119 = vmatpush1.msra.mxu0 %v3917
    %4120 = vmatprep.subr.mxu0 %v3921
    %4121 = vmatpush1.msra.mxu0 %v3920
    %4122 = vmatprep.subr.mxu0 %v3924
    %4123 = vmatpush1.msra.mxu0 %v3923
    %4124 = vmatprep.subr.mxu0 %v3927
    %4125 = vmatpush1.msra.mxu0 %v3926
    %4126 = vmatprep.subr.mxu0 %v3930
    %4127 = vmatpush1.msra.mxu0 %v3929
    %4128 = vmatprep.subr.mxu0 %v3933
    %4129 = vmatpush1.msra.mxu0 %v3932
    %4130 = vmatprep.subr.mxu0 %v3936
    %4131 = vmatpush1.msra.mxu0 %v3935
    %4132 = vmatprep.subr.mxu0 %v3939
    %4133 = vmatpush1.msra.mxu0 %v3938
    %4134 = vmatprep.subr.mxu0 %v3942
    %4135 = vmatpush1.msra.mxu0 %v3941
    %4136 = vmatprep.subr.mxu0 %v3945
    %4137 = vmatpush1.msra.mxu0 %v3944
    %4138 = vmatprep.subr.mxu0 %v3948
    %4139 = vmatpush1.msra.mxu0 %v3947
    %4140 = vmatprep.subr.mxu0 %v3951
    %4141 = vmatpush1.msra.mxu0 %v3950
    %4142 = vmatprep.subr.mxu0 %v3954
    %4143 = vmatpush1.msra.mxu0 %v3953
    %4144 = vmatprep.subr.mxu0 %v3957
    %4145 = vmatpush1.msra.mxu0 %v3956
    %4146 = vmatprep.subr.mxu0 %v3960
    %4147 = vmatpush1.msra.mxu0 %v3959
    %4148 = vmatprep.subr.mxu0 %v3963
    %4149 = vmatpush1.msra.mxu0 %v3962
    %4150 = vmatprep.subr.mxu0 %v3966
    %4151 = vmatpush1.msra.mxu0 %v3965
    %4152 = vmatprep.subr.mxu0 %v3969
    %4153 = vmatpush1.msra.mxu0 %v3968
    %4154 = vmatprep.subr.mxu0 %v3972
    %4155 = vmatpush1.msra.mxu0 %v3971
    %4156 = vmatprep.subr.mxu0 %v3975
    %4157 = vmatpush1.msra.mxu0 %v3974
    %4158 = vmatprep.subr.mxu0 %v3978
    %4159 = vmatpush1.msra.mxu0 %v3977
    %4160 = vmatprep.subr.mxu0 %v3981
    %4161 = vmatpush1.msra.mxu0 %v3980
    %4162 = vmatprep.subr.mxu0 %v3984
    %4163 = vmatpush1.msra.mxu0 %v3983
    %4164 = vmatprep.subr.mxu0 %v3987
    %4165 = vmatpush1.msra.mxu0 %v3986
    %4166 = vmatprep.subr.mxu0 %v3990
    %4167 = vmatpush1.msra.mxu0 %v3989
    %4168 = vmatprep.subr.mxu0 %v3993
    %4169 = vmatpush1.msra.mxu0 %v3992
    %4170 = vmatprep.subr.mxu0 %v3996
    %4171 = vmatpush1.msra.mxu0 %v3995
    %4172 = vmatprep.subr.mxu0 %v3999
    %4173 = vmatpush1.msra.mxu0 %v3998
    %4174 = vmatprep.mubr.f32.mxu0 %v3874
    %4175 = vmatmul.mubr.f32.gmra.mrb[0].mxu0 %v3873
    %v4176 = vpop.f32.mrb[0].mxu0
    %v4177 = vadd.f32 0.0, %v4176
    %v4178 = vpop.f32.mrb[0].mxu0
    %v4179 = vadd.f32 0.0, %v4178
    %4180 = vmatprep.mubr.f32.mxu0 %v3878
    %4181 = vmatmul.mubr.f32.gmra.mrb[0].mxu0 %v3877
    %v4182 = vpop.f32.mrb[0].mxu0
    %v4183 = vadd.f32 0.0, %v4182
    %v4184 = vpop.f32.mrb[0].mxu0
    %v4185 = vadd.f32 0.0, %v4184
    %4186 = vmatprep.mubr.f32.mxu0 %v3882
    %4187 = vmatmul.mubr.f32.gmra.mrb[0].mxu0 %v3881
    %v4188 = vpop.f32.mrb[0].mxu0
    %v4189 = vadd.f32 0.0, %v4188
    %v4190 = vpop.f32.mrb[0].mxu0
    %v4191 = vadd.f32 0.0, %v4190
    %4192 = vmatprep.mubr.f32.mxu0 %v3886
    %4193 = vmatmul.mubr.f32.gmra.mrb[0].mxu0 %v3885
    %v4194 = vpop.f32.mrb[0].mxu0
    %v4195 = vadd.f32 0.0, %v4194
    %v4196 = vpop.f32.mrb[0].mxu0
    %v4197 = vadd.f32 0.0, %v4196
    %4198 = vmatprep.mubr.f32.mxu0 %v3890
    %4199 = vmatmul.mubr.f32.gmra.mrb[0].mxu0 %v3889
    %v4200 = vpop.f32.mrb[0].mxu0
    %v4201 = vadd.f32 0.0, %v4200
    %v4202 = vpop.f32.mrb[0].mxu0
    %v4203 = vadd.f32 0.0, %v4202
    %4204 = vmatprep.mubr.f32.mxu0 %v3894
    %4205 = vmatmul.mubr.f32.gmra.mrb[0].mxu0 %v3893
    %v4206 = vpop.f32.mrb[0].mxu0
    %v4207 = vadd.f32 0.0, %v4206
    %v4208 = vpop.f32.mrb[0].mxu0
    %v4209 = vadd.f32 0.0, %v4208
    %4210 = vmatprep.mubr.f32.mxu0 %v3898
    %4211 = vmatmul.mubr.f32.gmra.mrb[0].mxu0 %v3897
    %v4212 = vpop.f32.mrb[0].mxu0
    %v4213 = vadd.f32 0.0, %v4212
    %v4214 = vpop.f32.mrb[0].mxu0
    %v4215 = vadd.f32 0.0, %v4214
    %4216 = vmatprep.mubr.f32.mxu0 %v3902
    %4217 = vmatmul.mubr.f32.gmra.mrb[0].mxu0 %v3901
    %v4218 = vpop.f32.mrb[0].mxu0
    %v4219 = vadd.f32 0.0, %v4218
    %v4220 = vpop.f32.mrb[0].mxu0
    %v4221 = vadd.f32 0.0, %v4220
    %4222 = vdwg.mxu0
    %4223 = vmatprep.subr.mxu0 %v4002
    %4224 = vmatpush1.msra.mxu0 %v4001
    %4225 = vmatprep.subr.mxu0 %v4005
    %4226 = vmatpush1.msra.mxu0 %v4004
    %4227 = vmatprep.subr.mxu0 %v4008
    %4228 = vmatpush1.msra.mxu0 %v4007
    %4229 = vmatprep.subr.mxu0 %v4011
    %4230 = vmatpush1.msra.mxu0 %v4010
    %4231 = vmatprep.subr.mxu0 %v4014
    %4232 = vmatpush1.msra.mxu0 %v4013
    %4233 = vmatprep.subr.mxu0 %v4017
    %4234 = vmatpush1.msra.mxu0 %v4016
    %4235 = vmatprep.subr.mxu0 %v4020
    %4236 = vmatpush1.msra.mxu0 %v4019
    %4237 = vmatprep.subr.mxu0 %v4023
    %4238 = vmatpush1.msra.mxu0 %v4022
    %4239 = vmatprep.subr.mxu0 %v4026
    %4240 = vmatpush1.msra.mxu0 %v4025
    %4241 = vmatprep.subr.mxu0 %v4029
    %4242 = vmatpush1.msra.mxu0 %v4028
    %4243 = vmatprep.subr.mxu0 %v4032
    %4244 = vmatpush1.msra.mxu0 %v4031
    %4245 = vmatprep.subr.mxu0 %v4035
    %4246 = vmatpush1.msra.mxu0 %v4034
    %4247 = vmatprep.subr.mxu0 %v4038
    %4248 = vmatpush1.msra.mxu0 %v4037
    %4249 = vmatprep.subr.mxu0 %v4041
    %4250 = vmatpush1.msra.mxu0 %v4040
    %4251 = vmatprep.subr.mxu0 %v4044
    %4252 = vmatpush1.msra.mxu0 %v4043
    %4253 = vmatprep.subr.mxu0 %v4047
    %4254 = vmatpush1.msra.mxu0 %v4046
    %4255 = vmatprep.subr.mxu0 %v4050
    %4256 = vmatpush1.msra.mxu0 %v4049
    %4257 = vmatprep.subr.mxu0 %v4053
    %4258 = vmatpush1.msra.mxu0 %v4052
    %4259 = vmatprep.subr.mxu0 %v4056
    %4260 = vmatpush1.msra.mxu0 %v4055
    %4261 = vmatprep.subr.mxu0 %v4059
    %4262 = vmatpush1.msra.mxu0 %v4058
    %4263 = vmatprep.subr.mxu0 %v4062
    %4264 = vmatpush1.msra.mxu0 %v4061
    %4265 = vmatprep.subr.mxu0 %v4065
    %4266 = vmatpush1.msra.mxu0 %v4064
    %4267 = vmatprep.subr.mxu0 %v4068
    %4268 = vmatpush1.msra.mxu0 %v4067
    %4269 = vmatprep.subr.mxu0 %v4071
    %4270 = vmatpush1.msra.mxu0 %v4070
    %4271 = vmatprep.subr.mxu0 %v4074
    %4272 = vmatpush1.msra.mxu0 %v4073
    %4273 = vmatprep.subr.mxu0 %v4077
    %4274 = vmatpush1.msra.mxu0 %v4076
    %4275 = vmatprep.subr.mxu0 %v4080
    %4276 = vmatpush1.msra.mxu0 %v4079
    %4277 = vmatprep.subr.mxu0 %v4083
    %4278 = vmatpush1.msra.mxu0 %v4082
    %4279 = vmatprep.subr.mxu0 0.0
    %4280 = vmatpush1.msra.mxu0 0.0
    %4281 = vmatprep.subr.mxu0 0.0
    %4282 = vmatpush1.msra.mxu0 0.0
    %4283 = vmatprep.subr.mxu0 0.0
    %4284 = vmatpush1.msra.mxu0 0.0
    %4285 = vmatprep.subr.mxu0 0.0
    %4286 = vmatpush1.msra.mxu0 0.0
    %4287 = vmatprep.mubr.f32.mxu0 %v4087
    %4288 = vmatmul.mubr.f32.gmra.mrb[0].mxu0 %v3875
    %v4289 = vpop.f32.mrb[0].mxu0
    %v4290 = vadd.f32 %v4177, %v4289
    %v4291 = vpop.f32.mrb[0].mxu0
    %v4292 = vadd.f32 %v4179, %v4291
    %4293 = vmatprep.mubr.f32.mxu0 %v4090
    %4294 = vmatmul.mubr.f32.gmra.mrb[0].mxu0 %v3879
    %v4295 = vpop.f32.mrb[0].mxu0
    %v4296 = vadd.f32 %v4183, %v4295
    %v4297 = vpop.f32.mrb[0].mxu0
    %v4298 = vadd.f32 %v4185, %v4297
    %4299 = vmatprep.mubr.f32.mxu0 %v4093
    %4300 = vmatmul.mubr.f32.gmra.mrb[0].mxu0 %v3883
    %v4301 = vpop.f32.mrb[0].mxu0
    %v4302 = vadd.f32 %v4189, %v4301
    %v4303 = vpop.f32.mrb[0].mxu0
    %v4304 = vadd.f32 %v4191, %v4303
    %4305 = vmatprep.mubr.f32.mxu0 %v4096
    %4306 = vmatmul.mubr.f32.gmra.mrb[0].mxu0 %v3887
    %v4307 = vpop.f32.mrb[0].mxu0
    %v4308 = vadd.f32 %v4195, %v4307
    %v4309 = vpop.f32.mrb[0].mxu0
    %v4310 = vadd.f32 %v4197, %v4309
    %4311 = vmatprep.mubr.f32.mxu0 %v4099
    %4312 = vmatmul.mubr.f32.gmra.mrb[0].mxu0 %v3891
    %v4313 = vpop.f32.mrb[0].mxu0
    %v4314 = vadd.f32 %v4201, %v4313
    %v4315 = vpop.f32.mrb[0].mxu0
    %v4316 = vadd.f32 %v4203, %v4315
    %4317 = vmatprep.mubr.f32.mxu0 %v4102
    %4318 = vmatmul.mubr.f32.gmra.mrb[0].mxu0 %v3895
    %v4319 = vpop.f32.mrb[0].mxu0
    %v4320 = vadd.f32 %v4207, %v4319
    %v4321 = vpop.f32.mrb[0].mxu0
    %v4322 = vadd.f32 %v4209, %v4321
    %4323 = vmatprep.mubr.f32.mxu0 %v4105
    %4324 = vmatmul.mubr.f32.gmra.mrb[0].mxu0 %v3899
    %v4325 = vpop.f32.mrb[0].mxu0
    %v4326 = vadd.f32 %v4213, %v4325
    %v4327 = vpop.f32.mrb[0].mxu0
    %v4328 = vadd.f32 %v4215, %v4327
    %4329 = vmatprep.mubr.f32.mxu0 %v4108
    %4330 = vmatmul.mubr.f32.gmra.mrb[0].mxu0 %v3903
    %v4331 = vpop.f32.mrb[0].mxu0
    %v4332 = vadd.f32 %v4219, %v4331
    %v4333 = vpop.f32.mrb[0].mxu0
    %v4334 = vadd.f32 %v4221, %v4333
    %4335 = vdwg.mxu0
    %4336 = vmatprep.subr.mxu0 0.0
    %4337 = vmatpush1.msra.mxu0 %v3907
    %4338 = vmatprep.subr.mxu0 0.0
    %4339 = vmatpush1.msra.mxu0 %v3910
    %4340 = vmatprep.subr.mxu0 0.0
    %4341 = vmatpush1.msra.mxu0 %v3913
    %4342 = vmatprep.subr.mxu0 0.0
    %4343 = vmatpush1.msra.mxu0 %v3916
    %4344 = vmatprep.subr.mxu0 0.0
    %4345 = vmatpush1.msra.mxu0 %v3919
    %4346 = vmatprep.subr.mxu0 0.0
    %4347 = vmatpush1.msra.mxu0 %v3922
    %4348 = vmatprep.subr.mxu0 0.0
    %4349 = vmatpush1.msra.mxu0 %v3925
    %4350 = vmatprep.subr.mxu0 0.0
    %4351 = vmatpush1.msra.mxu0 %v3928
    %4352 = vmatprep.subr.mxu0 0.0
    %4353 = vmatpush1.msra.mxu0 %v3931
    %4354 = vmatprep.subr.mxu0 0.0
    %4355 = vmatpush1.msra.mxu0 %v3934
    %4356 = vmatprep.subr.mxu0 0.0
    %4357 = vmatpush1.msra.mxu0 %v3937
    %4358 = vmatprep.subr.mxu0 0.0
    %4359 = vmatpush1.msra.mxu0 %v3940
    %4360 = vmatprep.subr.mxu0 0.0
    %4361 = vmatpush1.msra.mxu0 %v3943
    %4362 = vmatprep.subr.mxu0 0.0
    %4363 = vmatpush1.msra.mxu0 %v3946
    %4364 = vmatprep.subr.mxu0 0.0
    %4365 = vmatpush1.msra.mxu0 %v3949
    %4366 = vmatprep.subr.mxu0 0.0
    %4367 = vmatpush1.msra.mxu0 %v3952
    %4368 = vmatprep.subr.mxu0 0.0
    %4369 = vmatpush1.msra.mxu0 %v3955
    %4370 = vmatprep.subr.mxu0 0.0
    %4371 = vmatpush1.msra.mxu0 %v3958
    %4372 = vmatprep.subr.mxu0 0.0
    %4373 = vmatpush1.msra.mxu0 %v3961
    %4374 = vmatprep.subr.mxu0 0.0
    %4375 = vmatpush1.msra.mxu0 %v3964
    %4376 = vmatprep.subr.mxu0 0.0
    %4377 = vmatpush1.msra.mxu0 %v3967
    %4378 = vmatprep.subr.mxu0 0.0
    %4379 = vmatpush1.msra.mxu0 %v3970
    %4380 = vmatprep.subr.mxu0 0.0
    %4381 = vmatpush1.msra.mxu0 %v3973
    %4382 = vmatprep.subr.mxu0 0.0
    %4383 = vmatpush1.msra.mxu0 %v3976
    %4384 = vmatprep.subr.mxu0 0.0
    %4385 = vmatpush1.msra.mxu0 %v3979
    %4386 = vmatprep.subr.mxu0 0.0
    %4387 = vmatpush1.msra.mxu0 %v3982
    %4388 = vmatprep.subr.mxu0 0.0
    %4389 = vmatpush1.msra.mxu0 %v3985
    %4390 = vmatprep.subr.mxu0 0.0
    %4391 = vmatpush1.msra.mxu0 %v3988
    %4392 = vmatprep.subr.mxu0 0.0
    %4393 = vmatpush1.msra.mxu0 %v3991
    %4394 = vmatprep.subr.mxu0 0.0
    %4395 = vmatpush1.msra.mxu0 %v3994
    %4396 = vmatprep.subr.mxu0 0.0
    %4397 = vmatpush1.msra.mxu0 %v3997
    %4398 = vmatprep.subr.mxu0 0.0
    %4399 = vmatpush1.msra.mxu0 %v4000
    %4400 = vmatprep.mubr.f32.mxu0 %v3874
    %4401 = vmatmul.mubr.f32.gmra.mrb[0].mxu0 %v3873
    %v4402 = vpop.f32.mrb[0].mxu0
    %v4403 = vadd.f32 0.0, %v4402
    %v4404 = vpop.f32.mrb[0].mxu0
    %4405 = vmatprep.mubr.f32.mxu0 %v3878
    %4406 = vmatmul.mubr.f32.gmra.mrb[0].mxu0 %v3877
    %v4407 = vpop.f32.mrb[0].mxu0
    %v4408 = vadd.f32 0.0, %v4407
    %v4409 = vpop.f32.mrb[0].mxu0
    %4410 = vmatprep.mubr.f32.mxu0 %v3882
    %4411 = vmatmul.mubr.f32.gmra.mrb[0].mxu0 %v3881
    %v4412 = vpop.f32.mrb[0].mxu0
    %v4413 = vadd.f32 0.0, %v4412
    %v4414 = vpop.f32.mrb[0].mxu0
    %4415 = vmatprep.mubr.f32.mxu0 %v3886
    %4416 = vmatmul.mubr.f32.gmra.mrb[0].mxu0 %v3885
    %v4417 = vpop.f32.mrb[0].mxu0
    %v4418 = vadd.f32 0.0, %v4417
    %v4419 = vpop.f32.mrb[0].mxu0
    %4420 = vmatprep.mubr.f32.mxu0 %v3890
    %4421 = vmatmul.mubr.f32.gmra.mrb[0].mxu0 %v3889
    %v4422 = vpop.f32.mrb[0].mxu0
    %v4423 = vadd.f32 0.0, %v4422
    %v4424 = vpop.f32.mrb[0].mxu0
    %4425 = vmatprep.mubr.f32.mxu0 %v3894
    %4426 = vmatmul.mubr.f32.gmra.mrb[0].mxu0 %v3893
    %v4427 = vpop.f32.mrb[0].mxu0
    %v4428 = vadd.f32 0.0, %v4427
    %v4429 = vpop.f32.mrb[0].mxu0
    %4430 = vmatprep.mubr.f32.mxu0 %v3898
    %4431 = vmatmul.mubr.f32.gmra.mrb[0].mxu0 %v3897
    %v4432 = vpop.f32.mrb[0].mxu0
    %v4433 = vadd.f32 0.0, %v4432
    %v4434 = vpop.f32.mrb[0].mxu0
    %4435 = vmatprep.mubr.f32.mxu0 %v3902
    %4436 = vmatmul.mubr.f32.gmra.mrb[0].mxu0 %v3901
    %v4437 = vpop.f32.mrb[0].mxu0
    %v4438 = vadd.f32 0.0, %v4437
    %v4439 = vpop.f32.mrb[0].mxu0
    %4440 = vdwg.mxu0
    %4441 = vmatprep.subr.mxu0 0.0
    %4442 = vmatpush1.msra.mxu0 %v4003
    %4443 = vmatprep.subr.mxu0 0.0
    %4444 = vmatpush1.msra.mxu0 %v4006
    %4445 = vmatprep.subr.mxu0 0.0
    %4446 = vmatpush1.msra.mxu0 %v4009
    %4447 = vmatprep.subr.mxu0 0.0
    %4448 = vmatpush1.msra.mxu0 %v4012
    %4449 = vmatprep.subr.mxu0 0.0
    %4450 = vmatpush1.msra.mxu0 %v4015
    %4451 = vmatprep.subr.mxu0 0.0
    %4452 = vmatpush1.msra.mxu0 %v4018
    %4453 = vmatprep.subr.mxu0 0.0
    %4454 = vmatpush1.msra.mxu0 %v4021
    %4455 = vmatprep.subr.mxu0 0.0
    %4456 = vmatpush1.msra.mxu0 %v4024
    %4457 = vmatprep.subr.mxu0 0.0
    %4458 = vmatpush1.msra.mxu0 %v4027
    %4459 = vmatprep.subr.mxu0 0.0
    %4460 = vmatpush1.msra.mxu0 %v4030
    %4461 = vmatprep.subr.mxu0 0.0
    %4462 = vmatpush1.msra.mxu0 %v4033
    %4463 = vmatprep.subr.mxu0 0.0
    %4464 = vmatpush1.msra.mxu0 %v4036
    %4465 = vmatprep.subr.mxu0 0.0
    %4466 = vmatpush1.msra.mxu0 %v4039
    %4467 = vmatprep.subr.mxu0 0.0
    %4468 = vmatpush1.msra.mxu0 %v4042
    %4469 = vmatprep.subr.mxu0 0.0
    %4470 = vmatpush1.msra.mxu0 %v4045
    %4471 = vmatprep.subr.mxu0 0.0
    %4472 = vmatpush1.msra.mxu0 %v4048
    %4473 = vmatprep.subr.mxu0 0.0
    %4474 = vmatpush1.msra.mxu0 %v4051
    %4475 = vmatprep.subr.mxu0 0.0
    %4476 = vmatpush1.msra.mxu0 %v4054
    %4477 = vmatprep.subr.mxu0 0.0
    %4478 = vmatpush1.msra.mxu0 %v4057
    %4479 = vmatprep.subr.mxu0 0.0
    %4480 = vmatpush1.msra.mxu0 %v4060
    %4481 = vmatprep.subr.mxu0 0.0
    %4482 = vmatpush1.msra.mxu0 %v4063
    %4483 = vmatprep.subr.mxu0 0.0
    %4484 = vmatpush1.msra.mxu0 %v4066
    %4485 = vmatprep.subr.mxu0 0.0
    %4486 = vmatpush1.msra.mxu0 %v4069
    %4487 = vmatprep.subr.mxu0 0.0
    %4488 = vmatpush1.msra.mxu0 %v4072
    %4489 = vmatprep.subr.mxu0 0.0
    %4490 = vmatpush1.msra.mxu0 %v4075
    %4491 = vmatprep.subr.mxu0 0.0
    %4492 = vmatpush1.msra.mxu0 %v4078
    %4493 = vmatprep.subr.mxu0 0.0
    %4494 = vmatpush1.msra.mxu0 %v4081
    %4495 = vmatprep.subr.mxu0 0.0
    %4496 = vmatpush1.msra.mxu0 %v4084
    %4497 = vmatprep.subr.mxu0 0.0
    %4498 = vmatpush1.msra.mxu0 0.0
    %4499 = vmatprep.subr.mxu0 0.0
    %4500 = vmatpush1.msra.mxu0 0.0
    %4501 = vmatprep.subr.mxu0 0.0
    %4502 = vmatpush1.msra.mxu0 0.0
    %4503 = vmatprep.subr.mxu0 0.0
    %4504 = vmatpush1.msra.mxu0 0.0
    %4505 = vmatprep.mubr.f32.mxu0 %v4087
    %4506 = vmatmul.mubr.f32.gmra.mrb[0].mxu0 %v3875
    %v4507 = vpop.f32.mrb[0].mxu0
    %v4508 = vadd.f32 %v4403, %v4507
    %v4509 = vpop.f32.mrb[0].mxu0
    %4510 = vmatprep.mubr.f32.mxu0 %v4090
    %4511 = vmatmul.mubr.f32.gmra.mrb[0].mxu0 %v3879
    %v4512 = vpop.f32.mrb[0].mxu0
    %v4513 = vadd.f32 %v4408, %v4512
    %v4514 = vpop.f32.mrb[0].mxu0
    %4515 = vmatprep.mubr.f32.mxu0 %v4093
    %4516 = vmatmul.mubr.f32.gmra.mrb[0].mxu0 %v3883
    %v4517 = vpop.f32.mrb[0].mxu0
    %v4518 = vadd.f32 %v4413, %v4517
    %v4519 = vpop.f32.mrb[0].mxu0
    %4520 = vmatprep.mubr.f32.mxu0 %v4096
    %4521 = vmatmul.mubr.f32.gmra.mrb[0].mxu0 %v3887
    %v4522 = vpop.f32.mrb[0].mxu0
    %v4523 = vadd.f32 %v4418, %v4522
    %v4524 = vpop.f32.mrb[0].mxu0
    %4525 = vmatprep.mubr.f32.mxu0 %v4099
    %4526 = vmatmul.mubr.f32.gmra.mrb[0].mxu0 %v3891
    %v4527 = vpop.f32.mrb[0].mxu0
    %v4528 = vadd.f32 %v4423, %v4527
    %v4529 = vpop.f32.mrb[0].mxu0
    %4530 = vmatprep.mubr.f32.mxu0 %v4102
    %4531 = vmatmul.mubr.f32.gmra.mrb[0].mxu0 %v3895
    %v4532 = vpop.f32.mrb[0].mxu0
    %v4533 = vadd.f32 %v4428, %v4532
    %v4534 = vpop.f32.mrb[0].mxu0
    %4535 = vmatprep.mubr.f32.mxu0 %v4105
    %4536 = vmatmul.mubr.f32.gmra.mrb[0].mxu0 %v3899
    %v4537 = vpop.f32.mrb[0].mxu0
    %v4538 = vadd.f32 %v4433, %v4537
    %v4539 = vpop.f32.mrb[0].mxu0
    %4540 = vmatprep.mubr.f32.mxu0 %v4108
    %4541 = vmatmul.mubr.f32.gmra.mrb[0].mxu0 %v3903
    %v4542 = vpop.f32.mrb[0].mxu0
    %v4543 = vadd.f32 %v4438, %v4542
    %v4544 = vpop.f32.mrb[0].mxu0
    %4545 = vdwg.mxu0
    %v4546 = vld [vmem:[#allocation8] sm:$0xff]
    %v4547 = vld [vmem:[#allocation8 + $0x8] sm:$0xff]
    %v4548 = vld [vmem:[#allocation8 + $0x10] sm:$0xff]
    %v4549 = vld [vmem:[#allocation8 + $0x18] sm:$0xff]
    %v4550 = vld [vmem:[#allocation8 + $0x20] sm:$0xff]
    %v4551 = vld [vmem:[#allocation8 + $0x28] sm:$0xff]
    %v4552 = vld [vmem:[#allocation8 + $0x30] sm:$0xff]
    %v4553 = vld [vmem:[#allocation8 + $0x38] sm:$0xff]
    %v4554 = vld [vmem:[#allocation8 + $0x40] sm:$0xff]
    %v4555 = vld [vmem:[#allocation8 + $0x48] sm:$0xff]
    %v4556 = vld [vmem:[#allocation8 + $0x50] sm:$0xff]
    %v4557 = vld [vmem:[#allocation8 + $0x58] sm:$0xff]
    %v4558 = vld [vmem:[#allocation8 + $0x60] sm:$0xff]
    %v4559 = vld [vmem:[#allocation8 + $0x68] sm:$0xff]
    %v4560 = vld [vmem:[#allocation8 + $0x70] sm:$0xff]
    %v4561 = vld [vmem:[#allocation8 + $0x78] sm:$0xff]
    %v4562 = vld [vmem:[#allocation8 + $0x80] sm:$0xff]
    %v4563 = vld [vmem:[#allocation8 + $0x88] sm:$0xff]
    %v4564 = vld [vmem:[#allocation8 + $0x90] sm:$0xff]
    %v4565 = vld [vmem:[#allocation8 + $0x98] sm:$0xff]
    %v4566 = vld [vmem:[#allocation8 + $0xa0] sm:$0xff]
    %v4567 = vld [vmem:[#allocation8 + $0xa8] sm:$0xff]
    %v4568 = vld [vmem:[#allocation8 + $0xb0] sm:$0xff]
    %v4569 = vld [vmem:[#allocation8 + $0xb8] sm:$0xff]
    %v4570 = vmul.f32 %v4290, %v4546
    %v4571 = vmul.f32 %v4292, %v4547
    %v4572 = vmul.f32 %v4508, %v4548
    %v4573 = vmul.f32 %v4296, %v4549
    %v4574 = vmul.f32 %v4298, %v4550
    %v4575 = vmul.f32 %v4513, %v4551
    %v4576 = vmul.f32 %v4302, %v4552
    %v4577 = vmul.f32 %v4304, %v4553
    %v4578 = vmul.f32 %v4518, %v4554
    %v4579 = vmul.f32 %v4308, %v4555
    %v4580 = vmul.f32 %v4310, %v4556
    %v4581 = vmul.f32 %v4523, %v4557
    %v4582 = vmul.f32 %v4314, %v4558
    %v4583 = vmul.f32 %v4316, %v4559
    %v4584 = vmul.f32 %v4528, %v4560
    %v4585 = vmul.f32 %v4320, %v4561
    %v4586 = vmul.f32 %v4322, %v4562
    %v4587 = vmul.f32 %v4533, %v4563
    %v4588 = vmul.f32 %v4326, %v4564
    %v4589 = vmul.f32 %v4328, %v4565
    %v4590 = vmul.f32 %v4538, %v4566
    %v4591 = vmul.f32 %v4332, %v4567
    %v4592 = vmul.f32 %v4334, %v4568
    %v4593 = vmul.f32 %v4543, %v4569
    %v4594 = vld [vmem:[%s19] sm:$0xff]
    %v4595 = vld [vmem:[%s19 + $0x8] sm:$0xff]
    %v4596 = vld [vmem:[%s19 + $0x10] sm:$0xff]
    %v4597 = vld [vmem:[%s19 + $0x18] sm:$0xff]
    %v4598 = vld [vmem:[%s19 + $0x20] sm:$0xff]
    %v4599 = vld [vmem:[%s19 + $0x28] sm:$0xff]
    %v4600 = vld [vmem:[%s19 + $0x30] sm:$0xff]
    %v4601 = vld [vmem:[%s19 + $0x38] sm:$0xff]
    %v4602 = vld [vmem:[%s19 + $0x40] sm:$0xff]
    %v4603 = vld [vmem:[%s19 + $0x48] sm:$0xff]
    %v4604 = vld [vmem:[%s19 + $0x50] sm:$0xff]
    %v4605 = vld [vmem:[%s19 + $0x58] sm:$0xff]
    %v4606 = vld [vmem:[%s19 + $0x60] sm:$0xff]
    %v4607 = vld [vmem:[%s19 + $0x68] sm:$0xff]
    %v4608 = vld [vmem:[%s19 + $0x70] sm:$0xff]
    %v4609 = vld [vmem:[%s19 + $0x78] sm:$0xff]
    %v4610 = vld [vmem:[%s19 + $0x80] sm:$0xff]
    %v4611 = vld [vmem:[%s19 + $0x88] sm:$0xff]
    %v4612 = vld [vmem:[%s19 + $0x90] sm:$0xff]
    %v4613 = vld [vmem:[%s19 + $0x98] sm:$0xff]
    %v4614 = vld [vmem:[%s19 + $0xa0] sm:$0xff]
    %v4615 = vld [vmem:[%s19 + $0xa8] sm:$0xff]
    %v4616 = vld [vmem:[%s19 + $0xb0] sm:$0xff]
    %v4617 = vld [vmem:[%s19 + $0xb8] sm:$0xff]
    %v4618 = vld [vmem:[%s19 + $0xc0] sm:$0xff]
    %v4619 = vld [vmem:[%s19 + $0xc8] sm:$0xff]
    %v4620 = vld [vmem:[%s19 + $0xd0] sm:$0xff]
    %v4621 = vld [vmem:[%s19 + $0xd8] sm:$0xff]
    %v4622 = vld [vmem:[%s19 + $0xe0] sm:$0xff]
    %v4623 = vld [vmem:[%s19 + $0xe8] sm:$0xff]
    %v4624 = vld [vmem:[%s19 + $0xf0] sm:$0xff]
    %v4625 = vld [vmem:[%s19 + $0xf8] sm:$0xff]
    %v4626 = vld [vmem:[%s19 + $0x100] sm:$0xff]
    %v4627 = vld [vmem:[%s19 + $0x108] sm:$0xff]
    %v4628 = vld [vmem:[%s19 + $0x110] sm:$0xff]
    %v4629 = vld [vmem:[%s19 + $0x118] sm:$0xff]
    %v4630 = vld [vmem:[%s19 + $0x120] sm:$0xff]
    %v4631 = vld [vmem:[%s19 + $0x128] sm:$0xff]
    %v4632 = vld [vmem:[%s19 + $0x130] sm:$0xff]
    %v4633 = vld [vmem:[%s19 + $0x138] sm:$0xff]
    %v4635 = vsel %vm166, %v4572, 0
    %v4638 = vsel %vm166, %v4575, 0
    %v4641 = vsel %vm166, %v4578, 0
    %v4644 = vsel %vm166, %v4581, 0
    %v4647 = vsel %vm166, %v4584, 0
    %v4650 = vsel %vm166, %v4587, 0
    %v4653 = vsel %vm166, %v4590, 0
    %v4656 = vsel %vm166, %v4593, 0
    %4658 = vmatprep.subr.mxu0 0.0
    %4659 = vmatpush1.msra.mxu0 %v4594
    %4660 = vmatprep.subr.mxu0 0.0
    %4661 = vmatpush1.msra.mxu0 %v4595
    %4662 = vmatprep.subr.mxu0 0.0
    %4663 = vmatpush1.msra.mxu0 %v4596
    %4664 = vmatprep.subr.mxu0 0.0
    %4665 = vmatpush1.msra.mxu0 %v4597
    %4666 = vmatprep.subr.mxu0 0.0
    %4667 = vmatpush1.msra.mxu0 %v4598
    %4668 = vmatprep.subr.mxu0 0.0
    %4669 = vmatpush1.msra.mxu0 %v4599
    %4670 = vmatprep.subr.mxu0 0.0
    %4671 = vmatpush1.msra.mxu0 %v4600
    %4672 = vmatprep.subr.mxu0 0.0
    %4673 = vmatpush1.msra.mxu0 %v4601
    %4674 = vmatprep.subr.mxu0 0.0
    %4675 = vmatpush1.msra.mxu0 %v4602
    %4676 = vmatprep.subr.mxu0 0.0
    %4677 = vmatpush1.msra.mxu0 %v4603
    %4678 = vmatprep.subr.mxu0 0.0
    %4679 = vmatpush1.msra.mxu0 %v4604
    %4680 = vmatprep.subr.mxu0 0.0
    %4681 = vmatpush1.msra.mxu0 %v4605
    %4682 = vmatprep.subr.mxu0 0.0
    %4683 = vmatpush1.msra.mxu0 %v4606
    %4684 = vmatprep.subr.mxu0 0.0
    %4685 = vmatpush1.msra.mxu0 %v4607
    %4686 = vmatprep.subr.mxu0 0.0
    %4687 = vmatpush1.msra.mxu0 %v4608
    %4688 = vmatprep.subr.mxu0 0.0
    %4689 = vmatpush1.msra.mxu0 %v4609
    %4690 = vmatprep.subr.mxu0 0.0
    %4691 = vmatpush1.msra.mxu0 %v4610
    %4692 = vmatprep.subr.mxu0 0.0
    %4693 = vmatpush1.msra.mxu0 %v4611
    %4694 = vmatprep.subr.mxu0 0.0
    %4695 = vmatpush1.msra.mxu0 %v4612
    %4696 = vmatprep.subr.mxu0 0.0
    %4697 = vmatpush1.msra.mxu0 %v4613
    %4698 = vmatprep.subr.mxu0 0.0
    %4699 = vmatpush1.msra.mxu0 %v4614
    %4700 = vmatprep.subr.mxu0 0.0
    %4701 = vmatpush1.msra.mxu0 %v4615
    %4702 = vmatprep.subr.mxu0 0.0
    %4703 = vmatpush1.msra.mxu0 %v4616
    %4704 = vmatprep.subr.mxu0 0.0
    %4705 = vmatpush1.msra.mxu0 %v4617
    %4706 = vmatprep.subr.mxu0 0.0
    %4707 = vmatpush1.msra.mxu0 %v4618
    %4708 = vmatprep.subr.mxu0 0.0
    %4709 = vmatpush1.msra.mxu0 %v4619
    %4710 = vmatprep.subr.mxu0 0.0
    %4711 = vmatpush1.msra.mxu0 %v4620
    %4712 = vmatprep.subr.mxu0 0.0
    %4713 = vmatpush1.msra.mxu0 %v4621
    %4714 = vmatprep.subr.mxu0 0.0
    %4715 = vmatpush1.msra.mxu0 %v4622
    %4716 = vmatprep.subr.mxu0 0.0
    %4717 = vmatpush1.msra.mxu0 %v4623
    %4718 = vmatprep.subr.mxu0 0.0
    %4719 = vmatpush1.msra.mxu0 %v4624
    %4720 = vmatprep.subr.mxu0 0.0
    %4721 = vmatpush1.msra.mxu0 %v4625
    %4722 = vmatprep.mubr.f32.mxu0 %v4571
    %4723 = vmatmul.mubr.f32.gmra.mrb[0].mxu0 %v4570
    %v4724 = vpop.f32.mrb[0].mxu0
    %v4725 = vadd.f32 0.0, %v4724
    %v4726 = vpop.f32.mrb[0].mxu0
    %4727 = vmatprep.mubr.f32.mxu0 %v4574
    %4728 = vmatmul.mubr.f32.gmra.mrb[0].mxu0 %v4573
    %v4729 = vpop.f32.mrb[0].mxu0
    %v4730 = vadd.f32 0.0, %v4729
    %v4731 = vpop.f32.mrb[0].mxu0
    %4732 = vmatprep.mubr.f32.mxu0 %v4577
    %4733 = vmatmul.mubr.f32.gmra.mrb[0].mxu0 %v4576
    %v4734 = vpop.f32.mrb[0].mxu0
    %v4735 = vadd.f32 0.0, %v4734
    %v4736 = vpop.f32.mrb[0].mxu0
    %4737 = vmatprep.mubr.f32.mxu0 %v4580
    %4738 = vmatmul.mubr.f32.gmra.mrb[0].mxu0 %v4579
    %v4739 = vpop.f32.mrb[0].mxu0
    %v4740 = vadd.f32 0.0, %v4739
    %v4741 = vpop.f32.mrb[0].mxu0
    %4742 = vmatprep.mubr.f32.mxu0 %v4583
    %4743 = vmatmul.mubr.f32.gmra.mrb[0].mxu0 %v4582
    %v4744 = vpop.f32.mrb[0].mxu0
    %v4745 = vadd.f32 0.0, %v4744
    %v4746 = vpop.f32.mrb[0].mxu0
    %4747 = vmatprep.mubr.f32.mxu0 %v4586
    %4748 = vmatmul.mubr.f32.gmra.mrb[0].mxu0 %v4585
    %v4749 = vpop.f32.mrb[0].mxu0
    %v4750 = vadd.f32 0.0, %v4749
    %v4751 = vpop.f32.mrb[0].mxu0
    %4752 = vmatprep.mubr.f32.mxu0 %v4589
    %4753 = vmatmul.mubr.f32.gmra.mrb[0].mxu0 %v4588
    %v4754 = vpop.f32.mrb[0].mxu0
    %v4755 = vadd.f32 0.0, %v4754
    %v4756 = vpop.f32.mrb[0].mxu0
    %4757 = vmatprep.mubr.f32.mxu0 %v4592
    %4758 = vmatmul.mubr.f32.gmra.mrb[0].mxu0 %v4591
    %v4759 = vpop.f32.mrb[0].mxu0
    %v4760 = vadd.f32 0.0, %v4759
    %v4761 = vpop.f32.mrb[0].mxu0
    %4762 = vdwg.mxu0
    %4763 = vmatprep.subr.mxu0 0.0
    %4764 = vmatpush1.msra.mxu0 %v4626
    %4765 = vmatprep.subr.mxu0 0.0
    %4766 = vmatpush1.msra.mxu0 %v4627
    %4767 = vmatprep.subr.mxu0 0.0
    %4768 = vmatpush1.msra.mxu0 %v4628
    %4769 = vmatprep.subr.mxu0 0.0
    %4770 = vmatpush1.msra.mxu0 %v4629
    %4771 = vmatprep.subr.mxu0 0.0
    %4772 = vmatpush1.msra.mxu0 %v4630
    %4773 = vmatprep.subr.mxu0 0.0
    %4774 = vmatpush1.msra.mxu0 %v4631
    %4775 = vmatprep.subr.mxu0 0.0
    %4776 = vmatpush1.msra.mxu0 %v4632
    %4777 = vmatprep.subr.mxu0 0.0
    %4778 = vmatpush1.msra.mxu0 %v4633
    %4779 = vmatprep.subr.mxu0 0.0
    %4780 = vmatpush1.msra.mxu0 0.0
    %4781 = vmatprep.subr.mxu0 0.0
    %4782 = vmatpush1.msra.mxu0 0.0
    %4783 = vmatprep.subr.mxu0 0.0
    %4784 = vmatpush1.msra.mxu0 0.0
    %4785 = vmatprep.subr.mxu0 0.0
    %4786 = vmatpush1.msra.mxu0 0.0
    %4787 = vmatprep.subr.mxu0 0.0
    %4788 = vmatpush1.msra.mxu0 0.0
    %4789 = vmatprep.subr.mxu0 0.0
    %4790 = vmatpush1.msra.mxu0 0.0
    %4791 = vmatprep.subr.mxu0 0.0
    %4792 = vmatpush1.msra.mxu0 0.0
    %4793 = vmatprep.subr.mxu0 0.0
    %4794 = vmatpush1.msra.mxu0 0.0
    %4795 = vmatprep.subr.mxu0 0.0
    %4796 = vmatpush1.msra.mxu0 0.0
    %4797 = vmatprep.subr.mxu0 0.0
    %4798 = vmatpush1.msra.mxu0 0.0
    %4799 = vmatprep.subr.mxu0 0.0
    %4800 = vmatpush1.msra.mxu0 0.0
    %4801 = vmatprep.subr.mxu0 0.0
    %4802 = vmatpush1.msra.mxu0 0.0
    %4803 = vmatprep.subr.mxu0 0.0
    %4804 = vmatpush1.msra.mxu0 0.0
    %4805 = vmatprep.subr.mxu0 0.0
    %4806 = vmatpush1.msra.mxu0 0.0
    %4807 = vmatprep.subr.mxu0 0.0
    %4808 = vmatpush1.msra.mxu0 0.0
    %4809 = vmatprep.subr.mxu0 0.0
    %4810 = vmatpush1.msra.mxu0 0.0
    %4811 = vmatprep.subr.mxu0 0.0
    %4812 = vmatpush1.msra.mxu0 0.0
    %4813 = vmatprep.subr.mxu0 0.0
    %4814 = vmatpush1.msra.mxu0 0.0
    %4815 = vmatprep.subr.mxu0 0.0
    %4816 = vmatpush1.msra.mxu0 0.0
    %4817 = vmatprep.subr.mxu0 0.0
    %4818 = vmatpush1.msra.mxu0 0.0
    %4819 = vmatprep.subr.mxu0 0.0
    %4820 = vmatpush1.msra.mxu0 0.0
    %4821 = vmatprep.subr.mxu0 0.0
    %4822 = vmatpush1.msra.mxu0 0.0
    %4823 = vmatprep.subr.mxu0 0.0
    %4824 = vmatpush1.msra.mxu0 0.0
    %4825 = vmatprep.subr.mxu0 0.0
    %4826 = vmatpush1.msra.mxu0 0.0
    %4827 = vmatprep.mubr.f32.mxu0 0.0
    %4828 = vmatmul.mubr.f32.gmra.mrb[0].mxu0 %v4635
    %v4829 = vpop.f32.mrb[0].mxu0
    %v4830 = vadd.f32 %v4725, %v4829
    %v4831 = vpop.f32.mrb[0].mxu0
    %4832 = vmatprep.mubr.f32.mxu0 0.0
    %4833 = vmatmul.mubr.f32.gmra.mrb[0].mxu0 %v4638
    %v4834 = vpop.f32.mrb[0].mxu0
    %v4835 = vadd.f32 %v4730, %v4834
    %v4836 = vpop.f32.mrb[0].mxu0
    %4837 = vmatprep.mubr.f32.mxu0 0.0
    %4838 = vmatmul.mubr.f32.gmra.mrb[0].mxu0 %v4641
    %v4839 = vpop.f32.mrb[0].mxu0
    %v4840 = vadd.f32 %v4735, %v4839
    %v4841 = vpop.f32.mrb[0].mxu0
    %4842 = vmatprep.mubr.f32.mxu0 0.0
    %4843 = vmatmul.mubr.f32.gmra.mrb[0].mxu0 %v4644
    %v4844 = vpop.f32.mrb[0].mxu0
    %v4845 = vadd.f32 %v4740, %v4844
    %v4846 = vpop.f32.mrb[0].mxu0
    %4847 = vmatprep.mubr.f32.mxu0 0.0
    %4848 = vmatmul.mubr.f32.gmra.mrb[0].mxu0 %v4647
    %v4849 = vpop.f32.mrb[0].mxu0
    %v4850 = vadd.f32 %v4745, %v4849
    %v4851 = vpop.f32.mrb[0].mxu0
    %4852 = vmatprep.mubr.f32.mxu0 0.0
    %4853 = vmatmul.mubr.f32.gmra.mrb[0].mxu0 %v4650
    %v4854 = vpop.f32.mrb[0].mxu0
    %v4855 = vadd.f32 %v4750, %v4854
    %v4856 = vpop.f32.mrb[0].mxu0
    %4857 = vmatprep.mubr.f32.mxu0 0.0
    %4858 = vmatmul.mubr.f32.gmra.mrb[0].mxu0 %v4653
    %v4859 = vpop.f32.mrb[0].mxu0
    %v4860 = vadd.f32 %v4755, %v4859
    %v4861 = vpop.f32.mrb[0].mxu0
    %4862 = vmatprep.mubr.f32.mxu0 0.0
    %4863 = vmatmul.mubr.f32.gmra.mrb[0].mxu0 %v4656
    %v4864 = vpop.f32.mrb[0].mxu0
    %v4865 = vadd.f32 %v4760, %v4864
    %v4866 = vpop.f32.mrb[0].mxu0
    %4867 = vdwg.mxu0
    %v4868 = vld [vmem:[%s18] sm:$0x3]
    %v4869 = vld [vmem:[#allocation10] sm:$0x1]
    %v4871 = vlaneseq
    %v4872 = vshrl.u32 %v4871, 7
    %v4873 = vsub.s32 0, %v4872
    %v4874 = vrot.slane %v4869, %v4873
    %v4877 = vsel %vm166, %v4868, 0
    %4879 = vmatprep.subr.mxu0 0.0
    %4880 = vmatpush1.msra.mxu0 %v4830
    %4881 = vmatprep.subr.mxu0 0.0
    %4882 = vmatpush1.msra.mxu0 %v4835
    %4883 = vmatprep.subr.mxu0 0.0
    %4884 = vmatpush1.msra.mxu0 %v4840
    %4885 = vmatprep.subr.mxu0 0.0
    %4886 = vmatpush1.msra.mxu0 %v4845
    %4887 = vmatprep.subr.mxu0 0.0
    %4888 = vmatpush1.msra.mxu0 %v4850
    %4889 = vmatprep.subr.mxu0 0.0
    %4890 = vmatpush1.msra.mxu0 %v4855
    %4891 = vmatprep.subr.mxu0 0.0
    %4892 = vmatpush1.msra.mxu0 %v4860
    %4893 = vmatprep.subr.mxu0 0.0
    %4894 = vmatpush1.msra.mxu0 %v4865
    %4895 = vmatprep.subr.mxu0 0.0
    %4896 = vmatpush1.msra.mxu0 0.0
    %4897 = vmatprep.subr.mxu0 0.0
    %4898 = vmatpush1.msra.mxu0 0.0
    %4899 = vmatprep.subr.mxu0 0.0
    %4900 = vmatpush1.msra.mxu0 0.0
    %4901 = vmatprep.subr.mxu0 0.0
    %4902 = vmatpush1.msra.mxu0 0.0
    %4903 = vmatprep.subr.mxu0 0.0
    %4904 = vmatpush1.msra.mxu0 0.0
    %4905 = vmatprep.subr.mxu0 0.0
    %4906 = vmatpush1.msra.mxu0 0.0
    %4907 = vmatprep.subr.mxu0 0.0
    %4908 = vmatpush1.msra.mxu0 0.0
    %4909 = vmatprep.subr.mxu0 0.0
    %4910 = vmatpush1.msra.mxu0 0.0
    %4911 = vmatprep.subr.mxu0 0.0
    %4912 = vmatpush1.msra.mxu0 0.0
    %4913 = vmatprep.subr.mxu0 0.0
    %4914 = vmatpush1.msra.mxu0 0.0
    %4915 = vmatprep.subr.mxu0 0.0
    %4916 = vmatpush1.msra.mxu0 0.0
    %4917 = vmatprep.subr.mxu0 0.0
    %4918 = vmatpush1.msra.mxu0 0.0
    %4919 = vmatprep.subr.mxu0 0.0
    %4920 = vmatpush1.msra.mxu0 0.0
    %4921 = vmatprep.subr.mxu0 0.0
    %4922 = vmatpush1.msra.mxu0 0.0
    %4923 = vmatprep.subr.mxu0 0.0
    %4924 = vmatpush1.msra.mxu0 0.0
    %4925 = vmatprep.subr.mxu0 0.0
    %4926 = vmatpush1.msra.mxu0 0.0
    %4927 = vmatprep.subr.mxu0 0.0
    %4928 = vmatpush1.msra.mxu0 0.0
    %4929 = vmatprep.subr.mxu0 0.0
    %4930 = vmatpush1.msra.mxu0 0.0
    %4931 = vmatprep.subr.mxu0 0.0
    %4932 = vmatpush1.msra.mxu0 0.0
    %4933 = vmatprep.subr.mxu0 0.0
    %4934 = vmatpush1.msra.mxu0 0.0
    %4935 = vmatprep.subr.mxu0 0.0
    %4936 = vmatpush1.msra.mxu0 0.0
    %4937 = vmatprep.subr.mxu0 0.0
    %4938 = vmatpush1.msra.mxu0 0.0
    %4939 = vmatprep.subr.mxu0 0.0
    %4940 = vmatpush1.msra.mxu0 0.0
    %4941 = vmatprep.subr.mxu0 0.0
    %4942 = vmatpush1.msra.mxu0 0.0
    %4943 = vmatprep.mubr.f32.mxu0 0.0
    %4944 = vmatmul.mubr.f32.gmra.mrb[0].mxu0 %v4877
    %v4945 = vpop.f32.mrb[0].mxu0
    %v4946 = vadd.f32 %v4874, %v4945
    %v4947 = vpop.f32.mrb[0].mxu0
    %4948 = vdwg.mxu0
    %v4949 = vsub.f32 0.0, %v4946
    %v4950 = vmul.f32 %v4949, 1.442695
    %v4951 = vpow.pop %v4950
    %v4952 = vadd.f32 %v4951, 1.0
    %v4953 = vrcp.pop %v4952
    %v4954 = vmul.f32 1.0, %v4953
    %vm4955 = vcmask 74752
    %4956 = vst.msk [vmem:[#allocation11] sm:$0x3] %vm4955, %v4954
    // Predicated region
    $region106: #{conv2d_classifier_forward.1} parent=1 // pred_check
      _
    $region107: #{conv2d_classifier_forward.1} parent=1 // pred_check_branch
      %4958 = sbr.rel (0) target = $region109
    $region108: #{conv2d_classifier_forward.1} parent=1 // pred_region
      %s4960 = ssub.s32 32, 32
      %4961 = vsyncadd [#allocation4], %s4960
      %s4963 = sshll.u32 [#allocation11], 4
      %s4964 = int_to_ptr.vmem [resolvable:$true] %s4963
      %4966 = dma.vmem_to_hbm [thread:$0]  %s4964, 32, %s21, [#allocation4]
    $region109: #{conv2d_classifier_forward.1} parent=1 // pred_fallthru
      _
    // Predicated region
    $region110: #{conv2d_classifier_forward.1} parent=1 // pred_check
      _
    $region111: #{conv2d_classifier_forward.1} parent=1 // pred_check_branch
      %4968 = sbr.rel (0) target = $region113
    $region112: #{conv2d_classifier_forward.1} parent=1 // pred_region
      %4969 = dma.done [#allocation4], 32
    $region113: #{conv2d_classifier_forward.1} parent=1 // pred_fallthru
      _
    %4970 = vsyncpa [#allocation3], 1
    %4971 = vsyncpa [#allocation6], 1
    %4972 = vsyncpa [#allocation9], 1
    %4973 = vsyncpa [#allocation4], 1

</llo_original>
